<compile_context>
chip_gen: v7x
topology: tpu7x:2x2x1
jax: 0.10.0
libtpu: 0.0.40
codegen_flags: <defaults>
</compile_context>

<pallas_src>
import functools

import jax
import jax.numpy as jnp
from jax.experimental import pallas as pl
from jax.experimental.pallas import tpu as pltpu

# ---------------- model hyper-parameters (mirror the PyTorch __init__) --------
NUM_BASIS = 10          # num_basis
HIDDEN = 16             # nn.Linear(num_basis, 16)
NUM_WEIGHTS = 32        # num_weights
CUTOFF = 4.0            # cutoff
ENVELOPE_EXPONENT = 5   # PyG BesselBasisLayer default

# Envelope polynomial coefficients (PyG Envelope with exponent=5 -> p=6)
_P = ENVELOPE_EXPONENT + 1
_A = -(_P + 1) * (_P + 2) / 2.0   # -28
_B = _P * (_P + 2)                #  48
_C = -_P * (_P + 1) / 2.0         # -21


# ---------------------------------- kernel -----------------------------------
def radialnet_kernel(dist_ref, freq_ref, w1t_ref, b1_ref, w2t_ref, b2_ref, out_ref):
    # dist_ref: [1, TE]   (edges on the lane axis)
    # freq_ref: [NB, 1]
    # w1t_ref:  [H, NB]   b1_ref: [H, 1]
    # w2t_ref:  [NW, H]   b2_ref: [NW, 1]
    # out_ref:  [TE, NW]  (row-major [E, num_weights] slab, no wrapper transpose)
    x = dist_ref[...].astype(jnp.float32) * (1.0 / CUTOFF)          # [1, TE]

    # Envelope(x) = (1/x + a*x^(p-1) + b*x^p + c*x^(p+1)) * (x < 1)
    inv_x = pl.reciprocal(x, approx=True)
    inv_x = inv_x * (2.0 - x * inv_x)            # one Newton step -> ~f32-exact 1/x
    x2 = x * x
    x5 = x2 * x2 * x                             # x^(p-1), p = 6
    env = inv_x + x5 * (_A + x * (_B + x * _C))  # Horner for the polynomial tail
    env = jnp.where(x < 1.0, env, 0.0)           # [1, TE]

    # Bessel basis, dense over sublanes x lanes: env(x) * sin(freq_k * x)
    theta = freq_ref[...] * x                    # [NB,1] * [1,TE] -> [NB, TE]
    feat = env * jnp.sin(theta)                  # [NB, TE]

    # Linear(NB -> H), MXU N dimension = TE (lane-dense hidden activation)
    h = jnp.dot(w1t_ref[...], feat, preferred_element_type=jnp.float32) + b1_ref[...]
    # SiLU via tanh: h * sigmoid(h) == 0.5 * h * (tanh(0.5*h) + 1)  (single EUP push)
    h = 0.5 * h * (jnp.tanh(0.5 * h) + 1.0)      # [H, TE]

    # Linear(H -> NW), still lane-dense, bias added on the dense orientation
    out32 = jnp.dot(w2t_ref[...], h, preferred_element_type=jnp.float32) + b2_ref[...]  # [NW, TE]

    # In-kernel transpose (XLU slot is otherwise idle) -> row-major [E, NW] in HBM.
    out_ref[...] = out32.T.astype(out_ref.dtype)  # [TE, NW]


# --------------------------------- wrapper ------------------------------------
def _round_up(n, m):
    return ((n + m - 1) // m) * m


@functools.partial(jax.jit, static_argnames=("tile_e",))
def radialnet_forward(dist, freq, w1, b1, w2, b2, *, tile_e=4096):
    """dist: [E, 1] float32 -> [E, num_weights] float32 (matches net(dist.squeeze(-1))).

    Parameters use the "math" layout: freq [NB], w1 [NB, H], b1 [H], w2 [H, NW], b2 [NW].
    tile_e: edges per grid step; sweep 4096-16384 for production edge counts.
    """
    E = dist.shape[0]

    # Keep >= 2 grid steps when E allows (v7x: 2 TensorCores share the parallel axis),
    # while capping at tile_e.  Tile must be a multiple of 128 (lane dim of the dist block).
    tile = min(tile_e, max(128, _round_up((E + 1) // 2, 128)))
    n_tiles = pl.cdiv(E, tile)
    E_pad = n_tiles * tile

    dist_row = dist.reshape(1, E).astype(jnp.float32)
    if E_pad != E:
        # pad with a benign in-range distance (never 0 -> no NaN in the Newton step);
        # padded rows are sliced off below
        dist_row = jnp.pad(dist_row, ((0, 0), (0, E_pad - E)), constant_values=1.0)

    freq_col = freq.reshape(NUM_BASIS, 1).astype(jnp.float32)
    w1t = w1.T.astype(jnp.float32)                       # [H, NB]
    b1c = b1.reshape(HIDDEN, 1).astype(jnp.float32)      # [H, 1]
    w2t = w2.T.astype(jnp.float32)                       # [NW, H]
    b2c = b2.reshape(NUM_WEIGHTS, 1).astype(jnp.float32) # [NW, 1]

    const = lambda shape: pl.BlockSpec(shape, lambda i: (0, 0))

    out = pl.pallas_call(
        radialnet_kernel,
        out_shape=jax.ShapeDtypeStruct((E_pad, NUM_WEIGHTS), jnp.float32),
        grid_spec=pltpu.PrefetchScalarGridSpec(
            num_scalar_prefetch=0,
            grid=(n_tiles,),
            in_specs=[
                pl.BlockSpec((1, tile), lambda i: (0, i)),     # dist row tile
                const((NUM_BASIS, 1)),                         # freq (column)
                const((HIDDEN, NUM_BASIS)),                    # W1^T
                const((HIDDEN, 1)),                            # b1  (column)
                const((NUM_WEIGHTS, HIDDEN)),                  # W2^T
                const((NUM_WEIGHTS, 1)),                       # b2  (column)
            ],
            out_specs=pl.BlockSpec((tile, NUM_WEIGHTS), lambda i: (i, 0)),
        ),
        compiler_params=pltpu.CompilerParams(dimension_semantics=("parallel",)),
    )(dist_row, freq_col, w1t, b1c, w2t, b2c)

    # Output is already [E_pad, num_weights] row-major; just drop the padded rows.
    return out[:E]


# --------------------------- pure-JAX reference --------------------------------
def radialnet_ref(dist, freq, w1, b1, w2, b2):
    x = dist.astype(jnp.float32) / CUTOFF                    # [E, 1]
    env = (1.0 / x + _A * x ** (_P - 1) + _B * x ** _P + _C * x ** (_P + 1))
    env = env * (x < 1.0).astype(jnp.float32)
    feat = env * jnp.sin(freq[None, :] * x)                  # [E, NB]
    h = feat @ w1 + b1[None, :]
    h = h * jax.nn.sigmoid(h)                                # SiLU
    return h @ w2 + b2[None, :]                              # [E, NW]


# ----------------------------------- main --------------------------------------
if __name__ == "__main__":
    key = jax.random.PRNGKey(0)
    k_d, k_w1, k_b1, k_w2, k_b2 = jax.random.split(key, 5)

    # E deliberately NOT a multiple of the tile: the wrapper picks tile=1024,
    # pads 2000 -> 2048 and runs 2 parallel grid steps (both v7x TCs get work).
    E = 2000

    # distances in (0, cutoff)
    dist = jax.random.uniform(k_d, (E, 1), jnp.float32, minval=0.1, maxval=CUTOFF)

    # BesselBasisLayer freq init: pi * [1, 2, ..., num_basis]
    freq = jnp.pi * jnp.arange(1, NUM_BASIS + 1, dtype=jnp.float32)

    # Linear params stored as [in, out] (PyTorch computes y = x @ W.T + b)
    lim1 = 1.0 / jnp.sqrt(NUM_BASIS)
    w1 = jax.random.uniform(k_w1, (NUM_BASIS, HIDDEN), jnp.float32, -lim1, lim1)
    b1 = jax.random.uniform(k_b1, (HIDDEN,), jnp.float32, -lim1, lim1)
    lim2 = 1.0 / jnp.sqrt(HIDDEN)
    w2 = jax.random.uniform(k_w2, (HIDDEN, NUM_WEIGHTS), jnp.float32, -lim2, lim2)
    b2 = jax.random.uniform(k_b2, (NUM_WEIGHTS,), jnp.float32, -lim2, lim2)

    out = radialnet_forward(dist, freq, w1, b1, w2, b2)
    out = jax.block_until_ready(out)

    ref = radialnet_ref(dist, freq, w1, b1, w2, b2)
    assert out.shape == (E, NUM_WEIGHTS)
    assert jnp.allclose(out, ref, atol=1e-4, rtol=1e-4), "mismatch vs pure-JAX reference"

    print("KERNEL_OK")
</pallas_src>

<mosaic_0001>
module attributes {stable_mosaic.version = 11 : i64} {
  func.func @radialnet_kernel(%arg0: i32, %arg1: memref<1x1024xf32, #tpu.memory_space<vmem>>, %arg2: memref<10x1xf32, #tpu.memory_space<vmem>>, %arg3: memref<16x10xf32, #tpu.memory_space<vmem>>, %arg4: memref<16x1xf32, #tpu.memory_space<vmem>>, %arg5: memref<32x16xf32, #tpu.memory_space<vmem>>, %arg6: memref<32x1xf32, #tpu.memory_space<vmem>>, %arg7: memref<1024x32xf32, #tpu.memory_space<vmem>>) attributes {dimension_semantics = [#tpu.dimension_semantics<parallel>], iteration_bounds = array<i64: 2>, scalar_prefetch = 0 : i64, scratch_operands = 0 : i64, tpu.core_type = #tpu.core_type<tc>, window_params = [{transform_indices = @transform_0, window_bounds = array<i64: 1, 1024>}, {pipeline_mode = #tpu.pipeline_mode<synchronous>, transform_indices = @transform_1, window_bounds = array<i64: 10, 1>}, {pipeline_mode = #tpu.pipeline_mode<synchronous>, transform_indices = @transform_2, window_bounds = array<i64: 16, 10>}, {pipeline_mode = #tpu.pipeline_mode<synchronous>, transform_indices = @transform_3, window_bounds = array<i64: 16, 1>}, {pipeline_mode = #tpu.pipeline_mode<synchronous>, transform_indices = @transform_4, window_bounds = array<i64: 32, 16>}, {pipeline_mode = #tpu.pipeline_mode<synchronous>, transform_indices = @transform_5, window_bounds = array<i64: 32, 1>}, {transform_indices = @transform_6, window_bounds = array<i64: 1024, 32>}]} {
    %c0 = arith.constant 0 : index
    %c0_0 = arith.constant 0 : index
    %0 = vector.load %arg1[%c0, %c0_0] : memref<1x1024xf32, #tpu.memory_space<vmem>>, vector<1x1024xf32>
    %cst = arith.constant 2.500000e-01 : f32
    %1 = vector.broadcast %cst : f32 to vector<1x1024xf32>
    %2 = arith.mulf %0, %1 : vector<1x1024xf32>
    %3 = tpu.reciprocal %2 {approx = true} : vector<1x1024xf32> -> vector<1x1024xf32>
    %4 = arith.mulf %2, %3 : vector<1x1024xf32>
    %cst_1 = arith.constant 2.000000e+00 : f32
    %5 = vector.broadcast %cst_1 : f32 to vector<1x1024xf32>
    %6 = arith.subf %5, %4 : vector<1x1024xf32>
    %7 = arith.mulf %3, %6 : vector<1x1024xf32>
    %8 = arith.mulf %2, %2 : vector<1x1024xf32>
    %9 = arith.mulf %8, %8 : vector<1x1024xf32>
    %10 = arith.mulf %9, %2 : vector<1x1024xf32>
    %cst_2 = arith.constant -2.100000e+01 : f32
    %11 = vector.broadcast %cst_2 : f32 to vector<1x1024xf32>
    %12 = arith.mulf %2, %11 : vector<1x1024xf32>
    %cst_3 = arith.constant 4.800000e+01 : f32
    %13 = vector.broadcast %cst_3 : f32 to vector<1x1024xf32>
    %14 = arith.addf %13, %12 : vector<1x1024xf32>
    %15 = arith.mulf %2, %14 : vector<1x1024xf32>
    %cst_4 = arith.constant -2.800000e+01 : f32
    %16 = vector.broadcast %cst_4 : f32 to vector<1x1024xf32>
    %17 = arith.addf %16, %15 : vector<1x1024xf32>
    %18 = arith.mulf %10, %17 : vector<1x1024xf32>
    %19 = arith.addf %7, %18 : vector<1x1024xf32>
    %cst_5 = arith.constant 1.000000e+00 : f32
    %20 = vector.broadcast %cst_5 : f32 to vector<1x1024xf32>
    %21 = arith.cmpf olt, %2, %20 : vector<1x1024xf32>
    %cst_6 = arith.constant 0.000000e+00 : f32
    %22 = vector.broadcast %cst_6 : f32 to vector<1x1024xf32>
    %23 = arith.select %21, %19, %22 : vector<1x1024xi1>, vector<1x1024xf32>
    %c0_7 = arith.constant 0 : index
    %c0_8 = arith.constant 0 : index
    %24 = vector.load %arg2[%c0_7, %c0_8] : memref<10x1xf32, #tpu.memory_space<vmem>>, vector<10x1xf32>
    %25 = vector.broadcast %24 : vector<10x1xf32> to vector<10x1024xf32>
    %26 = vector.broadcast %2 : vector<1x1024xf32> to vector<10x1024xf32>
    %27 = arith.mulf %25, %26 : vector<10x1024xf32>
    %28 = math.sin %27 : vector<10x1024xf32>
    %29 = vector.broadcast %23 : vector<1x1024xf32> to vector<10x1024xf32>
    %30 = arith.mulf %29, %28 : vector<10x1024xf32>
    %c0_9 = arith.constant 0 : index
    %c0_10 = arith.constant 0 : index
    %31 = vector.load %arg3[%c0_9, %c0_10] : memref<16x10xf32, #tpu.memory_space<vmem>>, vector<16x10xf32>
    %cst_11 = arith.constant dense<0.000000e+00> : vector<16x1024xf32>
    %32 = tpu.matmul %31, %30, %cst_11 {dimension_numbers = #tpu.dot_dimension_numbers<[1], [0], [0], [1], [0, 0, 1, 1], [], []>} : vector<16x10xf32>, vector<10x1024xf32>, vector<16x1024xf32> -> vector<16x1024xf32>
    %c0_12 = arith.constant 0 : index
    %c0_13 = arith.constant 0 : index
    %33 = vector.load %arg4[%c0_12, %c0_13] : memref<16x1xf32, #tpu.memory_space<vmem>>, vector<16x1xf32>
    %34 = vector.broadcast %33 : vector<16x1xf32> to vector<16x1024xf32>
    %35 = arith.addf %32, %34 : vector<16x1024xf32>
    %cst_14 = arith.constant 5.000000e-01 : f32
    %36 = vector.broadcast %cst_14 : f32 to vector<16x1024xf32>
    %37 = arith.mulf %36, %35 : vector<16x1024xf32>
    %cst_15 = arith.constant 5.000000e-01 : f32
    %38 = vector.broadcast %cst_15 : f32 to vector<16x1024xf32>
    %39 = arith.mulf %38, %35 : vector<16x1024xf32>
    %40 = math.tanh %39 : vector<16x1024xf32>
    %cst_16 = arith.constant 1.000000e+00 : f32
    %41 = vector.broadcast %cst_16 : f32 to vector<16x1024xf32>
    %42 = arith.addf %40, %41 : vector<16x1024xf32>
    %43 = arith.mulf %37, %42 : vector<16x1024xf32>
    %c0_17 = arith.constant 0 : index
    %c0_18 = arith.constant 0 : index
    %44 = vector.load %arg5[%c0_17, %c0_18] : memref<32x16xf32, #tpu.memory_space<vmem>>, vector<32x16xf32>
    %cst_19 = arith.constant dense<0.000000e+00> : vector<32x1024xf32>
    %45 = tpu.matmul %44, %43, %cst_19 {dimension_numbers = #tpu.dot_dimension_numbers<[1], [0], [0], [1], [0, 0, 1, 1], [], []>} : vector<32x16xf32>, vector<16x1024xf32>, vector<32x1024xf32> -> vector<32x1024xf32>
    %c0_20 = arith.constant 0 : index
    %c0_21 = arith.constant 0 : index
    %46 = vector.load %arg6[%c0_20, %c0_21] : memref<32x1xf32, #tpu.memory_space<vmem>>, vector<32x1xf32>
    %47 = vector.broadcast %46 : vector<32x1xf32> to vector<32x1024xf32>
    %48 = arith.addf %45, %47 : vector<32x1024xf32>
    %49 = tpu.transpose %48, [1, 0] : vector<32x1024xf32> -> vector<1024x32xf32>
    %c0_22 = arith.constant 0 : index
    %c0_23 = arith.constant 0 : index
    %50 = vector.load %arg7[%c0_22, %c0_23] : memref<1024x32xf32, #tpu.memory_space<vmem>>, vector<1024x32xf32>
    tpu.vector_store %arg7[%c0_22, %c0_23], %49 {strides = array<i32>} : memref<1024x32xf32, #tpu.memory_space<vmem>>, vector<1024x32xf32>,
    return
  }
  func.func @transform_0(%arg0: i32) -> (i32, i32) {
    %c0_i32 = arith.constant 0 : i32
    %c0_i32_0 = arith.constant 0 : i32
    return %c0_i32, %arg0 : i32, i32
  }
  func.func @transform_1(%arg0: i32) -> (i32, i32) {
    %c0_i32 = arith.constant 0 : i32
    %c0_i32_0 = arith.constant 0 : i32
    %c0_i32_1 = arith.constant 0 : i32
    return %c0_i32, %c0_i32_0 : i32, i32
  }
  func.func @transform_2(%arg0: i32) -> (i32, i32) {
    %c0_i32 = arith.constant 0 : i32
    %c0_i32_0 = arith.constant 0 : i32
    %c0_i32_1 = arith.constant 0 : i32
    return %c0_i32, %c0_i32_0 : i32, i32
  }
  func.func @transform_3(%arg0: i32) -> (i32, i32) {
    %c0_i32 = arith.constant 0 : i32
    %c0_i32_0 = arith.constant 0 : i32
    %c0_i32_1 = arith.constant 0 : i32
    return %c0_i32, %c0_i32_0 : i32, i32
  }
  func.func @transform_4(%arg0: i32) -> (i32, i32) {
    %c0_i32 = arith.constant 0 : i32
    %c0_i32_0 = arith.constant 0 : i32
    %c0_i32_1 = arith.constant 0 : i32
    return %c0_i32, %c0_i32_0 : i32, i32
  }
  func.func @transform_5(%arg0: i32) -> (i32, i32) {
    %c0_i32 = arith.constant 0 : i32
    %c0_i32_0 = arith.constant 0 : i32
    %c0_i32_1 = arith.constant 0 : i32
    return %c0_i32, %c0_i32_0 : i32, i32
  }
  func.func @transform_6(%arg0: i32) -> (i32, i32) {
    %c0_i32 = arith.constant 0 : i32
    %c0_i32_0 = arith.constant 0 : i32
    return %arg0, %c0_i32 : i32, i32
  }
}

</mosaic_0001>

<llo_original>
// kernel: radialnet_forward.1
$region0: #{radialnet_forward.1}
  #allocation0 [shape = 'u32[]', space=smem, size = 0x4, offset = 0x4, fixed_abs, tag = 'smem constant byte address 0x4 - core index']
  #allocation1 [shape = 'u32[144,128]{1,0:T(1,128)}', space=vmem, size = 0x12000, scoped, tag = 'internal scratch']
  %s0 = inlined_call_operand.vmem [shape: f32[1,2048], index: 0, kind: input, shape index: {}]
  %s1 = inlined_call_operand.vmem [shape: f32[10,1], index: 1, kind: input, shape index: {}]
  %s2 = inlined_call_operand.vmem [shape: f32[16,10], index: 2, kind: input, shape index: {}]
  %s3 = inlined_call_operand.vmem [shape: f32[16,1], index: 3, kind: input, shape index: {}]
  %s4 = inlined_call_operand.vmem [shape: f32[32,16], index: 4, kind: input, shape index: {}]
  %s5 = inlined_call_operand.vmem [shape: f32[32,1], index: 5, kind: input, shape index: {}]
  %s6 = inlined_call_operand.vmem [shape: f32[2048,32], index: 6, kind: output, shape index: {}]
  %s7 = sld [smem:[#allocation0]]
  $region57: #{radialnet_forward.1} parent=0
    _
  %s9 = ssub.s32 1, %s7
  %s10 = scalar_select 0, %s9, %s7
  loop: start=0, step=1, limit=4
  $region2: #{radialnet_forward.1} parent=0 // loop_pre_header
    _
  $region3: #{radialnet_forward.1} parent=0 // loop_header
    %s12 = sphi 0, %s16
    %p13 = scmp.ge.s32.totalorder %s12, 4
    %s22 = sphi 0, %s24
    %s25 = sphi 0, %s22
    %s26 = sphi 0, %s25
    %s42 = sphi 0, %s26
    %s46 = sphi 0, %s46
    %s48 = sphi 0, %s46
    %s49 = sphi 0, %s48
    %s63 = sphi 0, %s49
    %s67 = sphi 0, %s67
    %s69 = sphi 0, %s67
    %s70 = sphi 0, %s69
    %s84 = sphi 0, %s70
    %s88 = sphi 0, %s88
    %s90 = sphi 0, %s88
    %s91 = sphi 0, %s90
    %s105 = sphi 0, %s91
    %s109 = sphi 0, %s109
    %s111 = sphi 0, %s109
    %s112 = sphi 0, %s111
    %s126 = sphi 0, %s112
    %s130 = sphi 0, %s130
    %s132 = sphi 0, %s130
    %s133 = sphi 0, %s132
    %s147 = sphi 0, %s133
    %s153 = sphi 0, %s155
    %s156 = sphi 0, %s153
    %s157 = sphi 0, %s156
    %s173 = sphi 0, %s157
  $region4: #{radialnet_forward.1} parent=0 // loop_header_branch
    %15 = sbr.rel (%p13) target = $region8
  $region5: #{radialnet_forward.1} parent=0 // loop_body
    %s17 = ssub.s32 %s12, 1
    %s18 = ssub.s32 %s12, 2
    %s19 = sadd.s32 %s12, 1
    %s20 = ssub.s32 %s12, %s19
    %p21 = scmp.eq.s32.totalorder %s20, 0
    %s23 = sadd.s32 %s22, 1
    %s24 = scalar_select %p21, %s22, %s23
    %p27 = pneg %p21
    %p28 = scmp.eq.s32.totalorder %s12, 1
    %p29 = por %p27, %p28
    %p30 = scmp.ne.s32.totalorder %s22, %s25
    %p31 = scmp.eq.s32.totalorder %s12, 0
    %p32 = por %p30, %p31
    %p33 = scmp.ne.s32.totalorder %s22, %s25
    %p34 = scmp.eq.s32.totalorder %s17, 1
    %p35 = por %p33, %p34
    %p36 = scmp.ne.s32.totalorder %s25, %s26
    %p37 = scmp.eq.s32.totalorder %s17, 0
    %p38 = por %p36, %p37
    %p39 = scmp.ne.s32.totalorder %s25, %s26
    %p40 = scmp.eq.s32.totalorder %s18, 1
    %p41 = por %p39, %p40
    %p43 = scmp.ne.s32.totalorder %s26, %s42
    %p44 = scmp.eq.s32.totalorder %s18, 0
    %p45 = por %p43, %p44
    %s47 = sadd.s32 %s46, 1
    %p50 = scmp.eq.s32.totalorder %s12, 1
    %p51 = scmp.ne.s32.totalorder %s46, %s48
    %p52 = scmp.eq.s32.totalorder %s12, 0
    %p53 = por %p51, %p52
    %p54 = scmp.ne.s32.totalorder %s46, %s48
    %p55 = scmp.eq.s32.totalorder %s17, 1
    %p56 = por %p54, %p55
    %p57 = scmp.ne.s32.totalorder %s48, %s49
    %p58 = scmp.eq.s32.totalorder %s17, 0
    %p59 = por %p57, %p58
    %p60 = scmp.ne.s32.totalorder %s48, %s49
    %p61 = scmp.eq.s32.totalorder %s18, 1
    %p62 = por %p60, %p61
    %p64 = scmp.ne.s32.totalorder %s49, %s63
    %p65 = scmp.eq.s32.totalorder %s18, 0
    %p66 = por %p64, %p65
    %s68 = sadd.s32 %s67, 1
    %p71 = scmp.eq.s32.totalorder %s12, 1
    %p72 = scmp.ne.s32.totalorder %s67, %s69
    %p73 = scmp.eq.s32.totalorder %s12, 0
    %p74 = por %p72, %p73
    %p75 = scmp.ne.s32.totalorder %s67, %s69
    %p76 = scmp.eq.s32.totalorder %s17, 1
    %p77 = por %p75, %p76
    %p78 = scmp.ne.s32.totalorder %s69, %s70
    %p79 = scmp.eq.s32.totalorder %s17, 0
    %p80 = por %p78, %p79
    %p81 = scmp.ne.s32.totalorder %s69, %s70
    %p82 = scmp.eq.s32.totalorder %s18, 1
    %p83 = por %p81, %p82
    %p85 = scmp.ne.s32.totalorder %s70, %s84
    %p86 = scmp.eq.s32.totalorder %s18, 0
    %p87 = por %p85, %p86
    %s89 = sadd.s32 %s88, 1
    %p92 = scmp.eq.s32.totalorder %s12, 1
    %p93 = scmp.ne.s32.totalorder %s88, %s90
    %p94 = scmp.eq.s32.totalorder %s12, 0
    %p95 = por %p93, %p94
    %p96 = scmp.ne.s32.totalorder %s88, %s90
    %p97 = scmp.eq.s32.totalorder %s17, 1
    %p98 = por %p96, %p97
    %p99 = scmp.ne.s32.totalorder %s90, %s91
    %p100 = scmp.eq.s32.totalorder %s17, 0
    %p101 = por %p99, %p100
    %p102 = scmp.ne.s32.totalorder %s90, %s91
    %p103 = scmp.eq.s32.totalorder %s18, 1
    %p104 = por %p102, %p103
    %p106 = scmp.ne.s32.totalorder %s91, %s105
    %p107 = scmp.eq.s32.totalorder %s18, 0
    %p108 = por %p106, %p107
    %s110 = sadd.s32 %s109, 1
    %p113 = scmp.eq.s32.totalorder %s12, 1
    %p114 = scmp.ne.s32.totalorder %s109, %s111
    %p115 = scmp.eq.s32.totalorder %s12, 0
    %p116 = por %p114, %p115
    %p117 = scmp.ne.s32.totalorder %s109, %s111
    %p118 = scmp.eq.s32.totalorder %s17, 1
    %p119 = por %p117, %p118
    %p120 = scmp.ne.s32.totalorder %s111, %s112
    %p121 = scmp.eq.s32.totalorder %s17, 0
    %p122 = por %p120, %p121
    %p123 = scmp.ne.s32.totalorder %s111, %s112
    %p124 = scmp.eq.s32.totalorder %s18, 1
    %p125 = por %p123, %p124
    %p127 = scmp.ne.s32.totalorder %s112, %s126
    %p128 = scmp.eq.s32.totalorder %s18, 0
    %p129 = por %p127, %p128
    %s131 = sadd.s32 %s130, 1
    %p134 = scmp.eq.s32.totalorder %s12, 1
    %p135 = scmp.ne.s32.totalorder %s130, %s132
    %p136 = scmp.eq.s32.totalorder %s12, 0
    %p137 = por %p135, %p136
    %p138 = scmp.ne.s32.totalorder %s130, %s132
    %p139 = scmp.eq.s32.totalorder %s17, 1
    %p140 = por %p138, %p139
    %p141 = scmp.ne.s32.totalorder %s132, %s133
    %p142 = scmp.eq.s32.totalorder %s17, 0
    %p143 = por %p141, %p142
    %p144 = scmp.ne.s32.totalorder %s132, %s133
    %p145 = scmp.eq.s32.totalorder %s18, 1
    %p146 = por %p144, %p145
    %p148 = scmp.ne.s32.totalorder %s133, %s147
    %p149 = scmp.eq.s32.totalorder %s18, 0
    %p150 = por %p148, %p149
    %s151 = ssub.s32 %s12, %s19
    %p152 = scmp.eq.s32.totalorder %s151, 0
    %s154 = sadd.s32 %s153, 1
    %s155 = scalar_select %p152, %s153, %s154
    %p158 = pneg %p152
    %p159 = scmp.eq.s32.totalorder %s12, 1
    %p160 = por %p158, %p159
    %p161 = scmp.ne.s32.totalorder %s153, %s156
    %p162 = scmp.eq.s32.totalorder %s12, 0
    %p163 = por %p161, %p162
    %p164 = scmp.ne.s32.totalorder %s153, %s156
    %p165 = scmp.eq.s32.totalorder %s17, 1
    %p166 = por %p164, %p165
    %p167 = scmp.ne.s32.totalorder %s156, %s157
    %p168 = scmp.eq.s32.totalorder %s17, 0
    %p169 = por %p167, %p168
    %p170 = scmp.ne.s32.totalorder %s156, %s157
    %p171 = scmp.eq.s32.totalorder %s18, 1
    %p172 = por %p170, %p171
    %p174 = scmp.ne.s32.totalorder %s157, %s173
    %p175 = scmp.eq.s32.totalorder %s18, 0
    %p176 = por %p174, %p175
    %p177 = scmp.le.s32.totalorder 1, %s12
    %p178 = scmp.lt.s32.totalorder %s12, 3
    %p179 = pnand %p177, %p178
    %p180 = pneg %p179
    // Predicated region
    $region9: #{radialnet_forward.1} parent=5 // pred_check
      _
    $region10: #{radialnet_forward.1} parent=5 // pred_check_branch
      %182 = sbr.rel (%p179) target = $region12
    $region11: #{radialnet_forward.1} parent=5 // pred_region
      %s183 = ssub.s32 %s12, 1
      // Predicated region
      $region13: #{radialnet_forward.1} parent=11 // pred_check
        %p184 = pneg %p59
      $region14: #{radialnet_forward.1} parent=11 // pred_check_branch
        %186 = sbr.rel (%p184) target = $region16
      $region15: #{radialnet_forward.1} parent=11 // pred_region
        _
      $region16: #{radialnet_forward.1} parent=11 // pred_fallthru
        _
      // Predicated region
      $region17: #{radialnet_forward.1} parent=11 // pred_check
        %p187 = pneg %p80
      $region18: #{radialnet_forward.1} parent=11 // pred_check_branch
        %189 = sbr.rel (%p187) target = $region20
      $region19: #{radialnet_forward.1} parent=11 // pred_region
        _
      $region20: #{radialnet_forward.1} parent=11 // pred_fallthru
        _
      // Predicated region
      $region21: #{radialnet_forward.1} parent=11 // pred_check
        %p190 = pneg %p101
      $region22: #{radialnet_forward.1} parent=11 // pred_check_branch
        %192 = sbr.rel (%p190) target = $region24
      $region23: #{radialnet_forward.1} parent=11 // pred_region
        _
      $region24: #{radialnet_forward.1} parent=11 // pred_fallthru
        _
      // Predicated region
      $region25: #{radialnet_forward.1} parent=11 // pred_check
        %p193 = pneg %p122
      $region26: #{radialnet_forward.1} parent=11 // pred_check_branch
        %195 = sbr.rel (%p193) target = $region28
      $region27: #{radialnet_forward.1} parent=11 // pred_region
        _
      $region28: #{radialnet_forward.1} parent=11 // pred_fallthru
        _
      // Predicated region
      $region29: #{radialnet_forward.1} parent=11 // pred_check
        %p196 = pneg %p143
      $region30: #{radialnet_forward.1} parent=11 // pred_check_branch
        %198 = sbr.rel (%p196) target = $region32
      $region31: #{radialnet_forward.1} parent=11 // pred_region
        _
      $region32: #{radialnet_forward.1} parent=11 // pred_fallthru
        _
    $region12: #{radialnet_forward.1} parent=5 // pred_fallthru
      _
    %p199 = scmp.lt.s32.totalorder %s12, 2
    // Predicated region
    $region33: #{radialnet_forward.1} parent=5 // pred_check
      %p200 = pneg %p199
    $region34: #{radialnet_forward.1} parent=5 // pred_check_branch
      %202 = sbr.rel (%p200) target = $region36
    $region35: #{radialnet_forward.1} parent=5 // pred_region
      // Predicated region
      $region37: #{radialnet_forward.1} parent=35 // pred_check
        %p203 = pneg %p32
      $region38: #{radialnet_forward.1} parent=35 // pred_check_branch
        %205 = sbr.rel (%p203) target = $region40
      $region39: #{radialnet_forward.1} parent=35 // pred_region
        %s206 = smul.u32 8, %s12
        %p207 = scmp.lt.s32.totalorder %s206, 15
        %s208 = scalar_select %p207, %s206, 15
        %s209 = scalar_lea.vmem %s0, %s208
        %s210 = smul.u32 8, %s12
      $region40: #{radialnet_forward.1} parent=35 // pred_fallthru
        _
    $region36: #{radialnet_forward.1} parent=5 // pred_fallthru
      _
    %p211 = scmp.le.s32.totalorder 1, %s12
    %p212 = scmp.lt.s32.totalorder %s12, 3
    %p213 = pnand %p211, %p212
    %p214 = pneg %p213
    // Predicated region
    $region41: #{radialnet_forward.1} parent=5 // pred_check
      _
    $region42: #{radialnet_forward.1} parent=5 // pred_check_branch
      %216 = sbr.rel (%p213) target = $region44
    $region43: #{radialnet_forward.1} parent=5 // pred_region
      %s217 = ssub.s32 %s12, 1
      %s218 = smul.u32 8, %s17
      %p219 = scmp.lt.s32.totalorder %s218, 15
      %s220 = scalar_select %p219, %s218, 15
      %s221 = scalar_lea.vmem %s0, %s220
      %p222 = pneg %p38
      %p223 = pneg %p35
      %p224 = pneg %p59
      %p225 = pneg %p56
      %p226 = pneg %p80
      %p227 = pneg %p77
      %p228 = pneg %p101
      %p229 = pneg %p98
      %p230 = pneg %p122
      %p231 = pneg %p119
      %p232 = pneg %p143
      %p233 = pneg %p140
      %p234 = pneg %p169
      %p235 = pneg %p166
      %s236 = smul.u32 128, %s17
      %p237 = scmp.lt.s32.totalorder %s236, 255
      %s238 = scalar_select %p237, %s236, 255
      %s239 = smul.addr %s238, 8
      %s240 = scalar_lea.vmem %s6, %s239
      %s241 = smul.u32 8, %s17
      %p242 = scmp.lt.s32.totalorder %s241, 15
      %s243 = scalar_select %p242, %s241, 15
      %s244 = scalar_lea.vmem %s0, %s243
      %s245 = smul.u32 8, %s17
      %s246 = smul.u32 128, %s17
      %p247 = scmp.lt.s32.totalorder %s246, 255
      %s248 = scalar_select %p247, %s246, 255
      %s249 = smul.addr %s248, 8
      %s250 = scalar_lea.vmem %s6, %s249
      %s251 = smul.u32 128, %s17
      %v252 = vld [vmem:[%s244] sm:$0xff]
      %v253 = vmul.f32 %v252, 0.25
      %v254 = vrcp.pop %v253
      %v255 = vmul.f32 %v253, %v254
      %v256 = vsub.f32 2.0, %v255
      %v257 = vmul.f32 %v254, %v256
      %v258 = vmul.f32 %v253, %v253
      %v259 = vmul.f32 %v258, %v258
      %v260 = vmul.f32 %v259, %v253
      %v261 = vmul.f32 %v253, -21.0
      %v262 = vadd.f32 %v261, 48.0
      %v263 = vmul.f32 %v253, %v262
      %v264 = vadd.f32 %v263, -28.0
      %v265 = vmul.f32 %v260, %v264
      %v266 = vadd.f32 %v257, %v265
      %vm267 = vcmp.lt.f32.partialorder %v253, 1.0
      %v268 = vsel %vm267, %v266, 0.0
      %v269 = vld [vmem:[%s1] sm:$0xff]
      %v270 = vld [vmem:[%s1 + $0x8] sm:$0x3]
      %272 = vset.pattern.permute.xlu0 0
      %273 = vperm.xlu0 %272, %v269
      %v274 = vpop.permute.xlu0 %273
      %277 = vset.pattern.permute.xlu0 0
      %278 = vperm.xlu0 %277, %v270
      %v279 = vpop.permute.xlu0 %278
      %v282 = vlaneseq
      %v283 = vshrl.u32 %v282, 7
      %v284 = vsub.s32 0, %v283
      %v285 = vrot.slane %v253, %v284
      %v286 = vlaneseq
      %v287 = vshrl.u32 %v286, 7
      %v288 = vsub.s32 1, %v287
      %v289 = vrot.slane %v253, %v288
      %v290 = vlaneseq
      %v291 = vshrl.u32 %v290, 7
      %v292 = vsub.s32 2, %v291
      %v293 = vrot.slane %v253, %v292
      %v294 = vlaneseq
      %v295 = vshrl.u32 %v294, 7
      %v296 = vsub.s32 3, %v295
      %v297 = vrot.slane %v253, %v296
      %v298 = vlaneseq
      %v299 = vshrl.u32 %v298, 7
      %v300 = vsub.s32 4, %v299
      %v301 = vrot.slane %v253, %v300
      %v302 = vlaneseq
      %v303 = vshrl.u32 %v302, 7
      %v304 = vsub.s32 5, %v303
      %v305 = vrot.slane %v253, %v304
      %v306 = vlaneseq
      %v307 = vshrl.u32 %v306, 7
      %v308 = vsub.s32 6, %v307
      %v309 = vrot.slane %v253, %v308
      %v310 = vlaneseq
      %v311 = vshrl.u32 %v310, 7
      %v312 = vsub.s32 7, %v311
      %v313 = vrot.slane %v253, %v312
      %v322 = vmul.f32 %v274, %v285
      %v323 = vmul.f32 %v274, %v289
      %v324 = vmul.f32 %v274, %v293
      %v325 = vmul.f32 %v274, %v297
      %v326 = vmul.f32 %v274, %v301
      %v327 = vmul.f32 %v274, %v305
      %v328 = vmul.f32 %v274, %v309
      %v329 = vmul.f32 %v274, %v313
      %v330 = vmul.f32 %v279, %v285
      %v331 = vmul.f32 %v279, %v289
      %v332 = vmul.f32 %v279, %v293
      %v333 = vmul.f32 %v279, %v297
      %v334 = vmul.f32 %v279, %v301
      %v335 = vmul.f32 %v279, %v305
      %v336 = vmul.f32 %v279, %v309
      %v337 = vmul.f32 %v279, %v313
      %v338 = vand.u32 2147483647, %v322
      %vm339 = vcmp.le.f32.partialorder %v338, 0.7853982
      %vm340 = vcmp.lt.s32.totalorder %v322, 0
      %v341 = vand.u32 %v322, 2139095040
      %v342 = vshrl.u32 %v341, 23
      %v343 = vsub.s32 %v342, 127
      %v344 = vand.u32 2147483647, %v322
      %v345 = vand.u32 %v344, 8388607
      %v346 = vor.u32 %v345, 8388608
      %v347 = vsub.s32 0, %v346
      %v348 = vadd.s32 %v343, 1
      %vm349 = vcmp.gt.s32.totalorder %v348, 0
      %v350 = vsel %vm349, %v348, 0
      %v351 = vshrl.u32 %v350, 5
      %v352 = vand.u32 %v350, 31
      %v353 = vsub.s32 32, %v352
      %v354 = vshrl.u32 683565275, %v353
      %v355 = vshll.u32 683565275, %v352
      %v356 = vshrl.u32 2475754826, %v353
      %v357 = vor.u32 %v355, %v356
      %v358 = vshll.u32 2475754826, %v352
      %v359 = vshrl.u32 2131351028, %v353
      %v360 = vor.u32 %v358, %v359
      %v361 = vshll.u32 2131351028, %v352
      %v362 = vshrl.u32 2102212464, %v353
      %v363 = vor.u32 %v361, %v362
      %v364 = vshll.u32 2102212464, %v352
      %v365 = vshrl.u32 920167782, %v353
      %v366 = vor.u32 %v364, %v365
      %v367 = vshll.u32 920167782, %v352
      %v368 = vshrl.u32 1326507024, %v353
      %v369 = vor.u32 %v367, %v368
      %vm370 = vcmp.lt.s32.totalorder %v351, 1
      %vm371 = vcmp.lt.s32.totalorder %v351, 2
      %vm372 = vcmp.lt.s32.totalorder %v351, 3
      %vm373 = vcmp.lt.s32.totalorder %v351, 4
      %v374 = vsel %vm370, %v354, %v357
      %v375 = vsel %vm373, %v363, 2102212464
      %v376 = vsel %vm372, %v360, %v375
      %v377 = vsel %vm371, %v374, %v376
      %v378 = vsel %vm370, %v357, %v360
      %v379 = vsel %vm373, %v366, 920167782
      %v380 = vsel %vm372, %v363, %v379
      %v381 = vsel %vm371, %v378, %v380
      %v382 = vsel %vm370, %v360, %v363
      %v383 = vsel %vm373, %v369, 1326507024
      %v384 = vsel %vm372, %v366, %v383
      %v385 = vsel %vm371, %v382, %v384
      %v386 = vshll.u32 %v346, 8
      %v387 = vmul.u32.u64.compose %v386, %v385
      %v388 = vextract.low.u32 %v387
      %v389 = vextract.high.u32 %v387
      %v390 = vmul.u32.u64.compose %v386, %v381
      %v391 = vextract.low.u32 %v390
      %v392 = vextract.high.u32 %v390
      %v393 = vmul.u32 %v386, %v377
      %v394 = vadd.s32 %v389, %v391
      %vm395 = vc.u32 %v389, %v391
      %v396 = vadd.s32 %v392, 1
      %v397 = vsel %vm395, %v396, %v392
      %v398 = vadd.s32 %v393, %v397
      %v399 = vadd.s32 %v398, 536870912
      %v400 = vshrl.u32 %v399, 30
      %v401 = vshll.u32 %v400, 30
      %v402 = vsub.s32 %v398, %v401
      %vm403 = vcmp.lt.s32.totalorder %v402, 0
      %v404 = vsub.s32 0, %v402
      %v405 = vsel %vm403, %v404, %v402
      %v406 = vclz %v405
      %v407 = vsub.s32 %v406, 2
      %vm408 = vcmp.gt.s32.totalorder 0, %v407
      %v409 = vsel %vm408, 0, %v407
      %v410 = vsub.s32 32, %v409
      %v411 = vshll.u32 %v402, %v409
      %v412 = vshrl.u32 %v394, %v410
      %v413 = vor.u32 %v411, %v412
      %v414 = vsub.s32 4294967266, %v409
      %v415 = vadd.s32 %v414, 127
      %v416 = vshll.u32 %v415, 23
      %v417 = vor.u32 4788187, %v416
      %v418 = vand.u32 2147483647, %v417
      %v420 = vcvt.s32.f32 %v413
      %v421 = vmul.f32 %v420, %v418
      %v422 = vxor.u32 %v421, 2147483648
      %v423 = vsel %vm340, %v422, %v421
      %v424 = vsub.s32 4, %v400
      %v425 = vsel %vm340, %v424, %v400
      %v426 = vsel %vm339, %v322, %v423
      %v427 = vsel %vm339, 0, %v425
      %v428 = vcosq.f32.pop %v426
      %v429 = vsinq.f32.pop %v426
      %vm430 = vweird.f32 %v322
      %v431 = vadd.s32 %v427, 3
      %v432 = vand.u32 %v431, 3
      %vm433 = vcmp.lt.s32.totalorder %v432, 2
      %vm434 = vcmp.eq.s32.totalorder %v432, 0
      %v435 = vxor.u32 %v429, 2147483648
      %v436 = vsel %vm434, %v428, %v435
      %vm437 = vcmp.eq.s32.totalorder %v432, 2
      %v438 = vxor.u32 %v428, 2147483648
      %v439 = vsel %vm437, %v438, %v429
      %v440 = vsel %vm433, %v436, %v439
      %v441 = vsel %vm430, nan, %v440
      %v442 = vand.u32 2147483647, %v323
      %vm443 = vcmp.le.f32.partialorder %v442, 0.7853982
      %vm444 = vcmp.lt.s32.totalorder %v323, 0
      %v445 = vand.u32 %v323, 2139095040
      %v446 = vshrl.u32 %v445, 23
      %v447 = vsub.s32 %v446, 127
      %v448 = vand.u32 2147483647, %v323
      %v449 = vand.u32 %v448, 8388607
      %v450 = vor.u32 %v449, 8388608
      %v451 = vsub.s32 0, %v450
      %v452 = vadd.s32 %v447, 1
      %vm453 = vcmp.gt.s32.totalorder %v452, 0
      %v454 = vsel %vm453, %v452, 0
      %v455 = vshrl.u32 %v454, 5
      %v456 = vand.u32 %v454, 31
      %v457 = vsub.s32 32, %v456
      %v458 = vshrl.u32 683565275, %v457
      %v459 = vshll.u32 683565275, %v456
      %v460 = vshrl.u32 2475754826, %v457
      %v461 = vor.u32 %v459, %v460
      %v462 = vshll.u32 2475754826, %v456
      %v463 = vshrl.u32 2131351028, %v457
      %v464 = vor.u32 %v462, %v463
      %v465 = vshll.u32 2131351028, %v456
      %v466 = vshrl.u32 2102212464, %v457
      %v467 = vor.u32 %v465, %v466
      %v468 = vshll.u32 2102212464, %v456
      %v469 = vshrl.u32 920167782, %v457
      %v470 = vor.u32 %v468, %v469
      %v471 = vshll.u32 920167782, %v456
      %v472 = vshrl.u32 1326507024, %v457
      %v473 = vor.u32 %v471, %v472
      %vm474 = vcmp.lt.s32.totalorder %v455, 1
      %vm475 = vcmp.lt.s32.totalorder %v455, 2
      %vm476 = vcmp.lt.s32.totalorder %v455, 3
      %vm477 = vcmp.lt.s32.totalorder %v455, 4
      %v478 = vsel %vm474, %v458, %v461
      %v479 = vsel %vm477, %v467, 2102212464
      %v480 = vsel %vm476, %v464, %v479
      %v481 = vsel %vm475, %v478, %v480
      %v482 = vsel %vm474, %v461, %v464
      %v483 = vsel %vm477, %v470, 920167782
      %v484 = vsel %vm476, %v467, %v483
      %v485 = vsel %vm475, %v482, %v484
      %v486 = vsel %vm474, %v464, %v467
      %v487 = vsel %vm477, %v473, 1326507024
      %v488 = vsel %vm476, %v470, %v487
      %v489 = vsel %vm475, %v486, %v488
      %v490 = vshll.u32 %v450, 8
      %v491 = vmul.u32.u64.compose %v490, %v489
      %v492 = vextract.low.u32 %v491
      %v493 = vextract.high.u32 %v491
      %v494 = vmul.u32.u64.compose %v490, %v485
      %v495 = vextract.low.u32 %v494
      %v496 = vextract.high.u32 %v494
      %v497 = vmul.u32 %v490, %v481
      %v498 = vadd.s32 %v493, %v495
      %vm499 = vc.u32 %v493, %v495
      %v500 = vadd.s32 %v496, 1
      %v501 = vsel %vm499, %v500, %v496
      %v502 = vadd.s32 %v497, %v501
      %v503 = vadd.s32 %v502, 536870912
      %v504 = vshrl.u32 %v503, 30
      %v505 = vshll.u32 %v504, 30
      %v506 = vsub.s32 %v502, %v505
      %vm507 = vcmp.lt.s32.totalorder %v506, 0
      %v508 = vsub.s32 0, %v506
      %v509 = vsel %vm507, %v508, %v506
      %v510 = vclz %v509
      %v511 = vsub.s32 %v510, 2
      %vm512 = vcmp.gt.s32.totalorder 0, %v511
      %v513 = vsel %vm512, 0, %v511
      %v514 = vsub.s32 32, %v513
      %v515 = vshll.u32 %v506, %v513
      %v516 = vshrl.u32 %v498, %v514
      %v517 = vor.u32 %v515, %v516
      %v518 = vsub.s32 4294967266, %v513
      %v519 = vadd.s32 %v518, 127
      %v520 = vshll.u32 %v519, 23
      %v521 = vor.u32 4788187, %v520
      %v522 = vand.u32 2147483647, %v521
      %v524 = vcvt.s32.f32 %v517
      %v525 = vmul.f32 %v524, %v522
      %v526 = vxor.u32 %v525, 2147483648
      %v527 = vsel %vm444, %v526, %v525
      %v528 = vsub.s32 4, %v504
      %v529 = vsel %vm444, %v528, %v504
      %v530 = vsel %vm443, %v323, %v527
      %v531 = vsel %vm443, 0, %v529
      %v532 = vcosq.f32.pop %v530
      %v533 = vsinq.f32.pop %v530
      %vm534 = vweird.f32 %v323
      %v535 = vadd.s32 %v531, 3
      %v536 = vand.u32 %v535, 3
      %vm537 = vcmp.lt.s32.totalorder %v536, 2
      %vm538 = vcmp.eq.s32.totalorder %v536, 0
      %v539 = vxor.u32 %v533, 2147483648
      %v540 = vsel %vm538, %v532, %v539
      %vm541 = vcmp.eq.s32.totalorder %v536, 2
      %v542 = vxor.u32 %v532, 2147483648
      %v543 = vsel %vm541, %v542, %v533
      %v544 = vsel %vm537, %v540, %v543
      %v545 = vsel %vm534, nan, %v544
      %v546 = vand.u32 2147483647, %v324
      %vm547 = vcmp.le.f32.partialorder %v546, 0.7853982
      %vm548 = vcmp.lt.s32.totalorder %v324, 0
      %v549 = vand.u32 %v324, 2139095040
      %v550 = vshrl.u32 %v549, 23
      %v551 = vsub.s32 %v550, 127
      %v552 = vand.u32 2147483647, %v324
      %v553 = vand.u32 %v552, 8388607
      %v554 = vor.u32 %v553, 8388608
      %v555 = vsub.s32 0, %v554
      %v556 = vadd.s32 %v551, 1
      %vm557 = vcmp.gt.s32.totalorder %v556, 0
      %v558 = vsel %vm557, %v556, 0
      %v559 = vshrl.u32 %v558, 5
      %v560 = vand.u32 %v558, 31
      %v561 = vsub.s32 32, %v560
      %v562 = vshrl.u32 683565275, %v561
      %v563 = vshll.u32 683565275, %v560
      %v564 = vshrl.u32 2475754826, %v561
      %v565 = vor.u32 %v563, %v564
      %v566 = vshll.u32 2475754826, %v560
      %v567 = vshrl.u32 2131351028, %v561
      %v568 = vor.u32 %v566, %v567
      %v569 = vshll.u32 2131351028, %v560
      %v570 = vshrl.u32 2102212464, %v561
      %v571 = vor.u32 %v569, %v570
      %v572 = vshll.u32 2102212464, %v560
      %v573 = vshrl.u32 920167782, %v561
      %v574 = vor.u32 %v572, %v573
      %v575 = vshll.u32 920167782, %v560
      %v576 = vshrl.u32 1326507024, %v561
      %v577 = vor.u32 %v575, %v576
      %vm578 = vcmp.lt.s32.totalorder %v559, 1
      %vm579 = vcmp.lt.s32.totalorder %v559, 2
      %vm580 = vcmp.lt.s32.totalorder %v559, 3
      %vm581 = vcmp.lt.s32.totalorder %v559, 4
      %v582 = vsel %vm578, %v562, %v565
      %v583 = vsel %vm581, %v571, 2102212464
      %v584 = vsel %vm580, %v568, %v583
      %v585 = vsel %vm579, %v582, %v584
      %v586 = vsel %vm578, %v565, %v568
      %v587 = vsel %vm581, %v574, 920167782
      %v588 = vsel %vm580, %v571, %v587
      %v589 = vsel %vm579, %v586, %v588
      %v590 = vsel %vm578, %v568, %v571
      %v591 = vsel %vm581, %v577, 1326507024
      %v592 = vsel %vm580, %v574, %v591
      %v593 = vsel %vm579, %v590, %v592
      %v594 = vshll.u32 %v554, 8
      %v595 = vmul.u32.u64.compose %v594, %v593
      %v596 = vextract.low.u32 %v595
      %v597 = vextract.high.u32 %v595
      %v598 = vmul.u32.u64.compose %v594, %v589
      %v599 = vextract.low.u32 %v598
      %v600 = vextract.high.u32 %v598
      %v601 = vmul.u32 %v594, %v585
      %v602 = vadd.s32 %v597, %v599
      %vm603 = vc.u32 %v597, %v599
      %v604 = vadd.s32 %v600, 1
      %v605 = vsel %vm603, %v604, %v600
      %v606 = vadd.s32 %v601, %v605
      %v607 = vadd.s32 %v606, 536870912
      %v608 = vshrl.u32 %v607, 30
      %v609 = vshll.u32 %v608, 30
      %v610 = vsub.s32 %v606, %v609
      %vm611 = vcmp.lt.s32.totalorder %v610, 0
      %v612 = vsub.s32 0, %v610
      %v613 = vsel %vm611, %v612, %v610
      %v614 = vclz %v613
      %v615 = vsub.s32 %v614, 2
      %vm616 = vcmp.gt.s32.totalorder 0, %v615
      %v617 = vsel %vm616, 0, %v615
      %v618 = vsub.s32 32, %v617
      %v619 = vshll.u32 %v610, %v617
      %v620 = vshrl.u32 %v602, %v618
      %v621 = vor.u32 %v619, %v620
      %v622 = vsub.s32 4294967266, %v617
      %v623 = vadd.s32 %v622, 127
      %v624 = vshll.u32 %v623, 23
      %v625 = vor.u32 4788187, %v624
      %v626 = vand.u32 2147483647, %v625
      %v628 = vcvt.s32.f32 %v621
      %v629 = vmul.f32 %v628, %v626
      %v630 = vxor.u32 %v629, 2147483648
      %v631 = vsel %vm548, %v630, %v629
      %v632 = vsub.s32 4, %v608
      %v633 = vsel %vm548, %v632, %v608
      %v634 = vsel %vm547, %v324, %v631
      %v635 = vsel %vm547, 0, %v633
      %v636 = vcosq.f32.pop %v634
      %v637 = vsinq.f32.pop %v634
      %vm638 = vweird.f32 %v324
      %v639 = vadd.s32 %v635, 3
      %v640 = vand.u32 %v639, 3
      %vm641 = vcmp.lt.s32.totalorder %v640, 2
      %vm642 = vcmp.eq.s32.totalorder %v640, 0
      %v643 = vxor.u32 %v637, 2147483648
      %v644 = vsel %vm642, %v636, %v643
      %vm645 = vcmp.eq.s32.totalorder %v640, 2
      %v646 = vxor.u32 %v636, 2147483648
      %v647 = vsel %vm645, %v646, %v637
      %v648 = vsel %vm641, %v644, %v647
      %v649 = vsel %vm638, nan, %v648
      %v650 = vand.u32 2147483647, %v325
      %vm651 = vcmp.le.f32.partialorder %v650, 0.7853982
      %vm652 = vcmp.lt.s32.totalorder %v325, 0
      %v653 = vand.u32 %v325, 2139095040
      %v654 = vshrl.u32 %v653, 23
      %v655 = vsub.s32 %v654, 127
      %v656 = vand.u32 2147483647, %v325
      %v657 = vand.u32 %v656, 8388607
      %v658 = vor.u32 %v657, 8388608
      %v659 = vsub.s32 0, %v658
      %v660 = vadd.s32 %v655, 1
      %vm661 = vcmp.gt.s32.totalorder %v660, 0
      %v662 = vsel %vm661, %v660, 0
      %v663 = vshrl.u32 %v662, 5
      %v664 = vand.u32 %v662, 31
      %v665 = vsub.s32 32, %v664
      %v666 = vshrl.u32 683565275, %v665
      %v667 = vshll.u32 683565275, %v664
      %v668 = vshrl.u32 2475754826, %v665
      %v669 = vor.u32 %v667, %v668
      %v670 = vshll.u32 2475754826, %v664
      %v671 = vshrl.u32 2131351028, %v665
      %v672 = vor.u32 %v670, %v671
      %v673 = vshll.u32 2131351028, %v664
      %v674 = vshrl.u32 2102212464, %v665
      %v675 = vor.u32 %v673, %v674
      %v676 = vshll.u32 2102212464, %v664
      %v677 = vshrl.u32 920167782, %v665
      %v678 = vor.u32 %v676, %v677
      %v679 = vshll.u32 920167782, %v664
      %v680 = vshrl.u32 1326507024, %v665
      %v681 = vor.u32 %v679, %v680
      %vm682 = vcmp.lt.s32.totalorder %v663, 1
      %vm683 = vcmp.lt.s32.totalorder %v663, 2
      %vm684 = vcmp.lt.s32.totalorder %v663, 3
      %vm685 = vcmp.lt.s32.totalorder %v663, 4
      %v686 = vsel %vm682, %v666, %v669
      %v687 = vsel %vm685, %v675, 2102212464
      %v688 = vsel %vm684, %v672, %v687
      %v689 = vsel %vm683, %v686, %v688
      %v690 = vsel %vm682, %v669, %v672
      %v691 = vsel %vm685, %v678, 920167782
      %v692 = vsel %vm684, %v675, %v691
      %v693 = vsel %vm683, %v690, %v692
      %v694 = vsel %vm682, %v672, %v675
      %v695 = vsel %vm685, %v681, 1326507024
      %v696 = vsel %vm684, %v678, %v695
      %v697 = vsel %vm683, %v694, %v696
      %v698 = vshll.u32 %v658, 8
      %v699 = vmul.u32.u64.compose %v698, %v697
      %v700 = vextract.low.u32 %v699
      %v701 = vextract.high.u32 %v699
      %v702 = vmul.u32.u64.compose %v698, %v693
      %v703 = vextract.low.u32 %v702
      %v704 = vextract.high.u32 %v702
      %v705 = vmul.u32 %v698, %v689
      %v706 = vadd.s32 %v701, %v703
      %vm707 = vc.u32 %v701, %v703
      %v708 = vadd.s32 %v704, 1
      %v709 = vsel %vm707, %v708, %v704
      %v710 = vadd.s32 %v705, %v709
      %v711 = vadd.s32 %v710, 536870912
      %v712 = vshrl.u32 %v711, 30
      %v713 = vshll.u32 %v712, 30
      %v714 = vsub.s32 %v710, %v713
      %vm715 = vcmp.lt.s32.totalorder %v714, 0
      %v716 = vsub.s32 0, %v714
      %v717 = vsel %vm715, %v716, %v714
      %v718 = vclz %v717
      %v719 = vsub.s32 %v718, 2
      %vm720 = vcmp.gt.s32.totalorder 0, %v719
      %v721 = vsel %vm720, 0, %v719
      %v722 = vsub.s32 32, %v721
      %v723 = vshll.u32 %v714, %v721
      %v724 = vshrl.u32 %v706, %v722
      %v725 = vor.u32 %v723, %v724
      %v726 = vsub.s32 4294967266, %v721
      %v727 = vadd.s32 %v726, 127
      %v728 = vshll.u32 %v727, 23
      %v729 = vor.u32 4788187, %v728
      %v730 = vand.u32 2147483647, %v729
      %v732 = vcvt.s32.f32 %v725
      %v733 = vmul.f32 %v732, %v730
      %v734 = vxor.u32 %v733, 2147483648
      %v735 = vsel %vm652, %v734, %v733
      %v736 = vsub.s32 4, %v712
      %v737 = vsel %vm652, %v736, %v712
      %v738 = vsel %vm651, %v325, %v735
      %v739 = vsel %vm651, 0, %v737
      %v740 = vcosq.f32.pop %v738
      %v741 = vsinq.f32.pop %v738
      %vm742 = vweird.f32 %v325
      %v743 = vadd.s32 %v739, 3
      %v744 = vand.u32 %v743, 3
      %vm745 = vcmp.lt.s32.totalorder %v744, 2
      %vm746 = vcmp.eq.s32.totalorder %v744, 0
      %v747 = vxor.u32 %v741, 2147483648
      %v748 = vsel %vm746, %v740, %v747
      %vm749 = vcmp.eq.s32.totalorder %v744, 2
      %v750 = vxor.u32 %v740, 2147483648
      %v751 = vsel %vm749, %v750, %v741
      %v752 = vsel %vm745, %v748, %v751
      %v753 = vsel %vm742, nan, %v752
      %v754 = vand.u32 2147483647, %v326
      %vm755 = vcmp.le.f32.partialorder %v754, 0.7853982
      %vm756 = vcmp.lt.s32.totalorder %v326, 0
      %v757 = vand.u32 %v326, 2139095040
      %v758 = vshrl.u32 %v757, 23
      %v759 = vsub.s32 %v758, 127
      %v760 = vand.u32 2147483647, %v326
      %v761 = vand.u32 %v760, 8388607
      %v762 = vor.u32 %v761, 8388608
      %v763 = vsub.s32 0, %v762
      %v764 = vadd.s32 %v759, 1
      %vm765 = vcmp.gt.s32.totalorder %v764, 0
      %v766 = vsel %vm765, %v764, 0
      %v767 = vshrl.u32 %v766, 5
      %v768 = vand.u32 %v766, 31
      %v769 = vsub.s32 32, %v768
      %v770 = vshrl.u32 683565275, %v769
      %v771 = vshll.u32 683565275, %v768
      %v772 = vshrl.u32 2475754826, %v769
      %v773 = vor.u32 %v771, %v772
      %v774 = vshll.u32 2475754826, %v768
      %v775 = vshrl.u32 2131351028, %v769
      %v776 = vor.u32 %v774, %v775
      %v777 = vshll.u32 2131351028, %v768
      %v778 = vshrl.u32 2102212464, %v769
      %v779 = vor.u32 %v777, %v778
      %v780 = vshll.u32 2102212464, %v768
      %v781 = vshrl.u32 920167782, %v769
      %v782 = vor.u32 %v780, %v781
      %v783 = vshll.u32 920167782, %v768
      %v784 = vshrl.u32 1326507024, %v769
      %v785 = vor.u32 %v783, %v784
      %vm786 = vcmp.lt.s32.totalorder %v767, 1
      %vm787 = vcmp.lt.s32.totalorder %v767, 2
      %vm788 = vcmp.lt.s32.totalorder %v767, 3
      %vm789 = vcmp.lt.s32.totalorder %v767, 4
      %v790 = vsel %vm786, %v770, %v773
      %v791 = vsel %vm789, %v779, 2102212464
      %v792 = vsel %vm788, %v776, %v791
      %v793 = vsel %vm787, %v790, %v792
      %v794 = vsel %vm786, %v773, %v776
      %v795 = vsel %vm789, %v782, 920167782
      %v796 = vsel %vm788, %v779, %v795
      %v797 = vsel %vm787, %v794, %v796
      %v798 = vsel %vm786, %v776, %v779
      %v799 = vsel %vm789, %v785, 1326507024
      %v800 = vsel %vm788, %v782, %v799
      %v801 = vsel %vm787, %v798, %v800
      %v802 = vshll.u32 %v762, 8
      %v803 = vmul.u32.u64.compose %v802, %v801
      %v804 = vextract.low.u32 %v803
      %v805 = vextract.high.u32 %v803
      %v806 = vmul.u32.u64.compose %v802, %v797
      %v807 = vextract.low.u32 %v806
      %v808 = vextract.high.u32 %v806
      %v809 = vmul.u32 %v802, %v793
      %v810 = vadd.s32 %v805, %v807
      %vm811 = vc.u32 %v805, %v807
      %v812 = vadd.s32 %v808, 1
      %v813 = vsel %vm811, %v812, %v808
      %v814 = vadd.s32 %v809, %v813
      %v815 = vadd.s32 %v814, 536870912
      %v816 = vshrl.u32 %v815, 30
      %v817 = vshll.u32 %v816, 30
      %v818 = vsub.s32 %v814, %v817
      %vm819 = vcmp.lt.s32.totalorder %v818, 0
      %v820 = vsub.s32 0, %v818
      %v821 = vsel %vm819, %v820, %v818
      %v822 = vclz %v821
      %v823 = vsub.s32 %v822, 2
      %vm824 = vcmp.gt.s32.totalorder 0, %v823
      %v825 = vsel %vm824, 0, %v823
      %v826 = vsub.s32 32, %v825
      %v827 = vshll.u32 %v818, %v825
      %v828 = vshrl.u32 %v810, %v826
      %v829 = vor.u32 %v827, %v828
      %v830 = vsub.s32 4294967266, %v825
      %v831 = vadd.s32 %v830, 127
      %v832 = vshll.u32 %v831, 23
      %v833 = vor.u32 4788187, %v832
      %v834 = vand.u32 2147483647, %v833
      %v836 = vcvt.s32.f32 %v829
      %v837 = vmul.f32 %v836, %v834
      %v838 = vxor.u32 %v837, 2147483648
      %v839 = vsel %vm756, %v838, %v837
      %v840 = vsub.s32 4, %v816
      %v841 = vsel %vm756, %v840, %v816
      %v842 = vsel %vm755, %v326, %v839
      %v843 = vsel %vm755, 0, %v841
      %v844 = vcosq.f32.pop %v842
      %v845 = vsinq.f32.pop %v842
      %vm846 = vweird.f32 %v326
      %v847 = vadd.s32 %v843, 3
      %v848 = vand.u32 %v847, 3
      %vm849 = vcmp.lt.s32.totalorder %v848, 2
      %vm850 = vcmp.eq.s32.totalorder %v848, 0
      %v851 = vxor.u32 %v845, 2147483648
      %v852 = vsel %vm850, %v844, %v851
      %vm853 = vcmp.eq.s32.totalorder %v848, 2
      %v854 = vxor.u32 %v844, 2147483648
      %v855 = vsel %vm853, %v854, %v845
      %v856 = vsel %vm849, %v852, %v855
      %v857 = vsel %vm846, nan, %v856
      %v858 = vand.u32 2147483647, %v327
      %vm859 = vcmp.le.f32.partialorder %v858, 0.7853982
      %vm860 = vcmp.lt.s32.totalorder %v327, 0
      %v861 = vand.u32 %v327, 2139095040
      %v862 = vshrl.u32 %v861, 23
      %v863 = vsub.s32 %v862, 127
      %v864 = vand.u32 2147483647, %v327
      %v865 = vand.u32 %v864, 8388607
      %v866 = vor.u32 %v865, 8388608
      %v867 = vsub.s32 0, %v866
      %v868 = vadd.s32 %v863, 1
      %vm869 = vcmp.gt.s32.totalorder %v868, 0
      %v870 = vsel %vm869, %v868, 0
      %v871 = vshrl.u32 %v870, 5
      %v872 = vand.u32 %v870, 31
      %v873 = vsub.s32 32, %v872
      %v874 = vshrl.u32 683565275, %v873
      %v875 = vshll.u32 683565275, %v872
      %v876 = vshrl.u32 2475754826, %v873
      %v877 = vor.u32 %v875, %v876
      %v878 = vshll.u32 2475754826, %v872
      %v879 = vshrl.u32 2131351028, %v873
      %v880 = vor.u32 %v878, %v879
      %v881 = vshll.u32 2131351028, %v872
      %v882 = vshrl.u32 2102212464, %v873
      %v883 = vor.u32 %v881, %v882
      %v884 = vshll.u32 2102212464, %v872
      %v885 = vshrl.u32 920167782, %v873
      %v886 = vor.u32 %v884, %v885
      %v887 = vshll.u32 920167782, %v872
      %v888 = vshrl.u32 1326507024, %v873
      %v889 = vor.u32 %v887, %v888
      %vm890 = vcmp.lt.s32.totalorder %v871, 1
      %vm891 = vcmp.lt.s32.totalorder %v871, 2
      %vm892 = vcmp.lt.s32.totalorder %v871, 3
      %vm893 = vcmp.lt.s32.totalorder %v871, 4
      %v894 = vsel %vm890, %v874, %v877
      %v895 = vsel %vm893, %v883, 2102212464
      %v896 = vsel %vm892, %v880, %v895
      %v897 = vsel %vm891, %v894, %v896
      %v898 = vsel %vm890, %v877, %v880
      %v899 = vsel %vm893, %v886, 920167782
      %v900 = vsel %vm892, %v883, %v899
      %v901 = vsel %vm891, %v898, %v900
      %v902 = vsel %vm890, %v880, %v883
      %v903 = vsel %vm893, %v889, 1326507024
      %v904 = vsel %vm892, %v886, %v903
      %v905 = vsel %vm891, %v902, %v904
      %v906 = vshll.u32 %v866, 8
      %v907 = vmul.u32.u64.compose %v906, %v905
      %v908 = vextract.low.u32 %v907
      %v909 = vextract.high.u32 %v907
      %v910 = vmul.u32.u64.compose %v906, %v901
      %v911 = vextract.low.u32 %v910
      %v912 = vextract.high.u32 %v910
      %v913 = vmul.u32 %v906, %v897
      %v914 = vadd.s32 %v909, %v911
      %vm915 = vc.u32 %v909, %v911
      %v916 = vadd.s32 %v912, 1
      %v917 = vsel %vm915, %v916, %v912
      %v918 = vadd.s32 %v913, %v917
      %v919 = vadd.s32 %v918, 536870912
      %v920 = vshrl.u32 %v919, 30
      %v921 = vshll.u32 %v920, 30
      %v922 = vsub.s32 %v918, %v921
      %vm923 = vcmp.lt.s32.totalorder %v922, 0
      %v924 = vsub.s32 0, %v922
      %v925 = vsel %vm923, %v924, %v922
      %v926 = vclz %v925
      %v927 = vsub.s32 %v926, 2
      %vm928 = vcmp.gt.s32.totalorder 0, %v927
      %v929 = vsel %vm928, 0, %v927
      %v930 = vsub.s32 32, %v929
      %v931 = vshll.u32 %v922, %v929
      %v932 = vshrl.u32 %v914, %v930
      %v933 = vor.u32 %v931, %v932
      %v934 = vsub.s32 4294967266, %v929
      %v935 = vadd.s32 %v934, 127
      %v936 = vshll.u32 %v935, 23
      %v937 = vor.u32 4788187, %v936
      %v938 = vand.u32 2147483647, %v937
      %v940 = vcvt.s32.f32 %v933
      %v941 = vmul.f32 %v940, %v938
      %v942 = vxor.u32 %v941, 2147483648
      %v943 = vsel %vm860, %v942, %v941
      %v944 = vsub.s32 4, %v920
      %v945 = vsel %vm860, %v944, %v920
      %v946 = vsel %vm859, %v327, %v943
      %v947 = vsel %vm859, 0, %v945
      %v948 = vcosq.f32.pop %v946
      %v949 = vsinq.f32.pop %v946
      %vm950 = vweird.f32 %v327
      %v951 = vadd.s32 %v947, 3
      %v952 = vand.u32 %v951, 3
      %vm953 = vcmp.lt.s32.totalorder %v952, 2
      %vm954 = vcmp.eq.s32.totalorder %v952, 0
      %v955 = vxor.u32 %v949, 2147483648
      %v956 = vsel %vm954, %v948, %v955
      %vm957 = vcmp.eq.s32.totalorder %v952, 2
      %v958 = vxor.u32 %v948, 2147483648
      %v959 = vsel %vm957, %v958, %v949
      %v960 = vsel %vm953, %v956, %v959
      %v961 = vsel %vm950, nan, %v960
      %v962 = vand.u32 2147483647, %v328
      %vm963 = vcmp.le.f32.partialorder %v962, 0.7853982
      %vm964 = vcmp.lt.s32.totalorder %v328, 0
      %v965 = vand.u32 %v328, 2139095040
      %v966 = vshrl.u32 %v965, 23
      %v967 = vsub.s32 %v966, 127
      %v968 = vand.u32 2147483647, %v328
      %v969 = vand.u32 %v968, 8388607
      %v970 = vor.u32 %v969, 8388608
      %v971 = vsub.s32 0, %v970
      %v972 = vadd.s32 %v967, 1
      %vm973 = vcmp.gt.s32.totalorder %v972, 0
      %v974 = vsel %vm973, %v972, 0
      %v975 = vshrl.u32 %v974, 5
      %v976 = vand.u32 %v974, 31
      %v977 = vsub.s32 32, %v976
      %v978 = vshrl.u32 683565275, %v977
      %v979 = vshll.u32 683565275, %v976
      %v980 = vshrl.u32 2475754826, %v977
      %v981 = vor.u32 %v979, %v980
      %v982 = vshll.u32 2475754826, %v976
      %v983 = vshrl.u32 2131351028, %v977
      %v984 = vor.u32 %v982, %v983
      %v985 = vshll.u32 2131351028, %v976
      %v986 = vshrl.u32 2102212464, %v977
      %v987 = vor.u32 %v985, %v986
      %v988 = vshll.u32 2102212464, %v976
      %v989 = vshrl.u32 920167782, %v977
      %v990 = vor.u32 %v988, %v989
      %v991 = vshll.u32 920167782, %v976
      %v992 = vshrl.u32 1326507024, %v977
      %v993 = vor.u32 %v991, %v992
      %vm994 = vcmp.lt.s32.totalorder %v975, 1
      %vm995 = vcmp.lt.s32.totalorder %v975, 2
      %vm996 = vcmp.lt.s32.totalorder %v975, 3
      %vm997 = vcmp.lt.s32.totalorder %v975, 4
      %v998 = vsel %vm994, %v978, %v981
      %v999 = vsel %vm997, %v987, 2102212464
      %v1000 = vsel %vm996, %v984, %v999
      %v1001 = vsel %vm995, %v998, %v1000
      %v1002 = vsel %vm994, %v981, %v984
      %v1003 = vsel %vm997, %v990, 920167782
      %v1004 = vsel %vm996, %v987, %v1003
      %v1005 = vsel %vm995, %v1002, %v1004
      %v1006 = vsel %vm994, %v984, %v987
      %v1007 = vsel %vm997, %v993, 1326507024
      %v1008 = vsel %vm996, %v990, %v1007
      %v1009 = vsel %vm995, %v1006, %v1008
      %v1010 = vshll.u32 %v970, 8
      %v1011 = vmul.u32.u64.compose %v1010, %v1009
      %v1012 = vextract.low.u32 %v1011
      %v1013 = vextract.high.u32 %v1011
      %v1014 = vmul.u32.u64.compose %v1010, %v1005
      %v1015 = vextract.low.u32 %v1014
      %v1016 = vextract.high.u32 %v1014
      %v1017 = vmul.u32 %v1010, %v1001
      %v1018 = vadd.s32 %v1013, %v1015
      %vm1019 = vc.u32 %v1013, %v1015
      %v1020 = vadd.s32 %v1016, 1
      %v1021 = vsel %vm1019, %v1020, %v1016
      %v1022 = vadd.s32 %v1017, %v1021
      %v1023 = vadd.s32 %v1022, 536870912
      %v1024 = vshrl.u32 %v1023, 30
      %v1025 = vshll.u32 %v1024, 30
      %v1026 = vsub.s32 %v1022, %v1025
      %vm1027 = vcmp.lt.s32.totalorder %v1026, 0
      %v1028 = vsub.s32 0, %v1026
      %v1029 = vsel %vm1027, %v1028, %v1026
      %v1030 = vclz %v1029
      %v1031 = vsub.s32 %v1030, 2
      %vm1032 = vcmp.gt.s32.totalorder 0, %v1031
      %v1033 = vsel %vm1032, 0, %v1031
      %v1034 = vsub.s32 32, %v1033
      %v1035 = vshll.u32 %v1026, %v1033
      %v1036 = vshrl.u32 %v1018, %v1034
      %v1037 = vor.u32 %v1035, %v1036
      %v1038 = vsub.s32 4294967266, %v1033
      %v1039 = vadd.s32 %v1038, 127
      %v1040 = vshll.u32 %v1039, 23
      %v1041 = vor.u32 4788187, %v1040
      %v1042 = vand.u32 2147483647, %v1041
      %v1044 = vcvt.s32.f32 %v1037
      %v1045 = vmul.f32 %v1044, %v1042
      %v1046 = vxor.u32 %v1045, 2147483648
      %v1047 = vsel %vm964, %v1046, %v1045
      %v1048 = vsub.s32 4, %v1024
      %v1049 = vsel %vm964, %v1048, %v1024
      %v1050 = vsel %vm963, %v328, %v1047
      %v1051 = vsel %vm963, 0, %v1049
      %v1052 = vcosq.f32.pop %v1050
      %v1053 = vsinq.f32.pop %v1050
      %vm1054 = vweird.f32 %v328
      %v1055 = vadd.s32 %v1051, 3
      %v1056 = vand.u32 %v1055, 3
      %vm1057 = vcmp.lt.s32.totalorder %v1056, 2
      %vm1058 = vcmp.eq.s32.totalorder %v1056, 0
      %v1059 = vxor.u32 %v1053, 2147483648
      %v1060 = vsel %vm1058, %v1052, %v1059
      %vm1061 = vcmp.eq.s32.totalorder %v1056, 2
      %v1062 = vxor.u32 %v1052, 2147483648
      %v1063 = vsel %vm1061, %v1062, %v1053
      %v1064 = vsel %vm1057, %v1060, %v1063
      %v1065 = vsel %vm1054, nan, %v1064
      %v1066 = vand.u32 2147483647, %v329
      %vm1067 = vcmp.le.f32.partialorder %v1066, 0.7853982
      %vm1068 = vcmp.lt.s32.totalorder %v329, 0
      %v1069 = vand.u32 %v329, 2139095040
      %v1070 = vshrl.u32 %v1069, 23
      %v1071 = vsub.s32 %v1070, 127
      %v1072 = vand.u32 2147483647, %v329
      %v1073 = vand.u32 %v1072, 8388607
      %v1074 = vor.u32 %v1073, 8388608
      %v1075 = vsub.s32 0, %v1074
      %v1076 = vadd.s32 %v1071, 1
      %vm1077 = vcmp.gt.s32.totalorder %v1076, 0
      %v1078 = vsel %vm1077, %v1076, 0
      %v1079 = vshrl.u32 %v1078, 5
      %v1080 = vand.u32 %v1078, 31
      %v1081 = vsub.s32 32, %v1080
      %v1082 = vshrl.u32 683565275, %v1081
      %v1083 = vshll.u32 683565275, %v1080
      %v1084 = vshrl.u32 2475754826, %v1081
      %v1085 = vor.u32 %v1083, %v1084
      %v1086 = vshll.u32 2475754826, %v1080
      %v1087 = vshrl.u32 2131351028, %v1081
      %v1088 = vor.u32 %v1086, %v1087
      %v1089 = vshll.u32 2131351028, %v1080
      %v1090 = vshrl.u32 2102212464, %v1081
      %v1091 = vor.u32 %v1089, %v1090
      %v1092 = vshll.u32 2102212464, %v1080
      %v1093 = vshrl.u32 920167782, %v1081
      %v1094 = vor.u32 %v1092, %v1093
      %v1095 = vshll.u32 920167782, %v1080
      %v1096 = vshrl.u32 1326507024, %v1081
      %v1097 = vor.u32 %v1095, %v1096
      %vm1098 = vcmp.lt.s32.totalorder %v1079, 1
      %vm1099 = vcmp.lt.s32.totalorder %v1079, 2
      %vm1100 = vcmp.lt.s32.totalorder %v1079, 3
      %vm1101 = vcmp.lt.s32.totalorder %v1079, 4
      %v1102 = vsel %vm1098, %v1082, %v1085
      %v1103 = vsel %vm1101, %v1091, 2102212464
      %v1104 = vsel %vm1100, %v1088, %v1103
      %v1105 = vsel %vm1099, %v1102, %v1104
      %v1106 = vsel %vm1098, %v1085, %v1088
      %v1107 = vsel %vm1101, %v1094, 920167782
      %v1108 = vsel %vm1100, %v1091, %v1107
      %v1109 = vsel %vm1099, %v1106, %v1108
      %v1110 = vsel %vm1098, %v1088, %v1091
      %v1111 = vsel %vm1101, %v1097, 1326507024
      %v1112 = vsel %vm1100, %v1094, %v1111
      %v1113 = vsel %vm1099, %v1110, %v1112
      %v1114 = vshll.u32 %v1074, 8
      %v1115 = vmul.u32.u64.compose %v1114, %v1113
      %v1116 = vextract.low.u32 %v1115
      %v1117 = vextract.high.u32 %v1115
      %v1118 = vmul.u32.u64.compose %v1114, %v1109
      %v1119 = vextract.low.u32 %v1118
      %v1120 = vextract.high.u32 %v1118
      %v1121 = vmul.u32 %v1114, %v1105
      %v1122 = vadd.s32 %v1117, %v1119
      %vm1123 = vc.u32 %v1117, %v1119
      %v1124 = vadd.s32 %v1120, 1
      %v1125 = vsel %vm1123, %v1124, %v1120
      %v1126 = vadd.s32 %v1121, %v1125
      %v1127 = vadd.s32 %v1126, 536870912
      %v1128 = vshrl.u32 %v1127, 30
      %v1129 = vshll.u32 %v1128, 30
      %v1130 = vsub.s32 %v1126, %v1129
      %vm1131 = vcmp.lt.s32.totalorder %v1130, 0
      %v1132 = vsub.s32 0, %v1130
      %v1133 = vsel %vm1131, %v1132, %v1130
      %v1134 = vclz %v1133
      %v1135 = vsub.s32 %v1134, 2
      %vm1136 = vcmp.gt.s32.totalorder 0, %v1135
      %v1137 = vsel %vm1136, 0, %v1135
      %v1138 = vsub.s32 32, %v1137
      %v1139 = vshll.u32 %v1130, %v1137
      %v1140 = vshrl.u32 %v1122, %v1138
      %v1141 = vor.u32 %v1139, %v1140
      %v1142 = vsub.s32 4294967266, %v1137
      %v1143 = vadd.s32 %v1142, 127
      %v1144 = vshll.u32 %v1143, 23
      %v1145 = vor.u32 4788187, %v1144
      %v1146 = vand.u32 2147483647, %v1145
      %v1148 = vcvt.s32.f32 %v1141
      %v1149 = vmul.f32 %v1148, %v1146
      %v1150 = vxor.u32 %v1149, 2147483648
      %v1151 = vsel %vm1068, %v1150, %v1149
      %v1152 = vsub.s32 4, %v1128
      %v1153 = vsel %vm1068, %v1152, %v1128
      %v1154 = vsel %vm1067, %v329, %v1151
      %v1155 = vsel %vm1067, 0, %v1153
      %v1156 = vcosq.f32.pop %v1154
      %v1157 = vsinq.f32.pop %v1154
      %vm1158 = vweird.f32 %v329
      %v1159 = vadd.s32 %v1155, 3
      %v1160 = vand.u32 %v1159, 3
      %vm1161 = vcmp.lt.s32.totalorder %v1160, 2
      %vm1162 = vcmp.eq.s32.totalorder %v1160, 0
      %v1163 = vxor.u32 %v1157, 2147483648
      %v1164 = vsel %vm1162, %v1156, %v1163
      %vm1165 = vcmp.eq.s32.totalorder %v1160, 2
      %v1166 = vxor.u32 %v1156, 2147483648
      %v1167 = vsel %vm1165, %v1166, %v1157
      %v1168 = vsel %vm1161, %v1164, %v1167
      %v1169 = vsel %vm1158, nan, %v1168
      %v1170 = vand.u32 2147483647, %v330
      %vm1171 = vcmp.le.f32.partialorder %v1170, 0.7853982
      %vm1172 = vcmp.lt.s32.totalorder %v330, 0
      %v1173 = vand.u32 %v330, 2139095040
      %v1174 = vshrl.u32 %v1173, 23
      %v1175 = vsub.s32 %v1174, 127
      %v1176 = vand.u32 2147483647, %v330
      %v1177 = vand.u32 %v1176, 8388607
      %v1178 = vor.u32 %v1177, 8388608
      %v1179 = vsub.s32 0, %v1178
      %v1180 = vadd.s32 %v1175, 1
      %vm1181 = vcmp.gt.s32.totalorder %v1180, 0
      %v1182 = vsel %vm1181, %v1180, 0
      %v1183 = vshrl.u32 %v1182, 5
      %v1184 = vand.u32 %v1182, 31
      %v1185 = vsub.s32 32, %v1184
      %v1186 = vshrl.u32 683565275, %v1185
      %v1187 = vshll.u32 683565275, %v1184
      %v1188 = vshrl.u32 2475754826, %v1185
      %v1189 = vor.u32 %v1187, %v1188
      %v1190 = vshll.u32 2475754826, %v1184
      %v1191 = vshrl.u32 2131351028, %v1185
      %v1192 = vor.u32 %v1190, %v1191
      %v1193 = vshll.u32 2131351028, %v1184
      %v1194 = vshrl.u32 2102212464, %v1185
      %v1195 = vor.u32 %v1193, %v1194
      %v1196 = vshll.u32 2102212464, %v1184
      %v1197 = vshrl.u32 920167782, %v1185
      %v1198 = vor.u32 %v1196, %v1197
      %v1199 = vshll.u32 920167782, %v1184
      %v1200 = vshrl.u32 1326507024, %v1185
      %v1201 = vor.u32 %v1199, %v1200
      %vm1202 = vcmp.lt.s32.totalorder %v1183, 1
      %vm1203 = vcmp.lt.s32.totalorder %v1183, 2
      %vm1204 = vcmp.lt.s32.totalorder %v1183, 3
      %vm1205 = vcmp.lt.s32.totalorder %v1183, 4
      %v1206 = vsel %vm1202, %v1186, %v1189
      %v1207 = vsel %vm1205, %v1195, 2102212464
      %v1208 = vsel %vm1204, %v1192, %v1207
      %v1209 = vsel %vm1203, %v1206, %v1208
      %v1210 = vsel %vm1202, %v1189, %v1192
      %v1211 = vsel %vm1205, %v1198, 920167782
      %v1212 = vsel %vm1204, %v1195, %v1211
      %v1213 = vsel %vm1203, %v1210, %v1212
      %v1214 = vsel %vm1202, %v1192, %v1195
      %v1215 = vsel %vm1205, %v1201, 1326507024
      %v1216 = vsel %vm1204, %v1198, %v1215
      %v1217 = vsel %vm1203, %v1214, %v1216
      %v1218 = vshll.u32 %v1178, 8
      %v1219 = vmul.u32.u64.compose %v1218, %v1217
      %v1220 = vextract.low.u32 %v1219
      %v1221 = vextract.high.u32 %v1219
      %v1222 = vmul.u32.u64.compose %v1218, %v1213
      %v1223 = vextract.low.u32 %v1222
      %v1224 = vextract.high.u32 %v1222
      %v1225 = vmul.u32 %v1218, %v1209
      %v1226 = vadd.s32 %v1221, %v1223
      %vm1227 = vc.u32 %v1221, %v1223
      %v1228 = vadd.s32 %v1224, 1
      %v1229 = vsel %vm1227, %v1228, %v1224
      %v1230 = vadd.s32 %v1225, %v1229
      %v1231 = vadd.s32 %v1230, 536870912
      %v1232 = vshrl.u32 %v1231, 30
      %v1233 = vshll.u32 %v1232, 30
      %v1234 = vsub.s32 %v1230, %v1233
      %vm1235 = vcmp.lt.s32.totalorder %v1234, 0
      %v1236 = vsub.s32 0, %v1234
      %v1237 = vsel %vm1235, %v1236, %v1234
      %v1238 = vclz %v1237
      %v1239 = vsub.s32 %v1238, 2
      %vm1240 = vcmp.gt.s32.totalorder 0, %v1239
      %v1241 = vsel %vm1240, 0, %v1239
      %v1242 = vsub.s32 32, %v1241
      %v1243 = vshll.u32 %v1234, %v1241
      %v1244 = vshrl.u32 %v1226, %v1242
      %v1245 = vor.u32 %v1243, %v1244
      %v1246 = vsub.s32 4294967266, %v1241
      %v1247 = vadd.s32 %v1246, 127
      %v1248 = vshll.u32 %v1247, 23
      %v1249 = vor.u32 4788187, %v1248
      %v1250 = vand.u32 2147483647, %v1249
      %v1252 = vcvt.s32.f32 %v1245
      %v1253 = vmul.f32 %v1252, %v1250
      %v1254 = vxor.u32 %v1253, 2147483648
      %v1255 = vsel %vm1172, %v1254, %v1253
      %v1256 = vsub.s32 4, %v1232
      %v1257 = vsel %vm1172, %v1256, %v1232
      %v1258 = vsel %vm1171, %v330, %v1255
      %v1259 = vsel %vm1171, 0, %v1257
      %v1260 = vcosq.f32.pop %v1258
      %v1261 = vsinq.f32.pop %v1258
      %vm1262 = vweird.f32 %v330
      %v1263 = vadd.s32 %v1259, 3
      %v1264 = vand.u32 %v1263, 3
      %vm1265 = vcmp.lt.s32.totalorder %v1264, 2
      %vm1266 = vcmp.eq.s32.totalorder %v1264, 0
      %v1267 = vxor.u32 %v1261, 2147483648
      %v1268 = vsel %vm1266, %v1260, %v1267
      %vm1269 = vcmp.eq.s32.totalorder %v1264, 2
      %v1270 = vxor.u32 %v1260, 2147483648
      %v1271 = vsel %vm1269, %v1270, %v1261
      %v1272 = vsel %vm1265, %v1268, %v1271
      %v1273 = vsel %vm1262, nan, %v1272
      %v1274 = vand.u32 2147483647, %v331
      %vm1275 = vcmp.le.f32.partialorder %v1274, 0.7853982
      %vm1276 = vcmp.lt.s32.totalorder %v331, 0
      %v1277 = vand.u32 %v331, 2139095040
      %v1278 = vshrl.u32 %v1277, 23
      %v1279 = vsub.s32 %v1278, 127
      %v1280 = vand.u32 2147483647, %v331
      %v1281 = vand.u32 %v1280, 8388607
      %v1282 = vor.u32 %v1281, 8388608
      %v1283 = vsub.s32 0, %v1282
      %v1284 = vadd.s32 %v1279, 1
      %vm1285 = vcmp.gt.s32.totalorder %v1284, 0
      %v1286 = vsel %vm1285, %v1284, 0
      %v1287 = vshrl.u32 %v1286, 5
      %v1288 = vand.u32 %v1286, 31
      %v1289 = vsub.s32 32, %v1288
      %v1290 = vshrl.u32 683565275, %v1289
      %v1291 = vshll.u32 683565275, %v1288
      %v1292 = vshrl.u32 2475754826, %v1289
      %v1293 = vor.u32 %v1291, %v1292
      %v1294 = vshll.u32 2475754826, %v1288
      %v1295 = vshrl.u32 2131351028, %v1289
      %v1296 = vor.u32 %v1294, %v1295
      %v1297 = vshll.u32 2131351028, %v1288
      %v1298 = vshrl.u32 2102212464, %v1289
      %v1299 = vor.u32 %v1297, %v1298
      %v1300 = vshll.u32 2102212464, %v1288
      %v1301 = vshrl.u32 920167782, %v1289
      %v1302 = vor.u32 %v1300, %v1301
      %v1303 = vshll.u32 920167782, %v1288
      %v1304 = vshrl.u32 1326507024, %v1289
      %v1305 = vor.u32 %v1303, %v1304
      %vm1306 = vcmp.lt.s32.totalorder %v1287, 1
      %vm1307 = vcmp.lt.s32.totalorder %v1287, 2
      %vm1308 = vcmp.lt.s32.totalorder %v1287, 3
      %vm1309 = vcmp.lt.s32.totalorder %v1287, 4
      %v1310 = vsel %vm1306, %v1290, %v1293
      %v1311 = vsel %vm1309, %v1299, 2102212464
      %v1312 = vsel %vm1308, %v1296, %v1311
      %v1313 = vsel %vm1307, %v1310, %v1312
      %v1314 = vsel %vm1306, %v1293, %v1296
      %v1315 = vsel %vm1309, %v1302, 920167782
      %v1316 = vsel %vm1308, %v1299, %v1315
      %v1317 = vsel %vm1307, %v1314, %v1316
      %v1318 = vsel %vm1306, %v1296, %v1299
      %v1319 = vsel %vm1309, %v1305, 1326507024
      %v1320 = vsel %vm1308, %v1302, %v1319
      %v1321 = vsel %vm1307, %v1318, %v1320
      %v1322 = vshll.u32 %v1282, 8
      %v1323 = vmul.u32.u64.compose %v1322, %v1321
      %v1324 = vextract.low.u32 %v1323
      %v1325 = vextract.high.u32 %v1323
      %v1326 = vmul.u32.u64.compose %v1322, %v1317
      %v1327 = vextract.low.u32 %v1326
      %v1328 = vextract.high.u32 %v1326
      %v1329 = vmul.u32 %v1322, %v1313
      %v1330 = vadd.s32 %v1325, %v1327
      %vm1331 = vc.u32 %v1325, %v1327
      %v1332 = vadd.s32 %v1328, 1
      %v1333 = vsel %vm1331, %v1332, %v1328
      %v1334 = vadd.s32 %v1329, %v1333
      %v1335 = vadd.s32 %v1334, 536870912
      %v1336 = vshrl.u32 %v1335, 30
      %v1337 = vshll.u32 %v1336, 30
      %v1338 = vsub.s32 %v1334, %v1337
      %vm1339 = vcmp.lt.s32.totalorder %v1338, 0
      %v1340 = vsub.s32 0, %v1338
      %v1341 = vsel %vm1339, %v1340, %v1338
      %v1342 = vclz %v1341
      %v1343 = vsub.s32 %v1342, 2
      %vm1344 = vcmp.gt.s32.totalorder 0, %v1343
      %v1345 = vsel %vm1344, 0, %v1343
      %v1346 = vsub.s32 32, %v1345
      %v1347 = vshll.u32 %v1338, %v1345
      %v1348 = vshrl.u32 %v1330, %v1346
      %v1349 = vor.u32 %v1347, %v1348
      %v1350 = vsub.s32 4294967266, %v1345
      %v1351 = vadd.s32 %v1350, 127
      %v1352 = vshll.u32 %v1351, 23
      %v1353 = vor.u32 4788187, %v1352
      %v1354 = vand.u32 2147483647, %v1353
      %v1356 = vcvt.s32.f32 %v1349
      %v1357 = vmul.f32 %v1356, %v1354
      %v1358 = vxor.u32 %v1357, 2147483648
      %v1359 = vsel %vm1276, %v1358, %v1357
      %v1360 = vsub.s32 4, %v1336
      %v1361 = vsel %vm1276, %v1360, %v1336
      %v1362 = vsel %vm1275, %v331, %v1359
      %v1363 = vsel %vm1275, 0, %v1361
      %v1364 = vcosq.f32.pop %v1362
      %v1365 = vsinq.f32.pop %v1362
      %vm1366 = vweird.f32 %v331
      %v1367 = vadd.s32 %v1363, 3
      %v1368 = vand.u32 %v1367, 3
      %vm1369 = vcmp.lt.s32.totalorder %v1368, 2
      %vm1370 = vcmp.eq.s32.totalorder %v1368, 0
      %v1371 = vxor.u32 %v1365, 2147483648
      %v1372 = vsel %vm1370, %v1364, %v1371
      %vm1373 = vcmp.eq.s32.totalorder %v1368, 2
      %v1374 = vxor.u32 %v1364, 2147483648
      %v1375 = vsel %vm1373, %v1374, %v1365
      %v1376 = vsel %vm1369, %v1372, %v1375
      %v1377 = vsel %vm1366, nan, %v1376
      %v1378 = vand.u32 2147483647, %v332
      %vm1379 = vcmp.le.f32.partialorder %v1378, 0.7853982
      %vm1380 = vcmp.lt.s32.totalorder %v332, 0
      %v1381 = vand.u32 %v332, 2139095040
      %v1382 = vshrl.u32 %v1381, 23
      %v1383 = vsub.s32 %v1382, 127
      %v1384 = vand.u32 2147483647, %v332
      %v1385 = vand.u32 %v1384, 8388607
      %v1386 = vor.u32 %v1385, 8388608
      %v1387 = vsub.s32 0, %v1386
      %v1388 = vadd.s32 %v1383, 1
      %vm1389 = vcmp.gt.s32.totalorder %v1388, 0
      %v1390 = vsel %vm1389, %v1388, 0
      %v1391 = vshrl.u32 %v1390, 5
      %v1392 = vand.u32 %v1390, 31
      %v1393 = vsub.s32 32, %v1392
      %v1394 = vshrl.u32 683565275, %v1393
      %v1395 = vshll.u32 683565275, %v1392
      %v1396 = vshrl.u32 2475754826, %v1393
      %v1397 = vor.u32 %v1395, %v1396
      %v1398 = vshll.u32 2475754826, %v1392
      %v1399 = vshrl.u32 2131351028, %v1393
      %v1400 = vor.u32 %v1398, %v1399
      %v1401 = vshll.u32 2131351028, %v1392
      %v1402 = vshrl.u32 2102212464, %v1393
      %v1403 = vor.u32 %v1401, %v1402
      %v1404 = vshll.u32 2102212464, %v1392
      %v1405 = vshrl.u32 920167782, %v1393
      %v1406 = vor.u32 %v1404, %v1405
      %v1407 = vshll.u32 920167782, %v1392
      %v1408 = vshrl.u32 1326507024, %v1393
      %v1409 = vor.u32 %v1407, %v1408
      %vm1410 = vcmp.lt.s32.totalorder %v1391, 1
      %vm1411 = vcmp.lt.s32.totalorder %v1391, 2
      %vm1412 = vcmp.lt.s32.totalorder %v1391, 3
      %vm1413 = vcmp.lt.s32.totalorder %v1391, 4
      %v1414 = vsel %vm1410, %v1394, %v1397
      %v1415 = vsel %vm1413, %v1403, 2102212464
      %v1416 = vsel %vm1412, %v1400, %v1415
      %v1417 = vsel %vm1411, %v1414, %v1416
      %v1418 = vsel %vm1410, %v1397, %v1400
      %v1419 = vsel %vm1413, %v1406, 920167782
      %v1420 = vsel %vm1412, %v1403, %v1419
      %v1421 = vsel %vm1411, %v1418, %v1420
      %v1422 = vsel %vm1410, %v1400, %v1403
      %v1423 = vsel %vm1413, %v1409, 1326507024
      %v1424 = vsel %vm1412, %v1406, %v1423
      %v1425 = vsel %vm1411, %v1422, %v1424
      %v1426 = vshll.u32 %v1386, 8
      %v1427 = vmul.u32.u64.compose %v1426, %v1425
      %v1428 = vextract.low.u32 %v1427
      %v1429 = vextract.high.u32 %v1427
      %v1430 = vmul.u32.u64.compose %v1426, %v1421
      %v1431 = vextract.low.u32 %v1430
      %v1432 = vextract.high.u32 %v1430
      %v1433 = vmul.u32 %v1426, %v1417
      %v1434 = vadd.s32 %v1429, %v1431
      %vm1435 = vc.u32 %v1429, %v1431
      %v1436 = vadd.s32 %v1432, 1
      %v1437 = vsel %vm1435, %v1436, %v1432
      %v1438 = vadd.s32 %v1433, %v1437
      %v1439 = vadd.s32 %v1438, 536870912
      %v1440 = vshrl.u32 %v1439, 30
      %v1441 = vshll.u32 %v1440, 30
      %v1442 = vsub.s32 %v1438, %v1441
      %vm1443 = vcmp.lt.s32.totalorder %v1442, 0
      %v1444 = vsub.s32 0, %v1442
      %v1445 = vsel %vm1443, %v1444, %v1442
      %v1446 = vclz %v1445
      %v1447 = vsub.s32 %v1446, 2
      %vm1448 = vcmp.gt.s32.totalorder 0, %v1447
      %v1449 = vsel %vm1448, 0, %v1447
      %v1450 = vsub.s32 32, %v1449
      %v1451 = vshll.u32 %v1442, %v1449
      %v1452 = vshrl.u32 %v1434, %v1450
      %v1453 = vor.u32 %v1451, %v1452
      %v1454 = vsub.s32 4294967266, %v1449
      %v1455 = vadd.s32 %v1454, 127
      %v1456 = vshll.u32 %v1455, 23
      %v1457 = vor.u32 4788187, %v1456
      %v1458 = vand.u32 2147483647, %v1457
      %v1460 = vcvt.s32.f32 %v1453
      %v1461 = vmul.f32 %v1460, %v1458
      %v1462 = vxor.u32 %v1461, 2147483648
      %v1463 = vsel %vm1380, %v1462, %v1461
      %v1464 = vsub.s32 4, %v1440
      %v1465 = vsel %vm1380, %v1464, %v1440
      %v1466 = vsel %vm1379, %v332, %v1463
      %v1467 = vsel %vm1379, 0, %v1465
      %v1468 = vcosq.f32.pop %v1466
      %v1469 = vsinq.f32.pop %v1466
      %vm1470 = vweird.f32 %v332
      %v1471 = vadd.s32 %v1467, 3
      %v1472 = vand.u32 %v1471, 3
      %vm1473 = vcmp.lt.s32.totalorder %v1472, 2
      %vm1474 = vcmp.eq.s32.totalorder %v1472, 0
      %v1475 = vxor.u32 %v1469, 2147483648
      %v1476 = vsel %vm1474, %v1468, %v1475
      %vm1477 = vcmp.eq.s32.totalorder %v1472, 2
      %v1478 = vxor.u32 %v1468, 2147483648
      %v1479 = vsel %vm1477, %v1478, %v1469
      %v1480 = vsel %vm1473, %v1476, %v1479
      %v1481 = vsel %vm1470, nan, %v1480
      %v1482 = vand.u32 2147483647, %v333
      %vm1483 = vcmp.le.f32.partialorder %v1482, 0.7853982
      %vm1484 = vcmp.lt.s32.totalorder %v333, 0
      %v1485 = vand.u32 %v333, 2139095040
      %v1486 = vshrl.u32 %v1485, 23
      %v1487 = vsub.s32 %v1486, 127
      %v1488 = vand.u32 2147483647, %v333
      %v1489 = vand.u32 %v1488, 8388607
      %v1490 = vor.u32 %v1489, 8388608
      %v1491 = vsub.s32 0, %v1490
      %v1492 = vadd.s32 %v1487, 1
      %vm1493 = vcmp.gt.s32.totalorder %v1492, 0
      %v1494 = vsel %vm1493, %v1492, 0
      %v1495 = vshrl.u32 %v1494, 5
      %v1496 = vand.u32 %v1494, 31
      %v1497 = vsub.s32 32, %v1496
      %v1498 = vshrl.u32 683565275, %v1497
      %v1499 = vshll.u32 683565275, %v1496
      %v1500 = vshrl.u32 2475754826, %v1497
      %v1501 = vor.u32 %v1499, %v1500
      %v1502 = vshll.u32 2475754826, %v1496
      %v1503 = vshrl.u32 2131351028, %v1497
      %v1504 = vor.u32 %v1502, %v1503
      %v1505 = vshll.u32 2131351028, %v1496
      %v1506 = vshrl.u32 2102212464, %v1497
      %v1507 = vor.u32 %v1505, %v1506
      %v1508 = vshll.u32 2102212464, %v1496
      %v1509 = vshrl.u32 920167782, %v1497
      %v1510 = vor.u32 %v1508, %v1509
      %v1511 = vshll.u32 920167782, %v1496
      %v1512 = vshrl.u32 1326507024, %v1497
      %v1513 = vor.u32 %v1511, %v1512
      %vm1514 = vcmp.lt.s32.totalorder %v1495, 1
      %vm1515 = vcmp.lt.s32.totalorder %v1495, 2
      %vm1516 = vcmp.lt.s32.totalorder %v1495, 3
      %vm1517 = vcmp.lt.s32.totalorder %v1495, 4
      %v1518 = vsel %vm1514, %v1498, %v1501
      %v1519 = vsel %vm1517, %v1507, 2102212464
      %v1520 = vsel %vm1516, %v1504, %v1519
      %v1521 = vsel %vm1515, %v1518, %v1520
      %v1522 = vsel %vm1514, %v1501, %v1504
      %v1523 = vsel %vm1517, %v1510, 920167782
      %v1524 = vsel %vm1516, %v1507, %v1523
      %v1525 = vsel %vm1515, %v1522, %v1524
      %v1526 = vsel %vm1514, %v1504, %v1507
      %v1527 = vsel %vm1517, %v1513, 1326507024
      %v1528 = vsel %vm1516, %v1510, %v1527
      %v1529 = vsel %vm1515, %v1526, %v1528
      %v1530 = vshll.u32 %v1490, 8
      %v1531 = vmul.u32.u64.compose %v1530, %v1529
      %v1532 = vextract.low.u32 %v1531
      %v1533 = vextract.high.u32 %v1531
      %v1534 = vmul.u32.u64.compose %v1530, %v1525
      %v1535 = vextract.low.u32 %v1534
      %v1536 = vextract.high.u32 %v1534
      %v1537 = vmul.u32 %v1530, %v1521
      %v1538 = vadd.s32 %v1533, %v1535
      %vm1539 = vc.u32 %v1533, %v1535
      %v1540 = vadd.s32 %v1536, 1
      %v1541 = vsel %vm1539, %v1540, %v1536
      %v1542 = vadd.s32 %v1537, %v1541
      %v1543 = vadd.s32 %v1542, 536870912
      %v1544 = vshrl.u32 %v1543, 30
      %v1545 = vshll.u32 %v1544, 30
      %v1546 = vsub.s32 %v1542, %v1545
      %vm1547 = vcmp.lt.s32.totalorder %v1546, 0
      %v1548 = vsub.s32 0, %v1546
      %v1549 = vsel %vm1547, %v1548, %v1546
      %v1550 = vclz %v1549
      %v1551 = vsub.s32 %v1550, 2
      %vm1552 = vcmp.gt.s32.totalorder 0, %v1551
      %v1553 = vsel %vm1552, 0, %v1551
      %v1554 = vsub.s32 32, %v1553
      %v1555 = vshll.u32 %v1546, %v1553
      %v1556 = vshrl.u32 %v1538, %v1554
      %v1557 = vor.u32 %v1555, %v1556
      %v1558 = vsub.s32 4294967266, %v1553
      %v1559 = vadd.s32 %v1558, 127
      %v1560 = vshll.u32 %v1559, 23
      %v1561 = vor.u32 4788187, %v1560
      %v1562 = vand.u32 2147483647, %v1561
      %v1564 = vcvt.s32.f32 %v1557
      %v1565 = vmul.f32 %v1564, %v1562
      %v1566 = vxor.u32 %v1565, 2147483648
      %v1567 = vsel %vm1484, %v1566, %v1565
      %v1568 = vsub.s32 4, %v1544
      %v1569 = vsel %vm1484, %v1568, %v1544
      %v1570 = vsel %vm1483, %v333, %v1567
      %v1571 = vsel %vm1483, 0, %v1569
      %v1572 = vcosq.f32.pop %v1570
      %v1573 = vsinq.f32.pop %v1570
      %vm1574 = vweird.f32 %v333
      %v1575 = vadd.s32 %v1571, 3
      %v1576 = vand.u32 %v1575, 3
      %vm1577 = vcmp.lt.s32.totalorder %v1576, 2
      %vm1578 = vcmp.eq.s32.totalorder %v1576, 0
      %v1579 = vxor.u32 %v1573, 2147483648
      %v1580 = vsel %vm1578, %v1572, %v1579
      %vm1581 = vcmp.eq.s32.totalorder %v1576, 2
      %v1582 = vxor.u32 %v1572, 2147483648
      %v1583 = vsel %vm1581, %v1582, %v1573
      %v1584 = vsel %vm1577, %v1580, %v1583
      %v1585 = vsel %vm1574, nan, %v1584
      %v1586 = vand.u32 2147483647, %v334
      %vm1587 = vcmp.le.f32.partialorder %v1586, 0.7853982
      %vm1588 = vcmp.lt.s32.totalorder %v334, 0
      %v1589 = vand.u32 %v334, 2139095040
      %v1590 = vshrl.u32 %v1589, 23
      %v1591 = vsub.s32 %v1590, 127
      %v1592 = vand.u32 2147483647, %v334
      %v1593 = vand.u32 %v1592, 8388607
      %v1594 = vor.u32 %v1593, 8388608
      %v1595 = vsub.s32 0, %v1594
      %v1596 = vadd.s32 %v1591, 1
      %vm1597 = vcmp.gt.s32.totalorder %v1596, 0
      %v1598 = vsel %vm1597, %v1596, 0
      %v1599 = vshrl.u32 %v1598, 5
      %v1600 = vand.u32 %v1598, 31
      %v1601 = vsub.s32 32, %v1600
      %v1602 = vshrl.u32 683565275, %v1601
      %v1603 = vshll.u32 683565275, %v1600
      %v1604 = vshrl.u32 2475754826, %v1601
      %v1605 = vor.u32 %v1603, %v1604
      %v1606 = vshll.u32 2475754826, %v1600
      %v1607 = vshrl.u32 2131351028, %v1601
      %v1608 = vor.u32 %v1606, %v1607
      %v1609 = vshll.u32 2131351028, %v1600
      %v1610 = vshrl.u32 2102212464, %v1601
      %v1611 = vor.u32 %v1609, %v1610
      %v1612 = vshll.u32 2102212464, %v1600
      %v1613 = vshrl.u32 920167782, %v1601
      %v1614 = vor.u32 %v1612, %v1613
      %v1615 = vshll.u32 920167782, %v1600
      %v1616 = vshrl.u32 1326507024, %v1601
      %v1617 = vor.u32 %v1615, %v1616
      %vm1618 = vcmp.lt.s32.totalorder %v1599, 1
      %vm1619 = vcmp.lt.s32.totalorder %v1599, 2
      %vm1620 = vcmp.lt.s32.totalorder %v1599, 3
      %vm1621 = vcmp.lt.s32.totalorder %v1599, 4
      %v1622 = vsel %vm1618, %v1602, %v1605
      %v1623 = vsel %vm1621, %v1611, 2102212464
      %v1624 = vsel %vm1620, %v1608, %v1623
      %v1625 = vsel %vm1619, %v1622, %v1624
      %v1626 = vsel %vm1618, %v1605, %v1608
      %v1627 = vsel %vm1621, %v1614, 920167782
      %v1628 = vsel %vm1620, %v1611, %v1627
      %v1629 = vsel %vm1619, %v1626, %v1628
      %v1630 = vsel %vm1618, %v1608, %v1611
      %v1631 = vsel %vm1621, %v1617, 1326507024
      %v1632 = vsel %vm1620, %v1614, %v1631
      %v1633 = vsel %vm1619, %v1630, %v1632
      %v1634 = vshll.u32 %v1594, 8
      %v1635 = vmul.u32.u64.compose %v1634, %v1633
      %v1636 = vextract.low.u32 %v1635
      %v1637 = vextract.high.u32 %v1635
      %v1638 = vmul.u32.u64.compose %v1634, %v1629
      %v1639 = vextract.low.u32 %v1638
      %v1640 = vextract.high.u32 %v1638
      %v1641 = vmul.u32 %v1634, %v1625
      %v1642 = vadd.s32 %v1637, %v1639
      %vm1643 = vc.u32 %v1637, %v1639
      %v1644 = vadd.s32 %v1640, 1
      %v1645 = vsel %vm1643, %v1644, %v1640
      %v1646 = vadd.s32 %v1641, %v1645
      %v1647 = vadd.s32 %v1646, 536870912
      %v1648 = vshrl.u32 %v1647, 30
      %v1649 = vshll.u32 %v1648, 30
      %v1650 = vsub.s32 %v1646, %v1649
      %vm1651 = vcmp.lt.s32.totalorder %v1650, 0
      %v1652 = vsub.s32 0, %v1650
      %v1653 = vsel %vm1651, %v1652, %v1650
      %v1654 = vclz %v1653
      %v1655 = vsub.s32 %v1654, 2
      %vm1656 = vcmp.gt.s32.totalorder 0, %v1655
      %v1657 = vsel %vm1656, 0, %v1655
      %v1658 = vsub.s32 32, %v1657
      %v1659 = vshll.u32 %v1650, %v1657
      %v1660 = vshrl.u32 %v1642, %v1658
      %v1661 = vor.u32 %v1659, %v1660
      %v1662 = vsub.s32 4294967266, %v1657
      %v1663 = vadd.s32 %v1662, 127
      %v1664 = vshll.u32 %v1663, 23
      %v1665 = vor.u32 4788187, %v1664
      %v1666 = vand.u32 2147483647, %v1665
      %v1668 = vcvt.s32.f32 %v1661
      %v1669 = vmul.f32 %v1668, %v1666
      %v1670 = vxor.u32 %v1669, 2147483648
      %v1671 = vsel %vm1588, %v1670, %v1669
      %v1672 = vsub.s32 4, %v1648
      %v1673 = vsel %vm1588, %v1672, %v1648
      %v1674 = vsel %vm1587, %v334, %v1671
      %v1675 = vsel %vm1587, 0, %v1673
      %v1676 = vcosq.f32.pop %v1674
      %v1677 = vsinq.f32.pop %v1674
      %vm1678 = vweird.f32 %v334
      %v1679 = vadd.s32 %v1675, 3
      %v1680 = vand.u32 %v1679, 3
      %vm1681 = vcmp.lt.s32.totalorder %v1680, 2
      %vm1682 = vcmp.eq.s32.totalorder %v1680, 0
      %v1683 = vxor.u32 %v1677, 2147483648
      %v1684 = vsel %vm1682, %v1676, %v1683
      %vm1685 = vcmp.eq.s32.totalorder %v1680, 2
      %v1686 = vxor.u32 %v1676, 2147483648
      %v1687 = vsel %vm1685, %v1686, %v1677
      %v1688 = vsel %vm1681, %v1684, %v1687
      %v1689 = vsel %vm1678, nan, %v1688
      %v1690 = vand.u32 2147483647, %v335
      %vm1691 = vcmp.le.f32.partialorder %v1690, 0.7853982
      %vm1692 = vcmp.lt.s32.totalorder %v335, 0
      %v1693 = vand.u32 %v335, 2139095040
      %v1694 = vshrl.u32 %v1693, 23
      %v1695 = vsub.s32 %v1694, 127
      %v1696 = vand.u32 2147483647, %v335
      %v1697 = vand.u32 %v1696, 8388607
      %v1698 = vor.u32 %v1697, 8388608
      %v1699 = vsub.s32 0, %v1698
      %v1700 = vadd.s32 %v1695, 1
      %vm1701 = vcmp.gt.s32.totalorder %v1700, 0
      %v1702 = vsel %vm1701, %v1700, 0
      %v1703 = vshrl.u32 %v1702, 5
      %v1704 = vand.u32 %v1702, 31
      %v1705 = vsub.s32 32, %v1704
      %v1706 = vshrl.u32 683565275, %v1705
      %v1707 = vshll.u32 683565275, %v1704
      %v1708 = vshrl.u32 2475754826, %v1705
      %v1709 = vor.u32 %v1707, %v1708
      %v1710 = vshll.u32 2475754826, %v1704
      %v1711 = vshrl.u32 2131351028, %v1705
      %v1712 = vor.u32 %v1710, %v1711
      %v1713 = vshll.u32 2131351028, %v1704
      %v1714 = vshrl.u32 2102212464, %v1705
      %v1715 = vor.u32 %v1713, %v1714
      %v1716 = vshll.u32 2102212464, %v1704
      %v1717 = vshrl.u32 920167782, %v1705
      %v1718 = vor.u32 %v1716, %v1717
      %v1719 = vshll.u32 920167782, %v1704
      %v1720 = vshrl.u32 1326507024, %v1705
      %v1721 = vor.u32 %v1719, %v1720
      %vm1722 = vcmp.lt.s32.totalorder %v1703, 1
      %vm1723 = vcmp.lt.s32.totalorder %v1703, 2
      %vm1724 = vcmp.lt.s32.totalorder %v1703, 3
      %vm1725 = vcmp.lt.s32.totalorder %v1703, 4
      %v1726 = vsel %vm1722, %v1706, %v1709
      %v1727 = vsel %vm1725, %v1715, 2102212464
      %v1728 = vsel %vm1724, %v1712, %v1727
      %v1729 = vsel %vm1723, %v1726, %v1728
      %v1730 = vsel %vm1722, %v1709, %v1712
      %v1731 = vsel %vm1725, %v1718, 920167782
      %v1732 = vsel %vm1724, %v1715, %v1731
      %v1733 = vsel %vm1723, %v1730, %v1732
      %v1734 = vsel %vm1722, %v1712, %v1715
      %v1735 = vsel %vm1725, %v1721, 1326507024
      %v1736 = vsel %vm1724, %v1718, %v1735
      %v1737 = vsel %vm1723, %v1734, %v1736
      %v1738 = vshll.u32 %v1698, 8
      %v1739 = vmul.u32.u64.compose %v1738, %v1737
      %v1740 = vextract.low.u32 %v1739
      %v1741 = vextract.high.u32 %v1739
      %v1742 = vmul.u32.u64.compose %v1738, %v1733
      %v1743 = vextract.low.u32 %v1742
      %v1744 = vextract.high.u32 %v1742
      %v1745 = vmul.u32 %v1738, %v1729
      %v1746 = vadd.s32 %v1741, %v1743
      %vm1747 = vc.u32 %v1741, %v1743
      %v1748 = vadd.s32 %v1744, 1
      %v1749 = vsel %vm1747, %v1748, %v1744
      %v1750 = vadd.s32 %v1745, %v1749
      %v1751 = vadd.s32 %v1750, 536870912
      %v1752 = vshrl.u32 %v1751, 30
      %v1753 = vshll.u32 %v1752, 30
      %v1754 = vsub.s32 %v1750, %v1753
      %vm1755 = vcmp.lt.s32.totalorder %v1754, 0
      %v1756 = vsub.s32 0, %v1754
      %v1757 = vsel %vm1755, %v1756, %v1754
      %v1758 = vclz %v1757
      %v1759 = vsub.s32 %v1758, 2
      %vm1760 = vcmp.gt.s32.totalorder 0, %v1759
      %v1761 = vsel %vm1760, 0, %v1759
      %v1762 = vsub.s32 32, %v1761
      %v1763 = vshll.u32 %v1754, %v1761
      %v1764 = vshrl.u32 %v1746, %v1762
      %v1765 = vor.u32 %v1763, %v1764
      %v1766 = vsub.s32 4294967266, %v1761
      %v1767 = vadd.s32 %v1766, 127
      %v1768 = vshll.u32 %v1767, 23
      %v1769 = vor.u32 4788187, %v1768
      %v1770 = vand.u32 2147483647, %v1769
      %v1772 = vcvt.s32.f32 %v1765
      %v1773 = vmul.f32 %v1772, %v1770
      %v1774 = vxor.u32 %v1773, 2147483648
      %v1775 = vsel %vm1692, %v1774, %v1773
      %v1776 = vsub.s32 4, %v1752
      %v1777 = vsel %vm1692, %v1776, %v1752
      %v1778 = vsel %vm1691, %v335, %v1775
      %v1779 = vsel %vm1691, 0, %v1777
      %v1780 = vcosq.f32.pop %v1778
      %v1781 = vsinq.f32.pop %v1778
      %vm1782 = vweird.f32 %v335
      %v1783 = vadd.s32 %v1779, 3
      %v1784 = vand.u32 %v1783, 3
      %vm1785 = vcmp.lt.s32.totalorder %v1784, 2
      %vm1786 = vcmp.eq.s32.totalorder %v1784, 0
      %v1787 = vxor.u32 %v1781, 2147483648
      %v1788 = vsel %vm1786, %v1780, %v1787
      %vm1789 = vcmp.eq.s32.totalorder %v1784, 2
      %v1790 = vxor.u32 %v1780, 2147483648
      %v1791 = vsel %vm1789, %v1790, %v1781
      %v1792 = vsel %vm1785, %v1788, %v1791
      %v1793 = vsel %vm1782, nan, %v1792
      %v1794 = vand.u32 2147483647, %v336
      %vm1795 = vcmp.le.f32.partialorder %v1794, 0.7853982
      %vm1796 = vcmp.lt.s32.totalorder %v336, 0
      %v1797 = vand.u32 %v336, 2139095040
      %v1798 = vshrl.u32 %v1797, 23
      %v1799 = vsub.s32 %v1798, 127
      %v1800 = vand.u32 2147483647, %v336
      %v1801 = vand.u32 %v1800, 8388607
      %v1802 = vor.u32 %v1801, 8388608
      %v1803 = vsub.s32 0, %v1802
      %v1804 = vadd.s32 %v1799, 1
      %vm1805 = vcmp.gt.s32.totalorder %v1804, 0
      %v1806 = vsel %vm1805, %v1804, 0
      %v1807 = vshrl.u32 %v1806, 5
      %v1808 = vand.u32 %v1806, 31
      %v1809 = vsub.s32 32, %v1808
      %v1810 = vshrl.u32 683565275, %v1809
      %v1811 = vshll.u32 683565275, %v1808
      %v1812 = vshrl.u32 2475754826, %v1809
      %v1813 = vor.u32 %v1811, %v1812
      %v1814 = vshll.u32 2475754826, %v1808
      %v1815 = vshrl.u32 2131351028, %v1809
      %v1816 = vor.u32 %v1814, %v1815
      %v1817 = vshll.u32 2131351028, %v1808
      %v1818 = vshrl.u32 2102212464, %v1809
      %v1819 = vor.u32 %v1817, %v1818
      %v1820 = vshll.u32 2102212464, %v1808
      %v1821 = vshrl.u32 920167782, %v1809
      %v1822 = vor.u32 %v1820, %v1821
      %v1823 = vshll.u32 920167782, %v1808
      %v1824 = vshrl.u32 1326507024, %v1809
      %v1825 = vor.u32 %v1823, %v1824
      %vm1826 = vcmp.lt.s32.totalorder %v1807, 1
      %vm1827 = vcmp.lt.s32.totalorder %v1807, 2
      %vm1828 = vcmp.lt.s32.totalorder %v1807, 3
      %vm1829 = vcmp.lt.s32.totalorder %v1807, 4
      %v1830 = vsel %vm1826, %v1810, %v1813
      %v1831 = vsel %vm1829, %v1819, 2102212464
      %v1832 = vsel %vm1828, %v1816, %v1831
      %v1833 = vsel %vm1827, %v1830, %v1832
      %v1834 = vsel %vm1826, %v1813, %v1816
      %v1835 = vsel %vm1829, %v1822, 920167782
      %v1836 = vsel %vm1828, %v1819, %v1835
      %v1837 = vsel %vm1827, %v1834, %v1836
      %v1838 = vsel %vm1826, %v1816, %v1819
      %v1839 = vsel %vm1829, %v1825, 1326507024
      %v1840 = vsel %vm1828, %v1822, %v1839
      %v1841 = vsel %vm1827, %v1838, %v1840
      %v1842 = vshll.u32 %v1802, 8
      %v1843 = vmul.u32.u64.compose %v1842, %v1841
      %v1844 = vextract.low.u32 %v1843
      %v1845 = vextract.high.u32 %v1843
      %v1846 = vmul.u32.u64.compose %v1842, %v1837
      %v1847 = vextract.low.u32 %v1846
      %v1848 = vextract.high.u32 %v1846
      %v1849 = vmul.u32 %v1842, %v1833
      %v1850 = vadd.s32 %v1845, %v1847
      %vm1851 = vc.u32 %v1845, %v1847
      %v1852 = vadd.s32 %v1848, 1
      %v1853 = vsel %vm1851, %v1852, %v1848
      %v1854 = vadd.s32 %v1849, %v1853
      %v1855 = vadd.s32 %v1854, 536870912
      %v1856 = vshrl.u32 %v1855, 30
      %v1857 = vshll.u32 %v1856, 30
      %v1858 = vsub.s32 %v1854, %v1857
      %vm1859 = vcmp.lt.s32.totalorder %v1858, 0
      %v1860 = vsub.s32 0, %v1858
      %v1861 = vsel %vm1859, %v1860, %v1858
      %v1862 = vclz %v1861
      %v1863 = vsub.s32 %v1862, 2
      %vm1864 = vcmp.gt.s32.totalorder 0, %v1863
      %v1865 = vsel %vm1864, 0, %v1863
      %v1866 = vsub.s32 32, %v1865
      %v1867 = vshll.u32 %v1858, %v1865
      %v1868 = vshrl.u32 %v1850, %v1866
      %v1869 = vor.u32 %v1867, %v1868
      %v1870 = vsub.s32 4294967266, %v1865
      %v1871 = vadd.s32 %v1870, 127
      %v1872 = vshll.u32 %v1871, 23
      %v1873 = vor.u32 4788187, %v1872
      %v1874 = vand.u32 2147483647, %v1873
      %v1876 = vcvt.s32.f32 %v1869
      %v1877 = vmul.f32 %v1876, %v1874
      %v1878 = vxor.u32 %v1877, 2147483648
      %v1879 = vsel %vm1796, %v1878, %v1877
      %v1880 = vsub.s32 4, %v1856
      %v1881 = vsel %vm1796, %v1880, %v1856
      %v1882 = vsel %vm1795, %v336, %v1879
      %v1883 = vsel %vm1795, 0, %v1881
      %v1884 = vcosq.f32.pop %v1882
      %v1885 = vsinq.f32.pop %v1882
      %vm1886 = vweird.f32 %v336
      %v1887 = vadd.s32 %v1883, 3
      %v1888 = vand.u32 %v1887, 3
      %vm1889 = vcmp.lt.s32.totalorder %v1888, 2
      %vm1890 = vcmp.eq.s32.totalorder %v1888, 0
      %v1891 = vxor.u32 %v1885, 2147483648
      %v1892 = vsel %vm1890, %v1884, %v1891
      %vm1893 = vcmp.eq.s32.totalorder %v1888, 2
      %v1894 = vxor.u32 %v1884, 2147483648
      %v1895 = vsel %vm1893, %v1894, %v1885
      %v1896 = vsel %vm1889, %v1892, %v1895
      %v1897 = vsel %vm1886, nan, %v1896
      %v1898 = vand.u32 2147483647, %v337
      %vm1899 = vcmp.le.f32.partialorder %v1898, 0.7853982
      %vm1900 = vcmp.lt.s32.totalorder %v337, 0
      %v1901 = vand.u32 %v337, 2139095040
      %v1902 = vshrl.u32 %v1901, 23
      %v1903 = vsub.s32 %v1902, 127
      %v1904 = vand.u32 2147483647, %v337
      %v1905 = vand.u32 %v1904, 8388607
      %v1906 = vor.u32 %v1905, 8388608
      %v1907 = vsub.s32 0, %v1906
      %v1908 = vadd.s32 %v1903, 1
      %vm1909 = vcmp.gt.s32.totalorder %v1908, 0
      %v1910 = vsel %vm1909, %v1908, 0
      %v1911 = vshrl.u32 %v1910, 5
      %v1912 = vand.u32 %v1910, 31
      %v1913 = vsub.s32 32, %v1912
      %v1914 = vshrl.u32 683565275, %v1913
      %v1915 = vshll.u32 683565275, %v1912
      %v1916 = vshrl.u32 2475754826, %v1913
      %v1917 = vor.u32 %v1915, %v1916
      %v1918 = vshll.u32 2475754826, %v1912
      %v1919 = vshrl.u32 2131351028, %v1913
      %v1920 = vor.u32 %v1918, %v1919
      %v1921 = vshll.u32 2131351028, %v1912
      %v1922 = vshrl.u32 2102212464, %v1913
      %v1923 = vor.u32 %v1921, %v1922
      %v1924 = vshll.u32 2102212464, %v1912
      %v1925 = vshrl.u32 920167782, %v1913
      %v1926 = vor.u32 %v1924, %v1925
      %v1927 = vshll.u32 920167782, %v1912
      %v1928 = vshrl.u32 1326507024, %v1913
      %v1929 = vor.u32 %v1927, %v1928
      %vm1930 = vcmp.lt.s32.totalorder %v1911, 1
      %vm1931 = vcmp.lt.s32.totalorder %v1911, 2
      %vm1932 = vcmp.lt.s32.totalorder %v1911, 3
      %vm1933 = vcmp.lt.s32.totalorder %v1911, 4
      %v1934 = vsel %vm1930, %v1914, %v1917
      %v1935 = vsel %vm1933, %v1923, 2102212464
      %v1936 = vsel %vm1932, %v1920, %v1935
      %v1937 = vsel %vm1931, %v1934, %v1936
      %v1938 = vsel %vm1930, %v1917, %v1920
      %v1939 = vsel %vm1933, %v1926, 920167782
      %v1940 = vsel %vm1932, %v1923, %v1939
      %v1941 = vsel %vm1931, %v1938, %v1940
      %v1942 = vsel %vm1930, %v1920, %v1923
      %v1943 = vsel %vm1933, %v1929, 1326507024
      %v1944 = vsel %vm1932, %v1926, %v1943
      %v1945 = vsel %vm1931, %v1942, %v1944
      %v1946 = vshll.u32 %v1906, 8
      %v1947 = vmul.u32.u64.compose %v1946, %v1945
      %v1948 = vextract.low.u32 %v1947
      %v1949 = vextract.high.u32 %v1947
      %v1950 = vmul.u32.u64.compose %v1946, %v1941
      %v1951 = vextract.low.u32 %v1950
      %v1952 = vextract.high.u32 %v1950
      %v1953 = vmul.u32 %v1946, %v1937
      %v1954 = vadd.s32 %v1949, %v1951
      %vm1955 = vc.u32 %v1949, %v1951
      %v1956 = vadd.s32 %v1952, 1
      %v1957 = vsel %vm1955, %v1956, %v1952
      %v1958 = vadd.s32 %v1953, %v1957
      %v1959 = vadd.s32 %v1958, 536870912
      %v1960 = vshrl.u32 %v1959, 30
      %v1961 = vshll.u32 %v1960, 30
      %v1962 = vsub.s32 %v1958, %v1961
      %vm1963 = vcmp.lt.s32.totalorder %v1962, 0
      %v1964 = vsub.s32 0, %v1962
      %v1965 = vsel %vm1963, %v1964, %v1962
      %v1966 = vclz %v1965
      %v1967 = vsub.s32 %v1966, 2
      %vm1968 = vcmp.gt.s32.totalorder 0, %v1967
      %v1969 = vsel %vm1968, 0, %v1967
      %v1970 = vsub.s32 32, %v1969
      %v1971 = vshll.u32 %v1962, %v1969
      %v1972 = vshrl.u32 %v1954, %v1970
      %v1973 = vor.u32 %v1971, %v1972
      %v1974 = vsub.s32 4294967266, %v1969
      %v1975 = vadd.s32 %v1974, 127
      %v1976 = vshll.u32 %v1975, 23
      %v1977 = vor.u32 4788187, %v1976
      %v1978 = vand.u32 2147483647, %v1977
      %v1980 = vcvt.s32.f32 %v1973
      %v1981 = vmul.f32 %v1980, %v1978
      %v1982 = vxor.u32 %v1981, 2147483648
      %v1983 = vsel %vm1900, %v1982, %v1981
      %v1984 = vsub.s32 4, %v1960
      %v1985 = vsel %vm1900, %v1984, %v1960
      %v1986 = vsel %vm1899, %v337, %v1983
      %v1987 = vsel %vm1899, 0, %v1985
      %v1988 = vcosq.f32.pop %v1986
      %v1989 = vsinq.f32.pop %v1986
      %vm1990 = vweird.f32 %v337
      %v1991 = vadd.s32 %v1987, 3
      %v1992 = vand.u32 %v1991, 3
      %vm1993 = vcmp.lt.s32.totalorder %v1992, 2
      %vm1994 = vcmp.eq.s32.totalorder %v1992, 0
      %v1995 = vxor.u32 %v1989, 2147483648
      %v1996 = vsel %vm1994, %v1988, %v1995
      %vm1997 = vcmp.eq.s32.totalorder %v1992, 2
      %v1998 = vxor.u32 %v1988, 2147483648
      %v1999 = vsel %vm1997, %v1998, %v1989
      %v2000 = vsel %vm1993, %v1996, %v1999
      %v2001 = vsel %vm1990, nan, %v2000
      %v2003 = vlaneseq
      %v2004 = vshrl.u32 %v2003, 7
      %v2005 = vsub.s32 0, %v2004
      %v2006 = vrot.slane %v268, %v2005
      %v2007 = vlaneseq
      %v2008 = vshrl.u32 %v2007, 7
      %v2009 = vsub.s32 1, %v2008
      %v2010 = vrot.slane %v268, %v2009
      %v2011 = vlaneseq
      %v2012 = vshrl.u32 %v2011, 7
      %v2013 = vsub.s32 2, %v2012
      %v2014 = vrot.slane %v268, %v2013
      %v2015 = vlaneseq
      %v2016 = vshrl.u32 %v2015, 7
      %v2017 = vsub.s32 3, %v2016
      %v2018 = vrot.slane %v268, %v2017
      %v2019 = vlaneseq
      %v2020 = vshrl.u32 %v2019, 7
      %v2021 = vsub.s32 4, %v2020
      %v2022 = vrot.slane %v268, %v2021
      %v2023 = vlaneseq
      %v2024 = vshrl.u32 %v2023, 7
      %v2025 = vsub.s32 5, %v2024
      %v2026 = vrot.slane %v268, %v2025
      %v2027 = vlaneseq
      %v2028 = vshrl.u32 %v2027, 7
      %v2029 = vsub.s32 6, %v2028
      %v2030 = vrot.slane %v268, %v2029
      %v2031 = vlaneseq
      %v2032 = vshrl.u32 %v2031, 7
      %v2033 = vsub.s32 7, %v2032
      %v2034 = vrot.slane %v268, %v2033
      %v2043 = vmul.f32 %v2006, %v441
      %v2044 = vmul.f32 %v2010, %v545
      %v2045 = vmul.f32 %v2014, %v649
      %v2046 = vmul.f32 %v2018, %v753
      %v2047 = vmul.f32 %v2022, %v857
      %v2048 = vmul.f32 %v2026, %v961
      %v2049 = vmul.f32 %v2030, %v1065
      %v2050 = vmul.f32 %v2034, %v1169
      %v2051 = vmul.f32 %v2006, %v1273
      %v2052 = vmul.f32 %v2010, %v1377
      %v2053 = vmul.f32 %v2014, %v1481
      %v2054 = vmul.f32 %v2018, %v1585
      %v2055 = vmul.f32 %v2022, %v1689
      %v2056 = vmul.f32 %v2026, %v1793
      %v2057 = vmul.f32 %v2030, %v1897
      %v2058 = vmul.f32 %v2034, %v2001
      %v2059 = vld [vmem:[%s2] sm:$0xff]
      %v2060 = vld [vmem:[%s2 + $0x8] sm:$0xff]
      %v2061 = vld [vmem:[%s3] sm:$0xff]
      %v2062 = vld [vmem:[%s3 + $0x8] sm:$0xff]
      %2064 = vset.pattern.permute.xlu0 0
      %2065 = vperm.xlu0 %2064, %v2061
      %v2066 = vpop.permute.xlu0 %2065
      %2069 = vset.pattern.permute.xlu0 0
      %2070 = vperm.xlu0 %2069, %v2062
      %v2071 = vpop.permute.xlu0 %2070
      %vm2073 = vcmask 80896
      %v2075 = vsel %vm2073, %v2059, 0
      %v2078 = vsel %vm2073, %v2060, 0
      %vm2080 = vcmask 1041408
      %v2082 = vsel %vm2080, %v2051, 0
      %v2085 = vsel %vm2080, %v2052, 0
      %v2088 = vsel %vm2080, %v2053, 0
      %v2091 = vsel %vm2080, %v2054, 0
      %v2094 = vsel %vm2080, %v2055, 0
      %v2097 = vsel %vm2080, %v2056, 0
      %v2100 = vsel %vm2080, %v2057, 0
      %v2103 = vsel %vm2080, %v2058, 0
      %2105 = vmatprep.subr.mxu0 %v2044
      %2106 = vmatpush1.msra.mxu0 %v2043
      %2107 = vmatprep.subr.mxu0 %v2085
      %2108 = vmatpush1.msra.mxu0 %v2082
      %2109 = vmatprep.subr.mxu0 0.0
      %2110 = vmatpush1.msra.mxu0 0.0
      %2111 = vmatprep.subr.mxu0 0.0
      %2112 = vmatpush1.msra.mxu0 0.0
      %2113 = vmatprep.subr.mxu0 0.0
      %2114 = vmatpush1.msra.mxu0 0.0
      %2115 = vmatprep.subr.mxu0 0.0
      %2116 = vmatpush1.msra.mxu0 0.0
      %2117 = vmatprep.subr.mxu0 0.0
      %2118 = vmatpush1.msra.mxu0 0.0
      %2119 = vmatprep.subr.mxu0 0.0
      %2120 = vmatpush1.msra.mxu0 0.0
      %2121 = vmatprep.subr.mxu0 0.0
      %2122 = vmatpush1.msra.mxu0 0.0
      %2123 = vmatprep.subr.mxu0 0.0
      %2124 = vmatpush1.msra.mxu0 0.0
      %2125 = vmatprep.subr.mxu0 0.0
      %2126 = vmatpush1.msra.mxu0 0.0
      %2127 = vmatprep.subr.mxu0 0.0
      %2128 = vmatpush1.msra.mxu0 0.0
      %2129 = vmatprep.subr.mxu0 0.0
      %2130 = vmatpush1.msra.mxu0 0.0
      %2131 = vmatprep.subr.mxu0 0.0
      %2132 = vmatpush1.msra.mxu0 0.0
      %2133 = vmatprep.subr.mxu0 0.0
      %2134 = vmatpush1.msra.mxu0 0.0
      %2135 = vmatprep.subr.mxu0 0.0
      %2136 = vmatpush1.msra.mxu0 0.0
      %2137 = vmatprep.subr.mxu0 0.0
      %2138 = vmatpush1.msra.mxu0 0.0
      %2139 = vmatprep.subr.mxu0 0.0
      %2140 = vmatpush1.msra.mxu0 0.0
      %2141 = vmatprep.subr.mxu0 0.0
      %2142 = vmatpush1.msra.mxu0 0.0
      %2143 = vmatprep.subr.mxu0 0.0
      %2144 = vmatpush1.msra.mxu0 0.0
      %2145 = vmatprep.subr.mxu0 0.0
      %2146 = vmatpush1.msra.mxu0 0.0
      %2147 = vmatprep.subr.mxu0 0.0
      %2148 = vmatpush1.msra.mxu0 0.0
      %2149 = vmatprep.subr.mxu0 0.0
      %2150 = vmatpush1.msra.mxu0 0.0
      %2151 = vmatprep.subr.mxu0 0.0
      %2152 = vmatpush1.msra.mxu0 0.0
      %2153 = vmatprep.subr.mxu0 0.0
      %2154 = vmatpush1.msra.mxu0 0.0
      %2155 = vmatprep.subr.mxu0 0.0
      %2156 = vmatpush1.msra.mxu0 0.0
      %2157 = vmatprep.subr.mxu0 0.0
      %2158 = vmatpush1.msra.mxu0 0.0
      %2159 = vmatprep.subr.mxu0 0.0
      %2160 = vmatpush1.msra.mxu0 0.0
      %2161 = vmatprep.subr.mxu0 0.0
      %2162 = vmatpush1.msra.mxu0 0.0
      %2163 = vmatprep.subr.mxu0 0.0
      %2164 = vmatpush1.msra.mxu0 0.0
      %2165 = vmatprep.subr.mxu0 0.0
      %2166 = vmatpush1.msra.mxu0 0.0
      %2167 = vmatprep.subr.mxu0 0.0
      %2168 = vmatpush1.msra.mxu0 0.0
      %2169 = vmatprep.mubr.f32.mxu0 0.0
      %2170 = vmatmul.mubr.f32.gmra.mrb[0].mxu0 %v2075
      %v2171 = vpop.f32.mrb[0].mxu0
      %v2172 = vadd.f32 %v2066, %v2171
      %v2173 = vpop.f32.mrb[0].mxu0
      %v2174 = vadd.f32 %v2066, %v2173
      %2175 = vmatprep.mubr.f32.mxu0 0.0
      %2176 = vmatmul.mubr.f32.gmra.mrb[0].mxu0 %v2078
      %v2177 = vpop.f32.mrb[0].mxu0
      %v2178 = vadd.f32 %v2071, %v2177
      %v2179 = vpop.f32.mrb[0].mxu0
      %v2180 = vadd.f32 %v2071, %v2179
      %2181 = vdwg.mxu0
      %2182 = vmatprep.subr.mxu0 %v2046
      %2183 = vmatpush1.msra.mxu0 %v2045
      %2184 = vmatprep.subr.mxu0 %v2091
      %2185 = vmatpush1.msra.mxu0 %v2088
      %2186 = vmatprep.subr.mxu0 0.0
      %2187 = vmatpush1.msra.mxu0 0.0
      %2188 = vmatprep.subr.mxu0 0.0
      %2189 = vmatpush1.msra.mxu0 0.0
      %2190 = vmatprep.subr.mxu0 0.0
      %2191 = vmatpush1.msra.mxu0 0.0
      %2192 = vmatprep.subr.mxu0 0.0
      %2193 = vmatpush1.msra.mxu0 0.0
      %2194 = vmatprep.subr.mxu0 0.0
      %2195 = vmatpush1.msra.mxu0 0.0
      %2196 = vmatprep.subr.mxu0 0.0
      %2197 = vmatpush1.msra.mxu0 0.0
      %2198 = vmatprep.subr.mxu0 0.0
      %2199 = vmatpush1.msra.mxu0 0.0
      %2200 = vmatprep.subr.mxu0 0.0
      %2201 = vmatpush1.msra.mxu0 0.0
      %2202 = vmatprep.subr.mxu0 0.0
      %2203 = vmatpush1.msra.mxu0 0.0
      %2204 = vmatprep.subr.mxu0 0.0
      %2205 = vmatpush1.msra.mxu0 0.0
      %2206 = vmatprep.subr.mxu0 0.0
      %2207 = vmatpush1.msra.mxu0 0.0
      %2208 = vmatprep.subr.mxu0 0.0
      %2209 = vmatpush1.msra.mxu0 0.0
      %2210 = vmatprep.subr.mxu0 0.0
      %2211 = vmatpush1.msra.mxu0 0.0
      %2212 = vmatprep.subr.mxu0 0.0
      %2213 = vmatpush1.msra.mxu0 0.0
      %2214 = vmatprep.subr.mxu0 0.0
      %2215 = vmatpush1.msra.mxu0 0.0
      %2216 = vmatprep.subr.mxu0 0.0
      %2217 = vmatpush1.msra.mxu0 0.0
      %2218 = vmatprep.subr.mxu0 0.0
      %2219 = vmatpush1.msra.mxu0 0.0
      %2220 = vmatprep.subr.mxu0 0.0
      %2221 = vmatpush1.msra.mxu0 0.0
      %2222 = vmatprep.subr.mxu0 0.0
      %2223 = vmatpush1.msra.mxu0 0.0
      %2224 = vmatprep.subr.mxu0 0.0
      %2225 = vmatpush1.msra.mxu0 0.0
      %2226 = vmatprep.subr.mxu0 0.0
      %2227 = vmatpush1.msra.mxu0 0.0
      %2228 = vmatprep.subr.mxu0 0.0
      %2229 = vmatpush1.msra.mxu0 0.0
      %2230 = vmatprep.subr.mxu0 0.0
      %2231 = vmatpush1.msra.mxu0 0.0
      %2232 = vmatprep.subr.mxu0 0.0
      %2233 = vmatpush1.msra.mxu0 0.0
      %2234 = vmatprep.subr.mxu0 0.0
      %2235 = vmatpush1.msra.mxu0 0.0
      %2236 = vmatprep.subr.mxu0 0.0
      %2237 = vmatpush1.msra.mxu0 0.0
      %2238 = vmatprep.subr.mxu0 0.0
      %2239 = vmatpush1.msra.mxu0 0.0
      %2240 = vmatprep.subr.mxu0 0.0
      %2241 = vmatpush1.msra.mxu0 0.0
      %2242 = vmatprep.subr.mxu0 0.0
      %2243 = vmatpush1.msra.mxu0 0.0
      %2244 = vmatprep.subr.mxu0 0.0
      %2245 = vmatpush1.msra.mxu0 0.0
      %2246 = vmatprep.mubr.f32.mxu0 0.0
      %2247 = vmatmul.mubr.f32.gmra.mrb[0].mxu0 %v2075
      %v2248 = vpop.f32.mrb[0].mxu0
      %v2249 = vadd.f32 %v2066, %v2248
      %v2250 = vpop.f32.mrb[0].mxu0
      %v2251 = vadd.f32 %v2066, %v2250
      %2252 = vmatprep.mubr.f32.mxu0 0.0
      %2253 = vmatmul.mubr.f32.gmra.mrb[0].mxu0 %v2078
      %v2254 = vpop.f32.mrb[0].mxu0
      %v2255 = vadd.f32 %v2071, %v2254
      %v2256 = vpop.f32.mrb[0].mxu0
      %v2257 = vadd.f32 %v2071, %v2256
      %2258 = vdwg.mxu0
      %2259 = vmatprep.subr.mxu0 %v2048
      %2260 = vmatpush1.msra.mxu0 %v2047
      %2261 = vmatprep.subr.mxu0 %v2097
      %2262 = vmatpush1.msra.mxu0 %v2094
      %2263 = vmatprep.subr.mxu0 0.0
      %2264 = vmatpush1.msra.mxu0 0.0
      %2265 = vmatprep.subr.mxu0 0.0
      %2266 = vmatpush1.msra.mxu0 0.0
      %2267 = vmatprep.subr.mxu0 0.0
      %2268 = vmatpush1.msra.mxu0 0.0
      %2269 = vmatprep.subr.mxu0 0.0
      %2270 = vmatpush1.msra.mxu0 0.0
      %2271 = vmatprep.subr.mxu0 0.0
      %2272 = vmatpush1.msra.mxu0 0.0
      %2273 = vmatprep.subr.mxu0 0.0
      %2274 = vmatpush1.msra.mxu0 0.0
      %2275 = vmatprep.subr.mxu0 0.0
      %2276 = vmatpush1.msra.mxu0 0.0
      %2277 = vmatprep.subr.mxu0 0.0
      %2278 = vmatpush1.msra.mxu0 0.0
      %2279 = vmatprep.subr.mxu0 0.0
      %2280 = vmatpush1.msra.mxu0 0.0
      %2281 = vmatprep.subr.mxu0 0.0
      %2282 = vmatpush1.msra.mxu0 0.0
      %2283 = vmatprep.subr.mxu0 0.0
      %2284 = vmatpush1.msra.mxu0 0.0
      %2285 = vmatprep.subr.mxu0 0.0
      %2286 = vmatpush1.msra.mxu0 0.0
      %2287 = vmatprep.subr.mxu0 0.0
      %2288 = vmatpush1.msra.mxu0 0.0
      %2289 = vmatprep.subr.mxu0 0.0
      %2290 = vmatpush1.msra.mxu0 0.0
      %2291 = vmatprep.subr.mxu0 0.0
      %2292 = vmatpush1.msra.mxu0 0.0
      %2293 = vmatprep.subr.mxu0 0.0
      %2294 = vmatpush1.msra.mxu0 0.0
      %2295 = vmatprep.subr.mxu0 0.0
      %2296 = vmatpush1.msra.mxu0 0.0
      %2297 = vmatprep.subr.mxu0 0.0
      %2298 = vmatpush1.msra.mxu0 0.0
      %2299 = vmatprep.subr.mxu0 0.0
      %2300 = vmatpush1.msra.mxu0 0.0
      %2301 = vmatprep.subr.mxu0 0.0
      %2302 = vmatpush1.msra.mxu0 0.0
      %2303 = vmatprep.subr.mxu0 0.0
      %2304 = vmatpush1.msra.mxu0 0.0
      %2305 = vmatprep.subr.mxu0 0.0
      %2306 = vmatpush1.msra.mxu0 0.0
      %2307 = vmatprep.subr.mxu0 0.0
      %2308 = vmatpush1.msra.mxu0 0.0
      %2309 = vmatprep.subr.mxu0 0.0
      %2310 = vmatpush1.msra.mxu0 0.0
      %2311 = vmatprep.subr.mxu0 0.0
      %2312 = vmatpush1.msra.mxu0 0.0
      %2313 = vmatprep.subr.mxu0 0.0
      %2314 = vmatpush1.msra.mxu0 0.0
      %2315 = vmatprep.subr.mxu0 0.0
      %2316 = vmatpush1.msra.mxu0 0.0
      %2317 = vmatprep.subr.mxu0 0.0
      %2318 = vmatpush1.msra.mxu0 0.0
      %2319 = vmatprep.subr.mxu0 0.0
      %2320 = vmatpush1.msra.mxu0 0.0
      %2321 = vmatprep.subr.mxu0 0.0
      %2322 = vmatpush1.msra.mxu0 0.0
      %2323 = vmatprep.mubr.f32.mxu0 0.0
      %2324 = vmatmul.mubr.f32.gmra.mrb[0].mxu0 %v2075
      %v2325 = vpop.f32.mrb[0].mxu0
      %v2326 = vadd.f32 %v2066, %v2325
      %v2327 = vpop.f32.mrb[0].mxu0
      %v2328 = vadd.f32 %v2066, %v2327
      %2329 = vmatprep.mubr.f32.mxu0 0.0
      %2330 = vmatmul.mubr.f32.gmra.mrb[0].mxu0 %v2078
      %v2331 = vpop.f32.mrb[0].mxu0
      %v2332 = vadd.f32 %v2071, %v2331
      %v2333 = vpop.f32.mrb[0].mxu0
      %v2334 = vadd.f32 %v2071, %v2333
      %2335 = vdwg.mxu0
      %2336 = vmatprep.subr.mxu0 %v2050
      %2337 = vmatpush1.msra.mxu0 %v2049
      %2338 = vmatprep.subr.mxu0 %v2103
      %2339 = vmatpush1.msra.mxu0 %v2100
      %2340 = vmatprep.subr.mxu0 0.0
      %2341 = vmatpush1.msra.mxu0 0.0
      %2342 = vmatprep.subr.mxu0 0.0
      %2343 = vmatpush1.msra.mxu0 0.0
      %2344 = vmatprep.subr.mxu0 0.0
      %2345 = vmatpush1.msra.mxu0 0.0
      %2346 = vmatprep.subr.mxu0 0.0
      %2347 = vmatpush1.msra.mxu0 0.0
      %2348 = vmatprep.subr.mxu0 0.0
      %2349 = vmatpush1.msra.mxu0 0.0
      %2350 = vmatprep.subr.mxu0 0.0
      %2351 = vmatpush1.msra.mxu0 0.0
      %2352 = vmatprep.subr.mxu0 0.0
      %2353 = vmatpush1.msra.mxu0 0.0
      %2354 = vmatprep.subr.mxu0 0.0
      %2355 = vmatpush1.msra.mxu0 0.0
      %2356 = vmatprep.subr.mxu0 0.0
      %2357 = vmatpush1.msra.mxu0 0.0
      %2358 = vmatprep.subr.mxu0 0.0
      %2359 = vmatpush1.msra.mxu0 0.0
      %2360 = vmatprep.subr.mxu0 0.0
      %2361 = vmatpush1.msra.mxu0 0.0
      %2362 = vmatprep.subr.mxu0 0.0
      %2363 = vmatpush1.msra.mxu0 0.0
      %2364 = vmatprep.subr.mxu0 0.0
      %2365 = vmatpush1.msra.mxu0 0.0
      %2366 = vmatprep.subr.mxu0 0.0
      %2367 = vmatpush1.msra.mxu0 0.0
      %2368 = vmatprep.subr.mxu0 0.0
      %2369 = vmatpush1.msra.mxu0 0.0
      %2370 = vmatprep.subr.mxu0 0.0
      %2371 = vmatpush1.msra.mxu0 0.0
      %2372 = vmatprep.subr.mxu0 0.0
      %2373 = vmatpush1.msra.mxu0 0.0
      %2374 = vmatprep.subr.mxu0 0.0
      %2375 = vmatpush1.msra.mxu0 0.0
      %2376 = vmatprep.subr.mxu0 0.0
      %2377 = vmatpush1.msra.mxu0 0.0
      %2378 = vmatprep.subr.mxu0 0.0
      %2379 = vmatpush1.msra.mxu0 0.0
      %2380 = vmatprep.subr.mxu0 0.0
      %2381 = vmatpush1.msra.mxu0 0.0
      %2382 = vmatprep.subr.mxu0 0.0
      %2383 = vmatpush1.msra.mxu0 0.0
      %2384 = vmatprep.subr.mxu0 0.0
      %2385 = vmatpush1.msra.mxu0 0.0
      %2386 = vmatprep.subr.mxu0 0.0
      %2387 = vmatpush1.msra.mxu0 0.0
      %2388 = vmatprep.subr.mxu0 0.0
      %2389 = vmatpush1.msra.mxu0 0.0
      %2390 = vmatprep.subr.mxu0 0.0
      %2391 = vmatpush1.msra.mxu0 0.0
      %2392 = vmatprep.subr.mxu0 0.0
      %2393 = vmatpush1.msra.mxu0 0.0
      %2394 = vmatprep.subr.mxu0 0.0
      %2395 = vmatpush1.msra.mxu0 0.0
      %2396 = vmatprep.subr.mxu0 0.0
      %2397 = vmatpush1.msra.mxu0 0.0
      %2398 = vmatprep.subr.mxu0 0.0
      %2399 = vmatpush1.msra.mxu0 0.0
      %2400 = vmatprep.mubr.f32.mxu0 0.0
      %2401 = vmatmul.mubr.f32.gmra.mrb[0].mxu0 %v2075
      %v2402 = vpop.f32.mrb[0].mxu0
      %v2403 = vadd.f32 %v2066, %v2402
      %v2404 = vpop.f32.mrb[0].mxu0
      %v2405 = vadd.f32 %v2066, %v2404
      %2406 = vmatprep.mubr.f32.mxu0 0.0
      %2407 = vmatmul.mubr.f32.gmra.mrb[0].mxu0 %v2078
      %v2408 = vpop.f32.mrb[0].mxu0
      %v2409 = vadd.f32 %v2071, %v2408
      %v2410 = vpop.f32.mrb[0].mxu0
      %v2411 = vadd.f32 %v2071, %v2410
      %2412 = vdwg.mxu0
      %v2413 = vmul.f32 %v2172, 0.5
      %v2414 = vmul.f32 %v2174, 0.5
      %v2415 = vmul.f32 %v2249, 0.5
      %v2416 = vmul.f32 %v2251, 0.5
      %v2417 = vmul.f32 %v2326, 0.5
      %v2418 = vmul.f32 %v2328, 0.5
      %v2419 = vmul.f32 %v2403, 0.5
      %v2420 = vmul.f32 %v2405, 0.5
      %v2421 = vmul.f32 %v2178, 0.5
      %v2422 = vmul.f32 %v2180, 0.5
      %v2423 = vmul.f32 %v2255, 0.5
      %v2424 = vmul.f32 %v2257, 0.5
      %v2425 = vmul.f32 %v2332, 0.5
      %v2426 = vmul.f32 %v2334, 0.5
      %v2427 = vmul.f32 %v2409, 0.5
      %v2428 = vmul.f32 %v2411, 0.5
      %v2429 = vtanh.pop %v2413
      %v2430 = vtanh.pop %v2414
      %v2431 = vtanh.pop %v2415
      %v2432 = vtanh.pop %v2416
      %v2433 = vtanh.pop %v2417
      %v2434 = vtanh.pop %v2418
      %v2435 = vtanh.pop %v2419
      %v2436 = vtanh.pop %v2420
      %v2437 = vtanh.pop %v2421
      %v2438 = vtanh.pop %v2422
      %v2439 = vtanh.pop %v2423
      %v2440 = vtanh.pop %v2424
      %v2441 = vtanh.pop %v2425
      %v2442 = vtanh.pop %v2426
      %v2443 = vtanh.pop %v2427
      %v2444 = vtanh.pop %v2428
      %v2445 = vadd.f32 %v2429, 1.0
      %v2446 = vadd.f32 %v2430, 1.0
      %v2447 = vadd.f32 %v2431, 1.0
      %v2448 = vadd.f32 %v2432, 1.0
      %v2449 = vadd.f32 %v2433, 1.0
      %v2450 = vadd.f32 %v2434, 1.0
      %v2451 = vadd.f32 %v2435, 1.0
      %v2452 = vadd.f32 %v2436, 1.0
      %v2453 = vadd.f32 %v2437, 1.0
      %v2454 = vadd.f32 %v2438, 1.0
      %v2455 = vadd.f32 %v2439, 1.0
      %v2456 = vadd.f32 %v2440, 1.0
      %v2457 = vadd.f32 %v2441, 1.0
      %v2458 = vadd.f32 %v2442, 1.0
      %v2459 = vadd.f32 %v2443, 1.0
      %v2460 = vadd.f32 %v2444, 1.0
      %v2461 = vmul.f32 %v2413, %v2445
      %v2462 = vmul.f32 %v2414, %v2446
      %v2463 = vmul.f32 %v2415, %v2447
      %v2464 = vmul.f32 %v2416, %v2448
      %v2465 = vmul.f32 %v2417, %v2449
      %v2466 = vmul.f32 %v2418, %v2450
      %v2467 = vmul.f32 %v2419, %v2451
      %v2468 = vmul.f32 %v2420, %v2452
      %v2469 = vmul.f32 %v2421, %v2453
      %v2470 = vmul.f32 %v2422, %v2454
      %v2471 = vmul.f32 %v2423, %v2455
      %v2472 = vmul.f32 %v2424, %v2456
      %v2473 = vmul.f32 %v2425, %v2457
      %v2474 = vmul.f32 %v2426, %v2458
      %v2475 = vmul.f32 %v2427, %v2459
      %v2476 = vmul.f32 %v2428, %v2460
      %v2477 = vld [vmem:[%s4] sm:$0xff]
      %v2478 = vld [vmem:[%s4 + $0x8] sm:$0xff]
      %v2479 = vld [vmem:[%s4 + $0x10] sm:$0xff]
      %v2480 = vld [vmem:[%s4 + $0x18] sm:$0xff]
      %v2481 = vld [vmem:[%s5] sm:$0xff]
      %v2482 = vld [vmem:[%s5 + $0x8] sm:$0xff]
      %v2483 = vld [vmem:[%s5 + $0x10] sm:$0xff]
      %v2484 = vld [vmem:[%s5 + $0x18] sm:$0xff]
      %2486 = vset.pattern.permute.xlu0 0
      %2487 = vperm.xlu0 %2486, %v2481
      %v2488 = vpop.permute.xlu0 %2487
      %2491 = vset.pattern.permute.xlu0 0
      %2492 = vperm.xlu0 %2491, %v2482
      %v2493 = vpop.permute.xlu0 %2492
      %2496 = vset.pattern.permute.xlu0 0
      %2497 = vperm.xlu0 %2496, %v2483
      %v2498 = vpop.permute.xlu0 %2497
      %2501 = vset.pattern.permute.xlu0 0
      %2502 = vperm.xlu0 %2501, %v2484
      %v2503 = vpop.permute.xlu0 %2502
      %vm2505 = vcmask 130048
      %v2507 = vsel %vm2505, %v2477, 0
      %v2510 = vsel %vm2505, %v2478, 0
      %v2513 = vsel %vm2505, %v2479, 0
      %v2516 = vsel %vm2505, %v2480, 0
      %2518 = vmatprep.subr.mxu0 %v2462
      %2519 = vmatpush1.msra.mxu0 %v2461
      %2520 = vmatprep.subr.mxu0 %v2470
      %2521 = vmatpush1.msra.mxu0 %v2469
      %2522 = vmatprep.subr.mxu0 0.0
      %2523 = vmatpush1.msra.mxu0 0.0
      %2524 = vmatprep.subr.mxu0 0.0
      %2525 = vmatpush1.msra.mxu0 0.0
      %2526 = vmatprep.subr.mxu0 0.0
      %2527 = vmatpush1.msra.mxu0 0.0
      %2528 = vmatprep.subr.mxu0 0.0
      %2529 = vmatpush1.msra.mxu0 0.0
      %2530 = vmatprep.subr.mxu0 0.0
      %2531 = vmatpush1.msra.mxu0 0.0
      %2532 = vmatprep.subr.mxu0 0.0
      %2533 = vmatpush1.msra.mxu0 0.0
      %2534 = vmatprep.subr.mxu0 0.0
      %2535 = vmatpush1.msra.mxu0 0.0
      %2536 = vmatprep.subr.mxu0 0.0
      %2537 = vmatpush1.msra.mxu0 0.0
      %2538 = vmatprep.subr.mxu0 0.0
      %2539 = vmatpush1.msra.mxu0 0.0
      %2540 = vmatprep.subr.mxu0 0.0
      %2541 = vmatpush1.msra.mxu0 0.0
      %2542 = vmatprep.subr.mxu0 0.0
      %2543 = vmatpush1.msra.mxu0 0.0
      %2544 = vmatprep.subr.mxu0 0.0
      %2545 = vmatpush1.msra.mxu0 0.0
      %2546 = vmatprep.subr.mxu0 0.0
      %2547 = vmatpush1.msra.mxu0 0.0
      %2548 = vmatprep.subr.mxu0 0.0
      %2549 = vmatpush1.msra.mxu0 0.0
      %2550 = vmatprep.subr.mxu0 0.0
      %2551 = vmatpush1.msra.mxu0 0.0
      %2552 = vmatprep.subr.mxu0 0.0
      %2553 = vmatpush1.msra.mxu0 0.0
      %2554 = vmatprep.subr.mxu0 0.0
      %2555 = vmatpush1.msra.mxu0 0.0
      %2556 = vmatprep.subr.mxu0 0.0
      %2557 = vmatpush1.msra.mxu0 0.0
      %2558 = vmatprep.subr.mxu0 0.0
      %2559 = vmatpush1.msra.mxu0 0.0
      %2560 = vmatprep.subr.mxu0 0.0
      %2561 = vmatpush1.msra.mxu0 0.0
      %2562 = vmatprep.subr.mxu0 0.0
      %2563 = vmatpush1.msra.mxu0 0.0
      %2564 = vmatprep.subr.mxu0 0.0
      %2565 = vmatpush1.msra.mxu0 0.0
      %2566 = vmatprep.subr.mxu0 0.0
      %2567 = vmatpush1.msra.mxu0 0.0
      %2568 = vmatprep.subr.mxu0 0.0
      %2569 = vmatpush1.msra.mxu0 0.0
      %2570 = vmatprep.subr.mxu0 0.0
      %2571 = vmatpush1.msra.mxu0 0.0
      %2572 = vmatprep.subr.mxu0 0.0
      %2573 = vmatpush1.msra.mxu0 0.0
      %2574 = vmatprep.subr.mxu0 0.0
      %2575 = vmatpush1.msra.mxu0 0.0
      %2576 = vmatprep.subr.mxu0 0.0
      %2577 = vmatpush1.msra.mxu0 0.0
      %2578 = vmatprep.subr.mxu0 0.0
      %2579 = vmatpush1.msra.mxu0 0.0
      %2580 = vmatprep.subr.mxu0 0.0
      %2581 = vmatpush1.msra.mxu0 0.0
      %2582 = vmatprep.mubr.f32.mxu0 0.0
      %2583 = vmatmul.mubr.f32.gmra.mrb[0].mxu0 %v2507
      %v2584 = vpop.f32.mrb[0].mxu0
      %v2585 = vadd.f32 %v2488, %v2584
      %v2586 = vpop.f32.mrb[0].mxu0
      %v2587 = vadd.f32 %v2488, %v2586
      %2588 = vmatprep.mubr.f32.mxu0 0.0
      %2589 = vmatmul.mubr.f32.gmra.mrb[0].mxu0 %v2510
      %v2590 = vpop.f32.mrb[0].mxu0
      %v2591 = vadd.f32 %v2493, %v2590
      %v2592 = vpop.f32.mrb[0].mxu0
      %v2593 = vadd.f32 %v2493, %v2592
      %2594 = vmatprep.mubr.f32.mxu0 0.0
      %2595 = vmatmul.mubr.f32.gmra.mrb[0].mxu0 %v2513
      %v2596 = vpop.f32.mrb[0].mxu0
      %v2597 = vadd.f32 %v2498, %v2596
      %v2598 = vpop.f32.mrb[0].mxu0
      %v2599 = vadd.f32 %v2498, %v2598
      %2600 = vmatprep.mubr.f32.mxu0 0.0
      %2601 = vmatmul.mubr.f32.gmra.mrb[0].mxu0 %v2516
      %v2602 = vpop.f32.mrb[0].mxu0
      %v2603 = vadd.f32 %v2503, %v2602
      %v2604 = vpop.f32.mrb[0].mxu0
      %v2605 = vadd.f32 %v2503, %v2604
      %2606 = vdwg.mxu0
      %2607 = vmatprep.subr.mxu0 %v2464
      %2608 = vmatpush1.msra.mxu0 %v2463
      %2609 = vmatprep.subr.mxu0 %v2472
      %2610 = vmatpush1.msra.mxu0 %v2471
      %2611 = vmatprep.subr.mxu0 0.0
      %2612 = vmatpush1.msra.mxu0 0.0
      %2613 = vmatprep.subr.mxu0 0.0
      %2614 = vmatpush1.msra.mxu0 0.0
      %2615 = vmatprep.subr.mxu0 0.0
      %2616 = vmatpush1.msra.mxu0 0.0
      %2617 = vmatprep.subr.mxu0 0.0
      %2618 = vmatpush1.msra.mxu0 0.0
      %2619 = vmatprep.subr.mxu0 0.0
      %2620 = vmatpush1.msra.mxu0 0.0
      %2621 = vmatprep.subr.mxu0 0.0
      %2622 = vmatpush1.msra.mxu0 0.0
      %2623 = vmatprep.subr.mxu0 0.0
      %2624 = vmatpush1.msra.mxu0 0.0
      %2625 = vmatprep.subr.mxu0 0.0
      %2626 = vmatpush1.msra.mxu0 0.0
      %2627 = vmatprep.subr.mxu0 0.0
      %2628 = vmatpush1.msra.mxu0 0.0
      %2629 = vmatprep.subr.mxu0 0.0
      %2630 = vmatpush1.msra.mxu0 0.0
      %2631 = vmatprep.subr.mxu0 0.0
      %2632 = vmatpush1.msra.mxu0 0.0
      %2633 = vmatprep.subr.mxu0 0.0
      %2634 = vmatpush1.msra.mxu0 0.0
      %2635 = vmatprep.subr.mxu0 0.0
      %2636 = vmatpush1.msra.mxu0 0.0
      %2637 = vmatprep.subr.mxu0 0.0
      %2638 = vmatpush1.msra.mxu0 0.0
      %2639 = vmatprep.subr.mxu0 0.0
      %2640 = vmatpush1.msra.mxu0 0.0
      %2641 = vmatprep.subr.mxu0 0.0
      %2642 = vmatpush1.msra.mxu0 0.0
      %2643 = vmatprep.subr.mxu0 0.0
      %2644 = vmatpush1.msra.mxu0 0.0
      %2645 = vmatprep.subr.mxu0 0.0
      %2646 = vmatpush1.msra.mxu0 0.0
      %2647 = vmatprep.subr.mxu0 0.0
      %2648 = vmatpush1.msra.mxu0 0.0
      %2649 = vmatprep.subr.mxu0 0.0
      %2650 = vmatpush1.msra.mxu0 0.0
      %2651 = vmatprep.subr.mxu0 0.0
      %2652 = vmatpush1.msra.mxu0 0.0
      %2653 = vmatprep.subr.mxu0 0.0
      %2654 = vmatpush1.msra.mxu0 0.0
      %2655 = vmatprep.subr.mxu0 0.0
      %2656 = vmatpush1.msra.mxu0 0.0
      %2657 = vmatprep.subr.mxu0 0.0
      %2658 = vmatpush1.msra.mxu0 0.0
      %2659 = vmatprep.subr.mxu0 0.0
      %2660 = vmatpush1.msra.mxu0 0.0
      %2661 = vmatprep.subr.mxu0 0.0
      %2662 = vmatpush1.msra.mxu0 0.0
      %2663 = vmatprep.subr.mxu0 0.0
      %2664 = vmatpush1.msra.mxu0 0.0
      %2665 = vmatprep.subr.mxu0 0.0
      %2666 = vmatpush1.msra.mxu0 0.0
      %2667 = vmatprep.subr.mxu0 0.0
      %2668 = vmatpush1.msra.mxu0 0.0
      %2669 = vmatprep.subr.mxu0 0.0
      %2670 = vmatpush1.msra.mxu0 0.0
      %2671 = vmatprep.mubr.f32.mxu0 0.0
      %2672 = vmatmul.mubr.f32.gmra.mrb[0].mxu0 %v2507
      %v2673 = vpop.f32.mrb[0].mxu0
      %v2674 = vadd.f32 %v2488, %v2673
      %v2675 = vpop.f32.mrb[0].mxu0
      %v2676 = vadd.f32 %v2488, %v2675
      %2677 = vmatprep.mubr.f32.mxu0 0.0
      %2678 = vmatmul.mubr.f32.gmra.mrb[0].mxu0 %v2510
      %v2679 = vpop.f32.mrb[0].mxu0
      %v2680 = vadd.f32 %v2493, %v2679
      %v2681 = vpop.f32.mrb[0].mxu0
      %v2682 = vadd.f32 %v2493, %v2681
      %2683 = vmatprep.mubr.f32.mxu0 0.0
      %2684 = vmatmul.mubr.f32.gmra.mrb[0].mxu0 %v2513
      %v2685 = vpop.f32.mrb[0].mxu0
      %v2686 = vadd.f32 %v2498, %v2685
      %v2687 = vpop.f32.mrb[0].mxu0
      %v2688 = vadd.f32 %v2498, %v2687
      %2689 = vmatprep.mubr.f32.mxu0 0.0
      %2690 = vmatmul.mubr.f32.gmra.mrb[0].mxu0 %v2516
      %v2691 = vpop.f32.mrb[0].mxu0
      %v2692 = vadd.f32 %v2503, %v2691
      %v2693 = vpop.f32.mrb[0].mxu0
      %v2694 = vadd.f32 %v2503, %v2693
      %2695 = vdwg.mxu0
      %2696 = vmatprep.subr.mxu0 %v2466
      %2697 = vmatpush1.msra.mxu0 %v2465
      %2698 = vmatprep.subr.mxu0 %v2474
      %2699 = vmatpush1.msra.mxu0 %v2473
      %2700 = vmatprep.subr.mxu0 0.0
      %2701 = vmatpush1.msra.mxu0 0.0
      %2702 = vmatprep.subr.mxu0 0.0
      %2703 = vmatpush1.msra.mxu0 0.0
      %2704 = vmatprep.subr.mxu0 0.0
      %2705 = vmatpush1.msra.mxu0 0.0
      %2706 = vmatprep.subr.mxu0 0.0
      %2707 = vmatpush1.msra.mxu0 0.0
      %2708 = vmatprep.subr.mxu0 0.0
      %2709 = vmatpush1.msra.mxu0 0.0
      %2710 = vmatprep.subr.mxu0 0.0
      %2711 = vmatpush1.msra.mxu0 0.0
      %2712 = vmatprep.subr.mxu0 0.0
      %2713 = vmatpush1.msra.mxu0 0.0
      %2714 = vmatprep.subr.mxu0 0.0
      %2715 = vmatpush1.msra.mxu0 0.0
      %2716 = vmatprep.subr.mxu0 0.0
      %2717 = vmatpush1.msra.mxu0 0.0
      %2718 = vmatprep.subr.mxu0 0.0
      %2719 = vmatpush1.msra.mxu0 0.0
      %2720 = vmatprep.subr.mxu0 0.0
      %2721 = vmatpush1.msra.mxu0 0.0
      %2722 = vmatprep.subr.mxu0 0.0
      %2723 = vmatpush1.msra.mxu0 0.0
      %2724 = vmatprep.subr.mxu0 0.0
      %2725 = vmatpush1.msra.mxu0 0.0
      %2726 = vmatprep.subr.mxu0 0.0
      %2727 = vmatpush1.msra.mxu0 0.0
      %2728 = vmatprep.subr.mxu0 0.0
      %2729 = vmatpush1.msra.mxu0 0.0
      %2730 = vmatprep.subr.mxu0 0.0
      %2731 = vmatpush1.msra.mxu0 0.0
      %2732 = vmatprep.subr.mxu0 0.0
      %2733 = vmatpush1.msra.mxu0 0.0
      %2734 = vmatprep.subr.mxu0 0.0
      %2735 = vmatpush1.msra.mxu0 0.0
      %2736 = vmatprep.subr.mxu0 0.0
      %2737 = vmatpush1.msra.mxu0 0.0
      %2738 = vmatprep.subr.mxu0 0.0
      %2739 = vmatpush1.msra.mxu0 0.0
      %2740 = vmatprep.subr.mxu0 0.0
      %2741 = vmatpush1.msra.mxu0 0.0
      %2742 = vmatprep.subr.mxu0 0.0
      %2743 = vmatpush1.msra.mxu0 0.0
      %2744 = vmatprep.subr.mxu0 0.0
      %2745 = vmatpush1.msra.mxu0 0.0
      %2746 = vmatprep.subr.mxu0 0.0
      %2747 = vmatpush1.msra.mxu0 0.0
      %2748 = vmatprep.subr.mxu0 0.0
      %2749 = vmatpush1.msra.mxu0 0.0
      %2750 = vmatprep.subr.mxu0 0.0
      %2751 = vmatpush1.msra.mxu0 0.0
      %2752 = vmatprep.subr.mxu0 0.0
      %2753 = vmatpush1.msra.mxu0 0.0
      %2754 = vmatprep.subr.mxu0 0.0
      %2755 = vmatpush1.msra.mxu0 0.0
      %2756 = vmatprep.subr.mxu0 0.0
      %2757 = vmatpush1.msra.mxu0 0.0
      %2758 = vmatprep.subr.mxu0 0.0
      %2759 = vmatpush1.msra.mxu0 0.0
      %2760 = vmatprep.mubr.f32.mxu0 0.0
      %2761 = vmatmul.mubr.f32.gmra.mrb[0].mxu0 %v2507
      %v2762 = vpop.f32.mrb[0].mxu0
      %v2763 = vadd.f32 %v2488, %v2762
      %v2764 = vpop.f32.mrb[0].mxu0
      %v2765 = vadd.f32 %v2488, %v2764
      %2766 = vmatprep.mubr.f32.mxu0 0.0
      %2767 = vmatmul.mubr.f32.gmra.mrb[0].mxu0 %v2510
      %v2768 = vpop.f32.mrb[0].mxu0
      %v2769 = vadd.f32 %v2493, %v2768
      %v2770 = vpop.f32.mrb[0].mxu0
      %v2771 = vadd.f32 %v2493, %v2770
      %2772 = vmatprep.mubr.f32.mxu0 0.0
      %2773 = vmatmul.mubr.f32.gmra.mrb[0].mxu0 %v2513
      %v2774 = vpop.f32.mrb[0].mxu0
      %v2775 = vadd.f32 %v2498, %v2774
      %v2776 = vpop.f32.mrb[0].mxu0
      %v2777 = vadd.f32 %v2498, %v2776
      %2778 = vmatprep.mubr.f32.mxu0 0.0
      %2779 = vmatmul.mubr.f32.gmra.mrb[0].mxu0 %v2516
      %v2780 = vpop.f32.mrb[0].mxu0
      %v2781 = vadd.f32 %v2503, %v2780
      %v2782 = vpop.f32.mrb[0].mxu0
      %v2783 = vadd.f32 %v2503, %v2782
      %2784 = vdwg.mxu0
      %2785 = vmatprep.subr.mxu0 %v2468
      %2786 = vmatpush1.msra.mxu0 %v2467
      %2787 = vmatprep.subr.mxu0 %v2476
      %2788 = vmatpush1.msra.mxu0 %v2475
      %2789 = vmatprep.subr.mxu0 0.0
      %2790 = vmatpush1.msra.mxu0 0.0
      %2791 = vmatprep.subr.mxu0 0.0
      %2792 = vmatpush1.msra.mxu0 0.0
      %2793 = vmatprep.subr.mxu0 0.0
      %2794 = vmatpush1.msra.mxu0 0.0
      %2795 = vmatprep.subr.mxu0 0.0
      %2796 = vmatpush1.msra.mxu0 0.0
      %2797 = vmatprep.subr.mxu0 0.0
      %2798 = vmatpush1.msra.mxu0 0.0
      %2799 = vmatprep.subr.mxu0 0.0
      %2800 = vmatpush1.msra.mxu0 0.0
      %2801 = vmatprep.subr.mxu0 0.0
      %2802 = vmatpush1.msra.mxu0 0.0
      %2803 = vmatprep.subr.mxu0 0.0
      %2804 = vmatpush1.msra.mxu0 0.0
      %2805 = vmatprep.subr.mxu0 0.0
      %2806 = vmatpush1.msra.mxu0 0.0
      %2807 = vmatprep.subr.mxu0 0.0
      %2808 = vmatpush1.msra.mxu0 0.0
      %2809 = vmatprep.subr.mxu0 0.0
      %2810 = vmatpush1.msra.mxu0 0.0
      %2811 = vmatprep.subr.mxu0 0.0
      %2812 = vmatpush1.msra.mxu0 0.0
      %2813 = vmatprep.subr.mxu0 0.0
      %2814 = vmatpush1.msra.mxu0 0.0
      %2815 = vmatprep.subr.mxu0 0.0
      %2816 = vmatpush1.msra.mxu0 0.0
      %2817 = vmatprep.subr.mxu0 0.0
      %2818 = vmatpush1.msra.mxu0 0.0
      %2819 = vmatprep.subr.mxu0 0.0
      %2820 = vmatpush1.msra.mxu0 0.0
      %2821 = vmatprep.subr.mxu0 0.0
      %2822 = vmatpush1.msra.mxu0 0.0
      %2823 = vmatprep.subr.mxu0 0.0
      %2824 = vmatpush1.msra.mxu0 0.0
      %2825 = vmatprep.subr.mxu0 0.0
      %2826 = vmatpush1.msra.mxu0 0.0
      %2827 = vmatprep.subr.mxu0 0.0
      %2828 = vmatpush1.msra.mxu0 0.0
      %2829 = vmatprep.subr.mxu0 0.0
      %2830 = vmatpush1.msra.mxu0 0.0
      %2831 = vmatprep.subr.mxu0 0.0
      %2832 = vmatpush1.msra.mxu0 0.0
      %2833 = vmatprep.subr.mxu0 0.0
      %2834 = vmatpush1.msra.mxu0 0.0
      %2835 = vmatprep.subr.mxu0 0.0
      %2836 = vmatpush1.msra.mxu0 0.0
      %2837 = vmatprep.subr.mxu0 0.0
      %2838 = vmatpush1.msra.mxu0 0.0
      %2839 = vmatprep.subr.mxu0 0.0
      %2840 = vmatpush1.msra.mxu0 0.0
      %2841 = vmatprep.subr.mxu0 0.0
      %2842 = vmatpush1.msra.mxu0 0.0
      %2843 = vmatprep.subr.mxu0 0.0
      %2844 = vmatpush1.msra.mxu0 0.0
      %2845 = vmatprep.subr.mxu0 0.0
      %2846 = vmatpush1.msra.mxu0 0.0
      %2847 = vmatprep.subr.mxu0 0.0
      %2848 = vmatpush1.msra.mxu0 0.0
      %2849 = vmatprep.mubr.f32.mxu0 0.0
      %2850 = vmatmul.mubr.f32.gmra.mrb[0].mxu0 %v2507
      %v2851 = vpop.f32.mrb[0].mxu0
      %v2852 = vadd.f32 %v2488, %v2851
      %v2853 = vpop.f32.mrb[0].mxu0
      %v2854 = vadd.f32 %v2488, %v2853
      %2855 = vmatprep.mubr.f32.mxu0 0.0
      %2856 = vmatmul.mubr.f32.gmra.mrb[0].mxu0 %v2510
      %v2857 = vpop.f32.mrb[0].mxu0
      %v2858 = vadd.f32 %v2493, %v2857
      %v2859 = vpop.f32.mrb[0].mxu0
      %v2860 = vadd.f32 %v2493, %v2859
      %2861 = vmatprep.mubr.f32.mxu0 0.0
      %2862 = vmatmul.mubr.f32.gmra.mrb[0].mxu0 %v2513
      %v2863 = vpop.f32.mrb[0].mxu0
      %v2864 = vadd.f32 %v2498, %v2863
      %v2865 = vpop.f32.mrb[0].mxu0
      %v2866 = vadd.f32 %v2498, %v2865
      %2867 = vmatprep.mubr.f32.mxu0 0.0
      %2868 = vmatmul.mubr.f32.gmra.mrb[0].mxu0 %v2516
      %v2869 = vpop.f32.mrb[0].mxu0
      %v2870 = vadd.f32 %v2503, %v2869
      %v2871 = vpop.f32.mrb[0].mxu0
      %v2872 = vadd.f32 %v2503, %v2871
      %2873 = vdwg.mxu0
      %2874 = vxpose.xlu0.b32.start [1/16] %v2585, 128
      %2875 = vxpose.xlu0.b32.cont [2/16] %v2591, 128
      %2876 = vxpose.xlu0.b32.cont [3/16] %v2597, 128
      %2877 = vxpose.xlu0.b32.cont [4/16] %v2603, 128
      %2878 = vxpose.xlu0.b32.cont [5/16] 0.0, 128
      %2879 = vxpose.xlu0.b32.cont [6/16] 0.0, 128
      %2880 = vxpose.xlu0.b32.cont [7/16] 0.0, 128
      %2881 = vxpose.xlu0.b32.cont [8/16] 0.0, 128
      %2882 = vxpose.xlu0.b32.cont [9/16] 0.0, 128
      %2883 = vxpose.xlu0.b32.cont [10/16] 0.0, 128
      %2884 = vxpose.xlu0.b32.cont [11/16] 0.0, 128
      %2885 = vxpose.xlu0.b32.cont [12/16] 0.0, 128
      %2886 = vxpose.xlu0.b32.cont [13/16] 0.0, 128
      %2887 = vxpose.xlu0.b32.cont [14/16] 0.0, 128
      %2888 = vxpose.xlu0.b32.cont [15/16] 0.0, 128
      %2889 = vxpose.xlu0.b32.end [16/16] 0.0, 128
      %v2890 = vpop.trf.xlu0
      %v2891 = vpop.trf.xlu0
      %v2892 = vpop.trf.xlu0
      %v2893 = vpop.trf.xlu0
      %v2894 = vpop.trf.xlu0
      %v2895 = vpop.trf.xlu0
      %v2896 = vpop.trf.xlu0
      %v2897 = vpop.trf.xlu0
      %v2898 = vpop.trf.xlu0
      %v2899 = vpop.trf.xlu0
      %v2900 = vpop.trf.xlu0
      %v2901 = vpop.trf.xlu0
      %v2902 = vpop.trf.xlu0
      %v2903 = vpop.trf.xlu0
      %v2904 = vpop.trf.xlu0
      %v2905 = vpop.trf.xlu0
      %2906 = vxpose.xlu0.b32.start [1/16] %v2587, 128
      %2907 = vxpose.xlu0.b32.cont [2/16] %v2593, 128
      %2908 = vxpose.xlu0.b32.cont [3/16] %v2599, 128
      %2909 = vxpose.xlu0.b32.cont [4/16] %v2605, 128
      %2910 = vxpose.xlu0.b32.cont [5/16] 0.0, 128
      %2911 = vxpose.xlu0.b32.cont [6/16] 0.0, 128
      %2912 = vxpose.xlu0.b32.cont [7/16] 0.0, 128
      %2913 = vxpose.xlu0.b32.cont [8/16] 0.0, 128
      %2914 = vxpose.xlu0.b32.cont [9/16] 0.0, 128
      %2915 = vxpose.xlu0.b32.cont [10/16] 0.0, 128
      %2916 = vxpose.xlu0.b32.cont [11/16] 0.0, 128
      %2917 = vxpose.xlu0.b32.cont [12/16] 0.0, 128
      %2918 = vxpose.xlu0.b32.cont [13/16] 0.0, 128
      %2919 = vxpose.xlu0.b32.cont [14/16] 0.0, 128
      %2920 = vxpose.xlu0.b32.cont [15/16] 0.0, 128
      %2921 = vxpose.xlu0.b32.end [16/16] 0.0, 128
      %v2922 = vpop.trf.xlu0
      %v2923 = vpop.trf.xlu0
      %v2924 = vpop.trf.xlu0
      %v2925 = vpop.trf.xlu0
      %v2926 = vpop.trf.xlu0
      %v2927 = vpop.trf.xlu0
      %v2928 = vpop.trf.xlu0
      %v2929 = vpop.trf.xlu0
      %v2930 = vpop.trf.xlu0
      %v2931 = vpop.trf.xlu0
      %v2932 = vpop.trf.xlu0
      %v2933 = vpop.trf.xlu0
      %v2934 = vpop.trf.xlu0
      %v2935 = vpop.trf.xlu0
      %v2936 = vpop.trf.xlu0
      %v2937 = vpop.trf.xlu0
      %2938 = vxpose.xlu0.b32.start [1/16] %v2674, 128
      %2939 = vxpose.xlu0.b32.cont [2/16] %v2680, 128
      %2940 = vxpose.xlu0.b32.cont [3/16] %v2686, 128
      %2941 = vxpose.xlu0.b32.cont [4/16] %v2692, 128
      %2942 = vxpose.xlu0.b32.cont [5/16] 0.0, 128
      %2943 = vxpose.xlu0.b32.cont [6/16] 0.0, 128
      %2944 = vxpose.xlu0.b32.cont [7/16] 0.0, 128
      %2945 = vxpose.xlu0.b32.cont [8/16] 0.0, 128
      %2946 = vxpose.xlu0.b32.cont [9/16] 0.0, 128
      %2947 = vxpose.xlu0.b32.cont [10/16] 0.0, 128
      %2948 = vxpose.xlu0.b32.cont [11/16] 0.0, 128
      %2949 = vxpose.xlu0.b32.cont [12/16] 0.0, 128
      %2950 = vxpose.xlu0.b32.cont [13/16] 0.0, 128
      %2951 = vxpose.xlu0.b32.cont [14/16] 0.0, 128
      %2952 = vxpose.xlu0.b32.cont [15/16] 0.0, 128
      %2953 = vxpose.xlu0.b32.end [16/16] 0.0, 128
      %v2954 = vpop.trf.xlu0
      %v2955 = vpop.trf.xlu0
      %v2956 = vpop.trf.xlu0
      %v2957 = vpop.trf.xlu0
      %v2958 = vpop.trf.xlu0
      %v2959 = vpop.trf.xlu0
      %v2960 = vpop.trf.xlu0
      %v2961 = vpop.trf.xlu0
      %v2962 = vpop.trf.xlu0
      %v2963 = vpop.trf.xlu0
      %v2964 = vpop.trf.xlu0
      %v2965 = vpop.trf.xlu0
      %v2966 = vpop.trf.xlu0
      %v2967 = vpop.trf.xlu0
      %v2968 = vpop.trf.xlu0
      %v2969 = vpop.trf.xlu0
      %2970 = vxpose.xlu0.b32.start [1/16] %v2676, 128
      %2971 = vxpose.xlu0.b32.cont [2/16] %v2682, 128
      %2972 = vxpose.xlu0.b32.cont [3/16] %v2688, 128
      %2973 = vxpose.xlu0.b32.cont [4/16] %v2694, 128
      %2974 = vxpose.xlu0.b32.cont [5/16] 0.0, 128
      %2975 = vxpose.xlu0.b32.cont [6/16] 0.0, 128
      %2976 = vxpose.xlu0.b32.cont [7/16] 0.0, 128
      %2977 = vxpose.xlu0.b32.cont [8/16] 0.0, 128
      %2978 = vxpose.xlu0.b32.cont [9/16] 0.0, 128
      %2979 = vxpose.xlu0.b32.cont [10/16] 0.0, 128
      %2980 = vxpose.xlu0.b32.cont [11/16] 0.0, 128
      %2981 = vxpose.xlu0.b32.cont [12/16] 0.0, 128
      %2982 = vxpose.xlu0.b32.cont [13/16] 0.0, 128
      %2983 = vxpose.xlu0.b32.cont [14/16] 0.0, 128
      %2984 = vxpose.xlu0.b32.cont [15/16] 0.0, 128
      %2985 = vxpose.xlu0.b32.end [16/16] 0.0, 128
      %v2986 = vpop.trf.xlu0
      %v2987 = vpop.trf.xlu0
      %v2988 = vpop.trf.xlu0
      %v2989 = vpop.trf.xlu0
      %v2990 = vpop.trf.xlu0
      %v2991 = vpop.trf.xlu0
      %v2992 = vpop.trf.xlu0
      %v2993 = vpop.trf.xlu0
      %v2994 = vpop.trf.xlu0
      %v2995 = vpop.trf.xlu0
      %v2996 = vpop.trf.xlu0
      %v2997 = vpop.trf.xlu0
      %v2998 = vpop.trf.xlu0
      %v2999 = vpop.trf.xlu0
      %v3000 = vpop.trf.xlu0
      %v3001 = vpop.trf.xlu0
      %3002 = vxpose.xlu0.b32.start [1/16] %v2763, 128
      %3003 = vxpose.xlu0.b32.cont [2/16] %v2769, 128
      %3004 = vxpose.xlu0.b32.cont [3/16] %v2775, 128
      %3005 = vxpose.xlu0.b32.cont [4/16] %v2781, 128
      %3006 = vxpose.xlu0.b32.cont [5/16] 0.0, 128
      %3007 = vxpose.xlu0.b32.cont [6/16] 0.0, 128
      %3008 = vxpose.xlu0.b32.cont [7/16] 0.0, 128
      %3009 = vxpose.xlu0.b32.cont [8/16] 0.0, 128
      %3010 = vxpose.xlu0.b32.cont [9/16] 0.0, 128
      %3011 = vxpose.xlu0.b32.cont [10/16] 0.0, 128
      %3012 = vxpose.xlu0.b32.cont [11/16] 0.0, 128
      %3013 = vxpose.xlu0.b32.cont [12/16] 0.0, 128
      %3014 = vxpose.xlu0.b32.cont [13/16] 0.0, 128
      %3015 = vxpose.xlu0.b32.cont [14/16] 0.0, 128
      %3016 = vxpose.xlu0.b32.cont [15/16] 0.0, 128
      %3017 = vxpose.xlu0.b32.end [16/16] 0.0, 128
      %v3018 = vpop.trf.xlu0
      %v3019 = vpop.trf.xlu0
      %v3020 = vpop.trf.xlu0
      %v3021 = vpop.trf.xlu0
      %v3022 = vpop.trf.xlu0
      %v3023 = vpop.trf.xlu0
      %v3024 = vpop.trf.xlu0
      %v3025 = vpop.trf.xlu0
      %v3026 = vpop.trf.xlu0
      %v3027 = vpop.trf.xlu0
      %v3028 = vpop.trf.xlu0
      %v3029 = vpop.trf.xlu0
      %v3030 = vpop.trf.xlu0
      %v3031 = vpop.trf.xlu0
      %v3032 = vpop.trf.xlu0
      %v3033 = vpop.trf.xlu0
      %3034 = vxpose.xlu0.b32.start [1/16] %v2765, 128
      %3035 = vxpose.xlu0.b32.cont [2/16] %v2771, 128
      %3036 = vxpose.xlu0.b32.cont [3/16] %v2777, 128
      %3037 = vxpose.xlu0.b32.cont [4/16] %v2783, 128
      %3038 = vxpose.xlu0.b32.cont [5/16] 0.0, 128
      %3039 = vxpose.xlu0.b32.cont [6/16] 0.0, 128
      %3040 = vxpose.xlu0.b32.cont [7/16] 0.0, 128
      %3041 = vxpose.xlu0.b32.cont [8/16] 0.0, 128
      %3042 = vxpose.xlu0.b32.cont [9/16] 0.0, 128
      %3043 = vxpose.xlu0.b32.cont [10/16] 0.0, 128
      %3044 = vxpose.xlu0.b32.cont [11/16] 0.0, 128
      %3045 = vxpose.xlu0.b32.cont [12/16] 0.0, 128
      %3046 = vxpose.xlu0.b32.cont [13/16] 0.0, 128
      %3047 = vxpose.xlu0.b32.cont [14/16] 0.0, 128
      %3048 = vxpose.xlu0.b32.cont [15/16] 0.0, 128
      %3049 = vxpose.xlu0.b32.end [16/16] 0.0, 128
      %v3050 = vpop.trf.xlu0
      %v3051 = vpop.trf.xlu0
      %v3052 = vpop.trf.xlu0
      %v3053 = vpop.trf.xlu0
      %v3054 = vpop.trf.xlu0
      %v3055 = vpop.trf.xlu0
      %v3056 = vpop.trf.xlu0
      %v3057 = vpop.trf.xlu0
      %v3058 = vpop.trf.xlu0
      %v3059 = vpop.trf.xlu0
      %v3060 = vpop.trf.xlu0
      %v3061 = vpop.trf.xlu0
      %v3062 = vpop.trf.xlu0
      %v3063 = vpop.trf.xlu0
      %v3064 = vpop.trf.xlu0
      %v3065 = vpop.trf.xlu0
      %3066 = vxpose.xlu0.b32.start [1/16] %v2852, 128
      %3067 = vxpose.xlu0.b32.cont [2/16] %v2858, 128
      %3068 = vxpose.xlu0.b32.cont [3/16] %v2864, 128
      %3069 = vxpose.xlu0.b32.cont [4/16] %v2870, 128
      %3070 = vxpose.xlu0.b32.cont [5/16] 0.0, 128
      %3071 = vxpose.xlu0.b32.cont [6/16] 0.0, 128
      %3072 = vxpose.xlu0.b32.cont [7/16] 0.0, 128
      %3073 = vxpose.xlu0.b32.cont [8/16] 0.0, 128
      %3074 = vxpose.xlu0.b32.cont [9/16] 0.0, 128
      %3075 = vxpose.xlu0.b32.cont [10/16] 0.0, 128
      %3076 = vxpose.xlu0.b32.cont [11/16] 0.0, 128
      %3077 = vxpose.xlu0.b32.cont [12/16] 0.0, 128
      %3078 = vxpose.xlu0.b32.cont [13/16] 0.0, 128
      %3079 = vxpose.xlu0.b32.cont [14/16] 0.0, 128
      %3080 = vxpose.xlu0.b32.cont [15/16] 0.0, 128
      %3081 = vxpose.xlu0.b32.end [16/16] 0.0, 128
      %v3082 = vpop.trf.xlu0
      %v3083 = vpop.trf.xlu0
      %v3084 = vpop.trf.xlu0
      %v3085 = vpop.trf.xlu0
      %v3086 = vpop.trf.xlu0
      %v3087 = vpop.trf.xlu0
      %v3088 = vpop.trf.xlu0
      %v3089 = vpop.trf.xlu0
      %v3090 = vpop.trf.xlu0
      %v3091 = vpop.trf.xlu0
      %v3092 = vpop.trf.xlu0
      %v3093 = vpop.trf.xlu0
      %v3094 = vpop.trf.xlu0
      %v3095 = vpop.trf.xlu0
      %v3096 = vpop.trf.xlu0
      %v3097 = vpop.trf.xlu0
      %3098 = vxpose.xlu0.b32.start [1/16] %v2854, 128
      %3099 = vxpose.xlu0.b32.cont [2/16] %v2860, 128
      %3100 = vxpose.xlu0.b32.cont [3/16] %v2866, 128
      %3101 = vxpose.xlu0.b32.cont [4/16] %v2872, 128
      %3102 = vxpose.xlu0.b32.cont [5/16] 0.0, 128
      %3103 = vxpose.xlu0.b32.cont [6/16] 0.0, 128
      %3104 = vxpose.xlu0.b32.cont [7/16] 0.0, 128
      %3105 = vxpose.xlu0.b32.cont [8/16] 0.0, 128
      %3106 = vxpose.xlu0.b32.cont [9/16] 0.0, 128
      %3107 = vxpose.xlu0.b32.cont [10/16] 0.0, 128
      %3108 = vxpose.xlu0.b32.cont [11/16] 0.0, 128
      %3109 = vxpose.xlu0.b32.cont [12/16] 0.0, 128
      %3110 = vxpose.xlu0.b32.cont [13/16] 0.0, 128
      %3111 = vxpose.xlu0.b32.cont [14/16] 0.0, 128
      %3112 = vxpose.xlu0.b32.cont [15/16] 0.0, 128
      %3113 = vxpose.xlu0.b32.end [16/16] 0.0, 128
      %v3114 = vpop.trf.xlu0
      %v3115 = vpop.trf.xlu0
      %v3116 = vpop.trf.xlu0
      %v3117 = vpop.trf.xlu0
      %v3118 = vpop.trf.xlu0
      %v3119 = vpop.trf.xlu0
      %v3120 = vpop.trf.xlu0
      %v3121 = vpop.trf.xlu0
      %v3122 = vpop.trf.xlu0
      %v3123 = vpop.trf.xlu0
      %v3124 = vpop.trf.xlu0
      %v3125 = vpop.trf.xlu0
      %v3126 = vpop.trf.xlu0
      %v3127 = vpop.trf.xlu0
      %v3128 = vpop.trf.xlu0
      %v3129 = vpop.trf.xlu0
      %vm3130 = vcmask 261120
      %3131 = vst.msk [vmem:[%s250] sm:$0xff] %vm3130, %v2890
      %3132 = vst.msk [vmem:[%s250 + $0x8] sm:$0xff] %vm3130, %v2891
      %3133 = vst.msk [vmem:[%s250 + $0x10] sm:$0xff] %vm3130, %v2892
      %3134 = vst.msk [vmem:[%s250 + $0x18] sm:$0xff] %vm3130, %v2893
      %3135 = vst.msk [vmem:[%s250 + $0x20] sm:$0xff] %vm3130, %v2894
      %3136 = vst.msk [vmem:[%s250 + $0x28] sm:$0xff] %vm3130, %v2895
      %3137 = vst.msk [vmem:[%s250 + $0x30] sm:$0xff] %vm3130, %v2896
      %3138 = vst.msk [vmem:[%s250 + $0x38] sm:$0xff] %vm3130, %v2897
      %3139 = vst.msk [vmem:[%s250 + $0x40] sm:$0xff] %vm3130, %v2898
      %3140 = vst.msk [vmem:[%s250 + $0x48] sm:$0xff] %vm3130, %v2899
      %3141 = vst.msk [vmem:[%s250 + $0x50] sm:$0xff] %vm3130, %v2900
      %3142 = vst.msk [vmem:[%s250 + $0x58] sm:$0xff] %vm3130, %v2901
      %3143 = vst.msk [vmem:[%s250 + $0x60] sm:$0xff] %vm3130, %v2902
      %3144 = vst.msk [vmem:[%s250 + $0x68] sm:$0xff] %vm3130, %v2903
      %3145 = vst.msk [vmem:[%s250 + $0x70] sm:$0xff] %vm3130, %v2904
      %3146 = vst.msk [vmem:[%s250 + $0x78] sm:$0xff] %vm3130, %v2905
      %3147 = vst.msk [vmem:[%s250 + $0x80] sm:$0xff] %vm3130, %v2922
      %3148 = vst.msk [vmem:[%s250 + $0x88] sm:$0xff] %vm3130, %v2923
      %3149 = vst.msk [vmem:[%s250 + $0x90] sm:$0xff] %vm3130, %v2924
      %3150 = vst.msk [vmem:[%s250 + $0x98] sm:$0xff] %vm3130, %v2925
      %3151 = vst.msk [vmem:[%s250 + $0xa0] sm:$0xff] %vm3130, %v2926
      %3152 = vst.msk [vmem:[%s250 + $0xa8] sm:$0xff] %vm3130, %v2927
      %3153 = vst.msk [vmem:[%s250 + $0xb0] sm:$0xff] %vm3130, %v2928
      %3154 = vst.msk [vmem:[%s250 + $0xb8] sm:$0xff] %vm3130, %v2929
      %3155 = vst.msk [vmem:[%s250 + $0xc0] sm:$0xff] %vm3130, %v2930
      %3156 = vst.msk [vmem:[%s250 + $0xc8] sm:$0xff] %vm3130, %v2931
      %3157 = vst.msk [vmem:[%s250 + $0xd0] sm:$0xff] %vm3130, %v2932
      %3158 = vst.msk [vmem:[%s250 + $0xd8] sm:$0xff] %vm3130, %v2933
      %3159 = vst.msk [vmem:[%s250 + $0xe0] sm:$0xff] %vm3130, %v2934
      %3160 = vst.msk [vmem:[%s250 + $0xe8] sm:$0xff] %vm3130, %v2935
      %3161 = vst.msk [vmem:[%s250 + $0xf0] sm:$0xff] %vm3130, %v2936
      %3162 = vst.msk [vmem:[%s250 + $0xf8] sm:$0xff] %vm3130, %v2937
      %3163 = vst.msk [vmem:[%s250 + $0x100] sm:$0xff] %vm3130, %v2954
      %3164 = vst.msk [vmem:[%s250 + $0x108] sm:$0xff] %vm3130, %v2955
      %3165 = vst.msk [vmem:[%s250 + $0x110] sm:$0xff] %vm3130, %v2956
      %3166 = vst.msk [vmem:[%s250 + $0x118] sm:$0xff] %vm3130, %v2957
      %3167 = vst.msk [vmem:[%s250 + $0x120] sm:$0xff] %vm3130, %v2958
      %3168 = vst.msk [vmem:[%s250 + $0x128] sm:$0xff] %vm3130, %v2959
      %3169 = vst.msk [vmem:[%s250 + $0x130] sm:$0xff] %vm3130, %v2960
      %3170 = vst.msk [vmem:[%s250 + $0x138] sm:$0xff] %vm3130, %v2961
      %3171 = vst.msk [vmem:[%s250 + $0x140] sm:$0xff] %vm3130, %v2962
      %3172 = vst.msk [vmem:[%s250 + $0x148] sm:$0xff] %vm3130, %v2963
      %3173 = vst.msk [vmem:[%s250 + $0x150] sm:$0xff] %vm3130, %v2964
      %3174 = vst.msk [vmem:[%s250 + $0x158] sm:$0xff] %vm3130, %v2965
      %3175 = vst.msk [vmem:[%s250 + $0x160] sm:$0xff] %vm3130, %v2966
      %3176 = vst.msk [vmem:[%s250 + $0x168] sm:$0xff] %vm3130, %v2967
      %3177 = vst.msk [vmem:[%s250 + $0x170] sm:$0xff] %vm3130, %v2968
      %3178 = vst.msk [vmem:[%s250 + $0x178] sm:$0xff] %vm3130, %v2969
      %3179 = vst.msk [vmem:[%s250 + $0x180] sm:$0xff] %vm3130, %v2986
      %3180 = vst.msk [vmem:[%s250 + $0x188] sm:$0xff] %vm3130, %v2987
      %3181 = vst.msk [vmem:[%s250 + $0x190] sm:$0xff] %vm3130, %v2988
      %3182 = vst.msk [vmem:[%s250 + $0x198] sm:$0xff] %vm3130, %v2989
      %3183 = vst.msk [vmem:[%s250 + $0x1a0] sm:$0xff] %vm3130, %v2990
      %3184 = vst.msk [vmem:[%s250 + $0x1a8] sm:$0xff] %vm3130, %v2991
      %3185 = vst.msk [vmem:[%s250 + $0x1b0] sm:$0xff] %vm3130, %v2992
      %3186 = vst.msk [vmem:[%s250 + $0x1b8] sm:$0xff] %vm3130, %v2993
      %3187 = vst.msk [vmem:[%s250 + $0x1c0] sm:$0xff] %vm3130, %v2994
      %3188 = vst.msk [vmem:[%s250 + $0x1c8] sm:$0xff] %vm3130, %v2995
      %3189 = vst.msk [vmem:[%s250 + $0x1d0] sm:$0xff] %vm3130, %v2996
      %3190 = vst.msk [vmem:[%s250 + $0x1d8] sm:$0xff] %vm3130, %v2997
      %3191 = vst.msk [vmem:[%s250 + $0x1e0] sm:$0xff] %vm3130, %v2998
      %3192 = vst.msk [vmem:[%s250 + $0x1e8] sm:$0xff] %vm3130, %v2999
      %3193 = vst.msk [vmem:[%s250 + $0x1f0] sm:$0xff] %vm3130, %v3000
      %3194 = vst.msk [vmem:[%s250 + $0x1f8] sm:$0xff] %vm3130, %v3001
      %3195 = vst.msk [vmem:[%s250 + $0x200] sm:$0xff] %vm3130, %v3018
      %3196 = vst.msk [vmem:[%s250 + $0x208] sm:$0xff] %vm3130, %v3019
      %3197 = vst.msk [vmem:[%s250 + $0x210] sm:$0xff] %vm3130, %v3020
      %3198 = vst.msk [vmem:[%s250 + $0x218] sm:$0xff] %vm3130, %v3021
      %3199 = vst.msk [vmem:[%s250 + $0x220] sm:$0xff] %vm3130, %v3022
      %3200 = vst.msk [vmem:[%s250 + $0x228] sm:$0xff] %vm3130, %v3023
      %3201 = vst.msk [vmem:[%s250 + $0x230] sm:$0xff] %vm3130, %v3024
      %3202 = vst.msk [vmem:[%s250 + $0x238] sm:$0xff] %vm3130, %v3025
      %3203 = vst.msk [vmem:[%s250 + $0x240] sm:$0xff] %vm3130, %v3026
      %3204 = vst.msk [vmem:[%s250 + $0x248] sm:$0xff] %vm3130, %v3027
      %3205 = vst.msk [vmem:[%s250 + $0x250] sm:$0xff] %vm3130, %v3028
      %3206 = vst.msk [vmem:[%s250 + $0x258] sm:$0xff] %vm3130, %v3029
      %3207 = vst.msk [vmem:[%s250 + $0x260] sm:$0xff] %vm3130, %v3030
      %3208 = vst.msk [vmem:[%s250 + $0x268] sm:$0xff] %vm3130, %v3031
      %3209 = vst.msk [vmem:[%s250 + $0x270] sm:$0xff] %vm3130, %v3032
      %3210 = vst.msk [vmem:[%s250 + $0x278] sm:$0xff] %vm3130, %v3033
      %3211 = vst.msk [vmem:[%s250 + $0x280] sm:$0xff] %vm3130, %v3050
      %3212 = vst.msk [vmem:[%s250 + $0x288] sm:$0xff] %vm3130, %v3051
      %3213 = vst.msk [vmem:[%s250 + $0x290] sm:$0xff] %vm3130, %v3052
      %3214 = vst.msk [vmem:[%s250 + $0x298] sm:$0xff] %vm3130, %v3053
      %3215 = vst.msk [vmem:[%s250 + $0x2a0] sm:$0xff] %vm3130, %v3054
      %3216 = vst.msk [vmem:[%s250 + $0x2a8] sm:$0xff] %vm3130, %v3055
      %3217 = vst.msk [vmem:[%s250 + $0x2b0] sm:$0xff] %vm3130, %v3056
      %3218 = vst.msk [vmem:[%s250 + $0x2b8] sm:$0xff] %vm3130, %v3057
      %3219 = vst.msk [vmem:[%s250 + $0x2c0] sm:$0xff] %vm3130, %v3058
      %3220 = vst.msk [vmem:[%s250 + $0x2c8] sm:$0xff] %vm3130, %v3059
      %3221 = vst.msk [vmem:[%s250 + $0x2d0] sm:$0xff] %vm3130, %v3060
      %3222 = vst.msk [vmem:[%s250 + $0x2d8] sm:$0xff] %vm3130, %v3061
      %3223 = vst.msk [vmem:[%s250 + $0x2e0] sm:$0xff] %vm3130, %v3062
      %3224 = vst.msk [vmem:[%s250 + $0x2e8] sm:$0xff] %vm3130, %v3063
      %3225 = vst.msk [vmem:[%s250 + $0x2f0] sm:$0xff] %vm3130, %v3064
      %3226 = vst.msk [vmem:[%s250 + $0x2f8] sm:$0xff] %vm3130, %v3065
      %3227 = vst.msk [vmem:[%s250 + $0x300] sm:$0xff] %vm3130, %v3082
      %3228 = vst.msk [vmem:[%s250 + $0x308] sm:$0xff] %vm3130, %v3083
      %3229 = vst.msk [vmem:[%s250 + $0x310] sm:$0xff] %vm3130, %v3084
      %3230 = vst.msk [vmem:[%s250 + $0x318] sm:$0xff] %vm3130, %v3085
      %3231 = vst.msk [vmem:[%s250 + $0x320] sm:$0xff] %vm3130, %v3086
      %3232 = vst.msk [vmem:[%s250 + $0x328] sm:$0xff] %vm3130, %v3087
      %3233 = vst.msk [vmem:[%s250 + $0x330] sm:$0xff] %vm3130, %v3088
      %3234 = vst.msk [vmem:[%s250 + $0x338] sm:$0xff] %vm3130, %v3089
      %3235 = vst.msk [vmem:[%s250 + $0x340] sm:$0xff] %vm3130, %v3090
      %3236 = vst.msk [vmem:[%s250 + $0x348] sm:$0xff] %vm3130, %v3091
      %3237 = vst.msk [vmem:[%s250 + $0x350] sm:$0xff] %vm3130, %v3092
      %3238 = vst.msk [vmem:[%s250 + $0x358] sm:$0xff] %vm3130, %v3093
      %3239 = vst.msk [vmem:[%s250 + $0x360] sm:$0xff] %vm3130, %v3094
      %3240 = vst.msk [vmem:[%s250 + $0x368] sm:$0xff] %vm3130, %v3095
      %3241 = vst.msk [vmem:[%s250 + $0x370] sm:$0xff] %vm3130, %v3096
      %3242 = vst.msk [vmem:[%s250 + $0x378] sm:$0xff] %vm3130, %v3097
      %3243 = vst.msk [vmem:[%s250 + $0x380] sm:$0xff] %vm3130, %v3114
      %3244 = vst.msk [vmem:[%s250 + $0x388] sm:$0xff] %vm3130, %v3115
      %3245 = vst.msk [vmem:[%s250 + $0x390] sm:$0xff] %vm3130, %v3116
      %3246 = vst.msk [vmem:[%s250 + $0x398] sm:$0xff] %vm3130, %v3117
      %3247 = vst.msk [vmem:[%s250 + $0x3a0] sm:$0xff] %vm3130, %v3118
      %3248 = vst.msk [vmem:[%s250 + $0x3a8] sm:$0xff] %vm3130, %v3119
      %3249 = vst.msk [vmem:[%s250 + $0x3b0] sm:$0xff] %vm3130, %v3120
      %3250 = vst.msk [vmem:[%s250 + $0x3b8] sm:$0xff] %vm3130, %v3121
      %3251 = vst.msk [vmem:[%s250 + $0x3c0] sm:$0xff] %vm3130, %v3122
      %3252 = vst.msk [vmem:[%s250 + $0x3c8] sm:$0xff] %vm3130, %v3123
      %3253 = vst.msk [vmem:[%s250 + $0x3d0] sm:$0xff] %vm3130, %v3124
      %3254 = vst.msk [vmem:[%s250 + $0x3d8] sm:$0xff] %vm3130, %v3125
      %3255 = vst.msk [vmem:[%s250 + $0x3e0] sm:$0xff] %vm3130, %v3126
      %3256 = vst.msk [vmem:[%s250 + $0x3e8] sm:$0xff] %vm3130, %v3127
      %3257 = vst.msk [vmem:[%s250 + $0x3f0] sm:$0xff] %vm3130, %v3128
      %3258 = vst.msk [vmem:[%s250 + $0x3f8] sm:$0xff] %vm3130, %v3129
      %s3259 = smul.u32 128, %s17
      %p3260 = scmp.lt.s32.totalorder %s3259, 255
      %s3261 = scalar_select %p3260, %s3259, 255
      %s3262 = smul.addr %s3261, 8
      %s3263 = scalar_lea.vmem %s6, %s3262
      // Predicated region
      $region45: #{radialnet_forward.1} parent=43 // pred_check
        %p3264 = pneg %p166
      $region46: #{radialnet_forward.1} parent=43 // pred_check_branch
        %3266 = sbr.rel (%p3264) target = $region48
      $region47: #{radialnet_forward.1} parent=43 // pred_region
        %s3267 = smul.u32 128, %s17
      $region48: #{radialnet_forward.1} parent=43 // pred_fallthru
        _
    $region44: #{radialnet_forward.1} parent=5 // pred_fallthru
      _
    %p3268 = scmp.le.s32.totalorder 2, %s12
    // Predicated region
    $region49: #{radialnet_forward.1} parent=5 // pred_check
      %p3269 = pneg %p3268
    $region50: #{radialnet_forward.1} parent=5 // pred_check_branch
      %3271 = sbr.rel (%p3269) target = $region52
    $region51: #{radialnet_forward.1} parent=5 // pred_region
      %s3272 = ssub.s32 %s12, 2
      // Predicated region
      $region53: #{radialnet_forward.1} parent=51 // pred_check
        %p3273 = pneg %p172
      $region54: #{radialnet_forward.1} parent=51 // pred_check_branch
        %3275 = sbr.rel (%p3273) target = $region56
      $region55: #{radialnet_forward.1} parent=51 // pred_region
        %s3276 = smul.u32 128, %s18
        %p3277 = scmp.lt.s32.totalorder %s3276, 255
        %s3278 = scalar_select %p3277, %s3276, 255
        %s3279 = smul.addr %s3278, 8
        %s3280 = scalar_lea.vmem %s6, %s3279
      $region56: #{radialnet_forward.1} parent=51 // pred_fallthru
        _
    $region52: #{radialnet_forward.1} parent=5 // pred_fallthru
      _
  $region6: #{radialnet_forward.1} parent=0 // loop_footer
    %s16 = sadd.s32 1, %s12
  $region7: #{radialnet_forward.1} parent=0 // loop_footer_branch
    %11 = sbr.rel target = $region3
  $region8: #{radialnet_forward.1} parent=0 // loop_exit
    _

</llo_original>
